<compile_context>
chip_gen: v6e
topology: v6e:2x2x1
jax: 0.10.0
libtpu: 0.0.40
codegen_flags: <defaults>
</compile_context>

<pallas_src>
import numpy as np
import jax
import jax.numpy as jnp
from jax.experimental import pallas as pl
from jax.experimental.pallas import tpu as pltpu

N = 16        # number of nodes (all graphs concatenated)
E = N * N     # dense directed edge count, edge e = i*N + j (i = target, j = source)
B = 2         # number of graphs in the batch
F_IN = 4      # input node feature size
H = 32        # hidden feature size
H2 = 16       # energy-MLP hidden size
L = 2         # number of interaction ("sake_conv") layers
CUTOFF = 1.0  # radius_graph cutoff

PADK = ((2 * N + 2 + 7) // 8) * 8          # fused edge-gather contraction dim (40)
NODE_W = F_IN + 1 + B                      # [h | 1 | one_hot(batch)] columns


# ---------------------------------------------------------------------------
# static parameter-slab layout (all offsets are multiples of 8 sublanes)
# ---------------------------------------------------------------------------
def _build_layout():
    offs = {}
    cursor = 0

    def alloc(name, rows):
        nonlocal cursor
        offs[name] = cursor
        cursor += ((rows + 7) // 8) * 8

    alloc("in", F_IN + 1)                  # [w_in ; b_in]
    for l in range(L):
        alloc(f"hi{l}", H)                 # we_hi
        alloc(f"hj{l}", H)                 # we_hj
        alloc(f"db{l}", 2)                 # [we_d ; be1] (+6 zero rows of padding)
        alloc(f"e2{l}", H)                 # we2
        alloc(f"be2{l}", 1)                # be2
        alloc(f"nh{l}", H)                 # wn_h
        alloc(f"nm{l}", H)                 # wn_m
        alloc(f"bn1{l}", 1)                # bn1
        alloc(f"n2{l}", H)                 # wn2
        alloc(f"bn2{l}", 1)                # bn2
    alloc("fold", H)                       # w_out @ w_e1  (padded H2 -> H cols)
    alloc("etail", 3)                      # [b_fold ; w_e2^T ; b_e2] (padded)
    return offs, cursor


_OFFS, _SLAB_ROWS = _build_layout()


# ---------------------------------------------------------------------------
# constant edge-selection machinery, built ONCE with numpy (N-dependent only)
# ---------------------------------------------------------------------------
_EIDX = np.arange(E)
_SEL_I = np.equal.outer(_EIDX // N, np.arange(N)).astype(np.float32)   # (E, N)
_SEL_J = np.equal.outer(_EIDX % N, np.arange(N)).astype(np.float32)    # (E, N)
_SEG = np.equal.outer(np.arange(N), _EIDX // N).astype(np.float32)     # (N, E)


def _silu(z):
    # silu(z) = z * sigmoid(z); sigmoid via tanh keeps the transcendental on the
    # EUP slot and avoids exp overflow / a full-precision VPU divide.
    return z * (0.5 * jnp.tanh(0.5 * z) + 0.5)


# ---------------------------------------------------------------------------
# kernel: 4 inputs (node slab, fused edge matrix, adjacency-folded segment
# matrix, packed parameter slab) -> per-graph energies
# ---------------------------------------------------------------------------
def sake_kernel(node_ref, edge_ref, sega_ref, w_ref, out_ref):
    f32 = jnp.float32
    node = node_ref[...]                              # (N, F_IN+1+B)
    edge_cat = edge_ref[...]                          # (E, PADK)
    seg_adj = sega_ref[...]                           # (N, E)

    h_aug = node[:, :F_IN + 1]                        # [h | 1]
    oh = node[:, F_IN + 1:F_IN + 1 + B]               # one-hot batch (N, B)

    # ---- embedding_in (bias fused through the ones column) -------------------
    h = jnp.dot(h_aug, w_ref[_OFFS["in"]:_OFFS["in"] + F_IN + 1, :],
                preferred_element_type=f32)           # (N, H)

    # ---- sake_conv interaction layers ----------------------------------------
    for l in range(L):
        def o(name, l=l):
            return _OFFS[f"{name}{l}"]

        a_i = jnp.dot(h, w_ref[o("hi"):o("hi") + H, :],
                      preferred_element_type=f32)     # (N, H)
        a_j = jnp.dot(h, w_ref[o("hj"):o("hj") + H, :],
                      preferred_element_type=f32)     # (N, H)

        # fused edge gather + distance term + bias:
        #   z1 = [sel_i | sel_j | d2 | 1 | 0] @ [a_i ; a_j ; we_d ; be1 ; 0]
        db8 = w_ref[o("db"):o("db") + 8, :]           # [we_d; be1; 0x6] aligned chunk
        rhs = jnp.concatenate([a_i, a_j, db8], axis=0)               # (PADK, H)
        m1 = _silu(jnp.dot(edge_cat, rhs, preferred_element_type=f32))   # (E, H)
        m2 = _silu(jnp.dot(m1, w_ref[o("e2"):o("e2") + H, :],
                           preferred_element_type=f32)
                   + w_ref[o("be2"):o("be2") + 1, :])                # (E, H)

        # masked neighbour sum: adjacency already folded into seg_adj
        m = jnp.dot(seg_adj, m2, preferred_element_type=f32)         # (N, H)

        u = _silu(jnp.dot(h, w_ref[o("nh"):o("nh") + H, :],
                          preferred_element_type=f32)
                  + jnp.dot(m, w_ref[o("nm"):o("nm") + H, :],
                            preferred_element_type=f32)
                  + w_ref[o("bn1"):o("bn1") + 1, :])
        h = (h
             + jnp.dot(u, w_ref[o("n2"):o("n2") + H, :],
                       preferred_element_type=f32)
             + w_ref[o("bn2"):o("bn2") + 1, :])

    # ---- (embedding_out folded into) energy network ---------------------------
    etail = w_ref[_OFFS["etail"]:_OFFS["etail"] + 8, :]   # (8, H); rows 3..7 zero
    b_fold = etail[0:1, :]
    w_e2_row = etail[1:2, :]
    b_e2 = etail[2:3, 0:1]

    eh = _silu(jnp.dot(h, w_ref[_OFFS["fold"]:_OFFS["fold"] + H, :],
                       preferred_element_type=f32) + b_fold)          # (N, H)
    e = jnp.sum(eh * w_e2_row, axis=-1, keepdims=True) + b_e2         # (N, 1)

    # ---- scatter(e, batch, reduce='add'): out[b] = sum_{i in graph b} e_i -----
    out_ref[...] = jax.lax.dot_general(
        oh, e, (((0,), (0,)), ((), ())), preferred_element_type=f32)  # (B, 1)


# ---------------------------------------------------------------------------
# parameters
# ---------------------------------------------------------------------------
def make_params(key):
    ks = jax.random.split(key, 19)
    s = 0.1

    def init(k, shape):
        return (s * jax.random.normal(k, shape)).astype(jnp.float32)

    return (
        init(ks[0], (F_IN, H)), init(ks[1], (1, H)),             # embedding_in
        init(ks[2], (L, H, H)), init(ks[3], (L, H, H)),          # edge MLP W on h_i, h_j
        init(ks[4], (L, 1, H)), init(ks[5], (L, 1, H)),          # edge MLP w on d2, bias
        init(ks[6], (L, H, H)), init(ks[7], (L, 1, H)),          # edge MLP layer 2
        init(ks[8], (L, H, H)), init(ks[9], (L, H, H)),          # node MLP W on h, m
        init(ks[10], (L, 1, H)),                                 # node MLP bias 1
        init(ks[11], (L, H, H)), init(ks[12], (L, 1, H)),        # node MLP layer 2
        init(ks[13], (H, H)), init(ks[14], (1, H)),              # embedding_out
        init(ks[15], (H, H2)), init(ks[16], (1, H2)),            # energy layer 1
        init(ks[17], (H2, 1)), init(ks[18], (1, 1)),             # energy layer 2
    )


def pack_params(params):
    """Pack all parameters into one (rows, H) f32 slab; fold embedding_out into
    energy layer 1 (exact, full-f32 numpy).  Call ONCE, outside jit."""
    (w_in, b_in, we_hi, we_hj, we_d, be1, we2, be2,
     wn_h, wn_m, bn1, wn2, bn2, w_out, b_out, w_e1, b_e1, w_e2, b_e2) = [
        np.asarray(p, dtype=np.float32) for p in params]

    slab = np.zeros((_SLAB_ROWS, H), np.float32)

    def put(name, mat):
        mat = np.asarray(mat, np.float32)
        slab[_OFFS[name]:_OFFS[name] + mat.shape[0], :mat.shape[1]] = mat

    put("in", np.concatenate([w_in, b_in], axis=0))              # (F_IN+1, H)
    for l in range(L):
        put(f"hi{l}", we_hi[l])
        put(f"hj{l}", we_hj[l])
        put(f"db{l}", np.concatenate([we_d[l], be1[l]], axis=0))  # (2, H)
        put(f"e2{l}", we2[l])
        put(f"be2{l}", be2[l])
        put(f"nh{l}", wn_h[l])
        put(f"nm{l}", wn_m[l])
        put(f"bn1{l}", bn1[l])
        put(f"n2{l}", wn2[l])
        put(f"bn2{l}", bn2[l])

    # fold embedding_out into energy layer 1: algebraically exact
    w_fold = w_out @ w_e1                                        # (H, H2)
    b_fold = b_out @ w_e1 + b_e1                                 # (1, H2)
    put("fold", w_fold)                                          # zero-padded cols
    etail = np.zeros((3, H), np.float32)
    etail[0, :H2] = b_fold[0]
    etail[1, :H2] = w_e2[:, 0]
    etail[2, 0] = b_e2[0, 0]
    put("etail", etail)
    return jnp.asarray(slab)


# ---------------------------------------------------------------------------
# forward wrapper: exact-f32 radius-graph geometry + packed inputs, one pallas_call
# ---------------------------------------------------------------------------
def sake_forward(h, x, batch, slab):
    f32 = jnp.float32
    oh = jax.nn.one_hot(batch, B, dtype=f32)                     # (N, B)

    # radius-graph geometry in exact f32 (tiny XLA work; avoids bf16 mask flips)
    diff = x[:, None, :] - x[None, :, :]
    d2 = jnp.sum(diff * diff, axis=-1)                           # (N, N)
    same = (batch[:, None] == batch[None, :]).astype(f32)
    adj = (same * (1.0 - jnp.eye(N, dtype=f32))
           * (d2 <= CUTOFF * CUTOFF).astype(f32))                # (N, N)
    # TODO(synk): PyTorch radius_graph also caps neighbours at max_num_neighbors;
    # the module uses 10000 (> N) so the dense mask is exactly equivalent.

    edge_cat = jnp.concatenate(
        [jnp.asarray(_SEL_I), jnp.asarray(_SEL_J),
         d2.reshape(E, 1), jnp.ones((E, 1), f32),
         jnp.zeros((E, PADK - 2 * N - 2), f32)], axis=1)         # (E, PADK)
    seg_adj = jnp.asarray(_SEG) * adj.reshape(1, E)              # (N, E)
    node_cat = jnp.concatenate(
        [h.astype(f32), jnp.ones((N, 1), f32), oh], axis=1)      # (N, NODE_W)

    out = pl.pallas_call(
        sake_kernel,
        out_shape=jax.ShapeDtypeStruct((B, 1), jnp.float32),
        in_specs=[pl.BlockSpec(memory_space=pltpu.MemorySpace.VMEM)] * 4,
        out_specs=pl.BlockSpec(memory_space=pltpu.MemorySpace.VMEM),
    )(node_cat, edge_cat, seg_adj, slab)
    return jnp.squeeze(out)                                      # matches out.squeeze()


# ---------------------------------------------------------------------------
# pure-JAX reference with identical semantics (dense radius graph, raw params)
# ---------------------------------------------------------------------------
def sake_reference(h, x, batch, params):
    (w_in, b_in, we_hi, we_hj, we_d, be1, we2, be2,
     wn_h, wn_m, bn1, wn2, bn2, w_out, b_out, w_e1, b_e1, w_e2, b_e2) = params
    oh = jax.nn.one_hot(batch, B, dtype=jnp.float32)
    d2 = jnp.sum((x[:, None, :] - x[None, :, :]) ** 2, axis=-1)            # (N, N)
    adj = ((oh @ oh.T)
           * (1.0 - jnp.eye(N, dtype=jnp.float32))
           * (d2 <= CUTOFF * CUTOFF).astype(jnp.float32))
    h = h @ w_in + b_in
    for l in range(L):
        a_i = h @ we_hi[l]
        a_j = h @ we_hj[l]
        m1 = jax.nn.silu(a_i[:, None, :] + a_j[None, :, :]
                         + d2[:, :, None] * we_d[l][None, :, :]
                         + be1[l][None, :, :])
        m2 = jax.nn.silu(m1 @ we2[l] + be2[l][None, :, :])
        m = jnp.sum(adj[:, :, None] * m2, axis=1)
        u = jax.nn.silu(h @ wn_h[l] + m @ wn_m[l] + bn1[l])
        h = h + u @ wn2[l] + bn2[l]
    h = h @ w_out + b_out
    e = jax.nn.silu(h @ w_e1 + b_e1) @ w_e2 + b_e2
    return jnp.squeeze(oh.T @ e)


if __name__ == "__main__":
    key = jax.random.PRNGKey(0)
    k_h, k_x, k_p = jax.random.split(key, 3)

    h = jax.random.normal(k_h, (N, F_IN), dtype=jnp.float32)
    x = 1.5 * jax.random.uniform(k_x, (N, 3), dtype=jnp.float32)
    batch = jnp.repeat(jnp.arange(B, dtype=jnp.int32), N // B)   # (N,)
    params = make_params(k_p)
    slab = pack_params(params)                                   # once, outside jit

    fwd = jax.jit(sake_forward)
    out = jax.block_until_ready(fwd(h, x, batch, slab))

    ref = sake_reference(h, x, batch, params)
    assert out.shape == (B,)
    assert bool(jnp.all(jnp.isfinite(out)))
    assert bool(jnp.allclose(out, ref, rtol=1e-2, atol=1e-2))
    print("KERNEL_OK")
</pallas_src>

<mosaic_0001>
module attributes {stable_mosaic.version = 11 : i64} {
  func.func @sake_kernel(%arg0: memref<16x7xf32, #tpu.memory_space<vmem>>, %arg1: memref<256x40xf32, #tpu.memory_space<vmem>>, %arg2: memref<16x256xf32, #tpu.memory_space<vmem>>, %arg3: memref<496x32xf32, #tpu.memory_space<vmem>>, %arg4: memref<2x1xf32, #tpu.memory_space<vmem>>) attributes {dimension_semantics = [], scalar_prefetch = 0 : i64, scratch_operands = 0 : i64, tpu.core_type = #tpu.core_type<tc>} {
    %c0 = arith.constant 0 : index
    %c0_0 = arith.constant 0 : index
    %0 = vector.load %arg0[%c0, %c0_0] : memref<16x7xf32, #tpu.memory_space<vmem>>, vector<16x7xf32>
    %c0_1 = arith.constant 0 : index
    %c0_2 = arith.constant 0 : index
    %1 = vector.load %arg1[%c0_1, %c0_2] : memref<256x40xf32, #tpu.memory_space<vmem>>, vector<256x40xf32>
    %c0_3 = arith.constant 0 : index
    %c0_4 = arith.constant 0 : index
    %2 = vector.load %arg2[%c0_3, %c0_4] : memref<16x256xf32, #tpu.memory_space<vmem>>, vector<16x256xf32>
    %3 = vector.extract_strided_slice %0 {offsets = [0, 0], sizes = [16, 5], strides = [1, 1]} : vector<16x7xf32> to vector<16x5xf32>
    %4 = vector.extract_strided_slice %0 {offsets = [0, 5], sizes = [16, 2], strides = [1, 1]} : vector<16x7xf32> to vector<16x2xf32>
    %c0_5 = arith.constant 0 : index
    %c0_6 = arith.constant 0 : index
    %5 = vector.load %arg3[%c0_5, %c0_6] : memref<496x32xf32, #tpu.memory_space<vmem>>, vector<5x32xf32>
    %cst = arith.constant dense<0.000000e+00> : vector<16x32xf32>
    %6 = tpu.matmul %3, %5, %cst {dimension_numbers = #tpu.dot_dimension_numbers<[1], [0], [0], [1], [0, 0, 1, 1], [], []>} : vector<16x5xf32>, vector<5x32xf32>, vector<16x32xf32> -> vector<16x32xf32>
    %c8 = arith.constant 8 : index
    %c0_7 = arith.constant 0 : index
    %7 = vector.load %arg3[%c8, %c0_7] : memref<496x32xf32, #tpu.memory_space<vmem>>, vector<32x32xf32>
    %cst_8 = arith.constant dense<0.000000e+00> : vector<16x32xf32>
    %8 = tpu.matmul %6, %7, %cst_8 {dimension_numbers = #tpu.dot_dimension_numbers<[1], [0], [0], [1], [0, 0, 1, 1], [], []>} : vector<16x32xf32>, vector<32x32xf32>, vector<16x32xf32> -> vector<16x32xf32>
    %c40 = arith.constant 40 : index
    %c0_9 = arith.constant 0 : index
    %9 = vector.load %arg3[%c40, %c0_9] : memref<496x32xf32, #tpu.memory_space<vmem>>, vector<32x32xf32>
    %cst_10 = arith.constant dense<0.000000e+00> : vector<16x32xf32>
    %10 = tpu.matmul %6, %9, %cst_10 {dimension_numbers = #tpu.dot_dimension_numbers<[1], [0], [0], [1], [0, 0, 1, 1], [], []>} : vector<16x32xf32>, vector<32x32xf32>, vector<16x32xf32> -> vector<16x32xf32>
    %c72 = arith.constant 72 : index
    %c0_11 = arith.constant 0 : index
    %11 = vector.load %arg3[%c72, %c0_11] : memref<496x32xf32, #tpu.memory_space<vmem>>, vector<8x32xf32>
    %12 = tpu.concatenate %8, %10, %11 in 0 : vector<16x32xf32>, vector<16x32xf32>, vector<8x32xf32> -> vector<40x32xf32>
    %cst_12 = arith.constant dense<0.000000e+00> : vector<256x32xf32>
    %13 = tpu.matmul %1, %12, %cst_12 {dimension_numbers = #tpu.dot_dimension_numbers<[1], [0], [0], [1], [0, 0, 1, 1], [], []>} : vector<256x40xf32>, vector<40x32xf32>, vector<256x32xf32> -> vector<256x32xf32>
    %cst_13 = arith.constant 5.000000e-01 : f32
    %14 = vector.broadcast %cst_13 : f32 to vector<256x32xf32>
    %15 = arith.mulf %14, %13 : vector<256x32xf32>
    %16 = math.tanh %15 : vector<256x32xf32>
    %cst_14 = arith.constant 5.000000e-01 : f32
    %17 = vector.broadcast %cst_14 : f32 to vector<256x32xf32>
    %18 = arith.mulf %17, %16 : vector<256x32xf32>
    %cst_15 = arith.constant 5.000000e-01 : f32
    %19 = vector.broadcast %cst_15 : f32 to vector<256x32xf32>
    %20 = arith.addf %18, %19 : vector<256x32xf32>
    %21 = arith.mulf %13, %20 : vector<256x32xf32>
    %c80 = arith.constant 80 : index
    %c0_16 = arith.constant 0 : index
    %22 = vector.load %arg3[%c80, %c0_16] : memref<496x32xf32, #tpu.memory_space<vmem>>, vector<32x32xf32>
    %cst_17 = arith.constant dense<0.000000e+00> : vector<256x32xf32>
    %23 = tpu.matmul %21, %22, %cst_17 {dimension_numbers = #tpu.dot_dimension_numbers<[1], [0], [0], [1], [0, 0, 1, 1], [], []>} : vector<256x32xf32>, vector<32x32xf32>, vector<256x32xf32> -> vector<256x32xf32>
    %c112 = arith.constant 112 : index
    %c0_18 = arith.constant 0 : index
    %24 = vector.load %arg3[%c112, %c0_18] : memref<496x32xf32, #tpu.memory_space<vmem>>, vector<1x32xf32>
    %25 = vector.broadcast %24 : vector<1x32xf32> to vector<256x32xf32>
    %26 = arith.addf %23, %25 : vector<256x32xf32>
    %cst_19 = arith.constant 5.000000e-01 : f32
    %27 = vector.broadcast %cst_19 : f32 to vector<256x32xf32>
    %28 = arith.mulf %27, %26 : vector<256x32xf32>
    %29 = math.tanh %28 : vector<256x32xf32>
    %cst_20 = arith.constant 5.000000e-01 : f32
    %30 = vector.broadcast %cst_20 : f32 to vector<256x32xf32>
    %31 = arith.mulf %30, %29 : vector<256x32xf32>
    %cst_21 = arith.constant 5.000000e-01 : f32
    %32 = vector.broadcast %cst_21 : f32 to vector<256x32xf32>
    %33 = arith.addf %31, %32 : vector<256x32xf32>
    %34 = arith.mulf %26, %33 : vector<256x32xf32>
    %cst_22 = arith.constant dense<0.000000e+00> : vector<16x32xf32>
    %35 = tpu.matmul %2, %34, %cst_22 {dimension_numbers = #tpu.dot_dimension_numbers<[1], [0], [0], [1], [0, 0, 1, 1], [], []>} : vector<16x256xf32>, vector<256x32xf32>, vector<16x32xf32> -> vector<16x32xf32>
    %c120 = arith.constant 120 : index
    %c0_23 = arith.constant 0 : index
    %36 = vector.load %arg3[%c120, %c0_23] : memref<496x32xf32, #tpu.memory_space<vmem>>, vector<32x32xf32>
    %cst_24 = arith.constant dense<0.000000e+00> : vector<16x32xf32>
    %37 = tpu.matmul %6, %36, %cst_24 {dimension_numbers = #tpu.dot_dimension_numbers<[1], [0], [0], [1], [0, 0, 1, 1], [], []>} : vector<16x32xf32>, vector<32x32xf32>, vector<16x32xf32> -> vector<16x32xf32>
    %c152 = arith.constant 152 : index
    %c0_25 = arith.constant 0 : index
    %38 = vector.load %arg3[%c152, %c0_25] : memref<496x32xf32, #tpu.memory_space<vmem>>, vector<32x32xf32>
    %cst_26 = arith.constant dense<0.000000e+00> : vector<16x32xf32>
    %39 = tpu.matmul %35, %38, %cst_26 {dimension_numbers = #tpu.dot_dimension_numbers<[1], [0], [0], [1], [0, 0, 1, 1], [], []>} : vector<16x32xf32>, vector<32x32xf32>, vector<16x32xf32> -> vector<16x32xf32>
    %40 = arith.addf %37, %39 : vector<16x32xf32>
    %c184 = arith.constant 184 : index
    %c0_27 = arith.constant 0 : index
    %41 = vector.load %arg3[%c184, %c0_27] : memref<496x32xf32, #tpu.memory_space<vmem>>, vector<1x32xf32>
    %42 = vector.broadcast %41 : vector<1x32xf32> to vector<16x32xf32>
    %43 = arith.addf %40, %42 : vector<16x32xf32>
    %cst_28 = arith.constant 5.000000e-01 : f32
    %44 = vector.broadcast %cst_28 : f32 to vector<16x32xf32>
    %45 = arith.mulf %44, %43 : vector<16x32xf32>
    %46 = math.tanh %45 : vector<16x32xf32>
    %cst_29 = arith.constant 5.000000e-01 : f32
    %47 = vector.broadcast %cst_29 : f32 to vector<16x32xf32>
    %48 = arith.mulf %47, %46 : vector<16x32xf32>
    %cst_30 = arith.constant 5.000000e-01 : f32
    %49 = vector.broadcast %cst_30 : f32 to vector<16x32xf32>
    %50 = arith.addf %48, %49 : vector<16x32xf32>
    %51 = arith.mulf %43, %50 : vector<16x32xf32>
    %c192 = arith.constant 192 : index
    %c0_31 = arith.constant 0 : index
    %52 = vector.load %arg3[%c192, %c0_31] : memref<496x32xf32, #tpu.memory_space<vmem>>, vector<32x32xf32>
    %cst_32 = arith.constant dense<0.000000e+00> : vector<16x32xf32>
    %53 = tpu.matmul %51, %52, %cst_32 {dimension_numbers = #tpu.dot_dimension_numbers<[1], [0], [0], [1], [0, 0, 1, 1], [], []>} : vector<16x32xf32>, vector<32x32xf32>, vector<16x32xf32> -> vector<16x32xf32>
    %54 = arith.addf %6, %53 : vector<16x32xf32>
    %c224 = arith.constant 224 : index
    %c0_33 = arith.constant 0 : index
    %55 = vector.load %arg3[%c224, %c0_33] : memref<496x32xf32, #tpu.memory_space<vmem>>, vector<1x32xf32>
    %56 = vector.broadcast %55 : vector<1x32xf32> to vector<16x32xf32>
    %57 = arith.addf %54, %56 : vector<16x32xf32>
    %c232 = arith.constant 232 : index
    %c0_34 = arith.constant 0 : index
    %58 = vector.load %arg3[%c232, %c0_34] : memref<496x32xf32, #tpu.memory_space<vmem>>, vector<32x32xf32>
    %cst_35 = arith.constant dense<0.000000e+00> : vector<16x32xf32>
    %59 = tpu.matmul %57, %58, %cst_35 {dimension_numbers = #tpu.dot_dimension_numbers<[1], [0], [0], [1], [0, 0, 1, 1], [], []>} : vector<16x32xf32>, vector<32x32xf32>, vector<16x32xf32> -> vector<16x32xf32>
    %c264 = arith.constant 264 : index
    %c0_36 = arith.constant 0 : index
    %60 = vector.load %arg3[%c264, %c0_36] : memref<496x32xf32, #tpu.memory_space<vmem>>, vector<32x32xf32>
    %cst_37 = arith.constant dense<0.000000e+00> : vector<16x32xf32>
    %61 = tpu.matmul %57, %60, %cst_37 {dimension_numbers = #tpu.dot_dimension_numbers<[1], [0], [0], [1], [0, 0, 1, 1], [], []>} : vector<16x32xf32>, vector<32x32xf32>, vector<16x32xf32> -> vector<16x32xf32>
    %c296 = arith.constant 296 : index
    %c0_38 = arith.constant 0 : index
    %62 = vector.load %arg3[%c296, %c0_38] : memref<496x32xf32, #tpu.memory_space<vmem>>, vector<8x32xf32>
    %63 = tpu.concatenate %59, %61, %62 in 0 : vector<16x32xf32>, vector<16x32xf32>, vector<8x32xf32> -> vector<40x32xf32>
    %cst_39 = arith.constant dense<0.000000e+00> : vector<256x32xf32>
    %64 = tpu.matmul %1, %63, %cst_39 {dimension_numbers = #tpu.dot_dimension_numbers<[1], [0], [0], [1], [0, 0, 1, 1], [], []>} : vector<256x40xf32>, vector<40x32xf32>, vector<256x32xf32> -> vector<256x32xf32>
    %cst_40 = arith.constant 5.000000e-01 : f32
    %65 = vector.broadcast %cst_40 : f32 to vector<256x32xf32>
    %66 = arith.mulf %65, %64 : vector<256x32xf32>
    %67 = math.tanh %66 : vector<256x32xf32>
    %cst_41 = arith.constant 5.000000e-01 : f32
    %68 = vector.broadcast %cst_41 : f32 to vector<256x32xf32>
    %69 = arith.mulf %68, %67 : vector<256x32xf32>
    %cst_42 = arith.constant 5.000000e-01 : f32
    %70 = vector.broadcast %cst_42 : f32 to vector<256x32xf32>
    %71 = arith.addf %69, %70 : vector<256x32xf32>
    %72 = arith.mulf %64, %71 : vector<256x32xf32>
    %c304 = arith.constant 304 : index
    %c0_43 = arith.constant 0 : index
    %73 = vector.load %arg3[%c304, %c0_43] : memref<496x32xf32, #tpu.memory_space<vmem>>, vector<32x32xf32>
    %cst_44 = arith.constant dense<0.000000e+00> : vector<256x32xf32>
    %74 = tpu.matmul %72, %73, %cst_44 {dimension_numbers = #tpu.dot_dimension_numbers<[1], [0], [0], [1], [0, 0, 1, 1], [], []>} : vector<256x32xf32>, vector<32x32xf32>, vector<256x32xf32> -> vector<256x32xf32>
    %c336 = arith.constant 336 : index
    %c0_45 = arith.constant 0 : index
    %75 = vector.load %arg3[%c336, %c0_45] : memref<496x32xf32, #tpu.memory_space<vmem>>, vector<1x32xf32>
    %76 = vector.broadcast %75 : vector<1x32xf32> to vector<256x32xf32>
    %77 = arith.addf %74, %76 : vector<256x32xf32>
    %cst_46 = arith.constant 5.000000e-01 : f32
    %78 = vector.broadcast %cst_46 : f32 to vector<256x32xf32>
    %79 = arith.mulf %78, %77 : vector<256x32xf32>
    %80 = math.tanh %79 : vector<256x32xf32>
    %cst_47 = arith.constant 5.000000e-01 : f32
    %81 = vector.broadcast %cst_47 : f32 to vector<256x32xf32>
    %82 = arith.mulf %81, %80 : vector<256x32xf32>
    %cst_48 = arith.constant 5.000000e-01 : f32
    %83 = vector.broadcast %cst_48 : f32 to vector<256x32xf32>
    %84 = arith.addf %82, %83 : vector<256x32xf32>
    %85 = arith.mulf %77, %84 : vector<256x32xf32>
    %cst_49 = arith.constant dense<0.000000e+00> : vector<16x32xf32>
    %86 = tpu.matmul %2, %85, %cst_49 {dimension_numbers = #tpu.dot_dimension_numbers<[1], [0], [0], [1], [0, 0, 1, 1], [], []>} : vector<16x256xf32>, vector<256x32xf32>, vector<16x32xf32> -> vector<16x32xf32>
    %c344 = arith.constant 344 : index
    %c0_50 = arith.constant 0 : index
    %87 = vector.load %arg3[%c344, %c0_50] : memref<496x32xf32, #tpu.memory_space<vmem>>, vector<32x32xf32>
    %cst_51 = arith.constant dense<0.000000e+00> : vector<16x32xf32>
    %88 = tpu.matmul %57, %87, %cst_51 {dimension_numbers = #tpu.dot_dimension_numbers<[1], [0], [0], [1], [0, 0, 1, 1], [], []>} : vector<16x32xf32>, vector<32x32xf32>, vector<16x32xf32> -> vector<16x32xf32>
    %c376 = arith.constant 376 : index
    %c0_52 = arith.constant 0 : index
    %89 = vector.load %arg3[%c376, %c0_52] : memref<496x32xf32, #tpu.memory_space<vmem>>, vector<32x32xf32>
    %cst_53 = arith.constant dense<0.000000e+00> : vector<16x32xf32>
    %90 = tpu.matmul %86, %89, %cst_53 {dimension_numbers = #tpu.dot_dimension_numbers<[1], [0], [0], [1], [0, 0, 1, 1], [], []>} : vector<16x32xf32>, vector<32x32xf32>, vector<16x32xf32> -> vector<16x32xf32>
    %91 = arith.addf %88, %90 : vector<16x32xf32>
    %c408 = arith.constant 408 : index
    %c0_54 = arith.constant 0 : index
    %92 = vector.load %arg3[%c408, %c0_54] : memref<496x32xf32, #tpu.memory_space<vmem>>, vector<1x32xf32>
    %93 = vector.broadcast %92 : vector<1x32xf32> to vector<16x32xf32>
    %94 = arith.addf %91, %93 : vector<16x32xf32>
    %cst_55 = arith.constant 5.000000e-01 : f32
    %95 = vector.broadcast %cst_55 : f32 to vector<16x32xf32>
    %96 = arith.mulf %95, %94 : vector<16x32xf32>
    %97 = math.tanh %96 : vector<16x32xf32>
    %cst_56 = arith.constant 5.000000e-01 : f32
    %98 = vector.broadcast %cst_56 : f32 to vector<16x32xf32>
    %99 = arith.mulf %98, %97 : vector<16x32xf32>
    %cst_57 = arith.constant 5.000000e-01 : f32
    %100 = vector.broadcast %cst_57 : f32 to vector<16x32xf32>
    %101 = arith.addf %99, %100 : vector<16x32xf32>
    %102 = arith.mulf %94, %101 : vector<16x32xf32>
    %c416 = arith.constant 416 : index
    %c0_58 = arith.constant 0 : index
    %103 = vector.load %arg3[%c416, %c0_58] : memref<496x32xf32, #tpu.memory_space<vmem>>, vector<32x32xf32>
    %cst_59 = arith.constant dense<0.000000e+00> : vector<16x32xf32>
    %104 = tpu.matmul %102, %103, %cst_59 {dimension_numbers = #tpu.dot_dimension_numbers<[1], [0], [0], [1], [0, 0, 1, 1], [], []>} : vector<16x32xf32>, vector<32x32xf32>, vector<16x32xf32> -> vector<16x32xf32>
    %105 = arith.addf %57, %104 : vector<16x32xf32>
    %c448 = arith.constant 448 : index
    %c0_60 = arith.constant 0 : index
    %106 = vector.load %arg3[%c448, %c0_60] : memref<496x32xf32, #tpu.memory_space<vmem>>, vector<1x32xf32>
    %107 = vector.broadcast %106 : vector<1x32xf32> to vector<16x32xf32>
    %108 = arith.addf %105, %107 : vector<16x32xf32>
    %c488 = arith.constant 488 : index
    %c0_61 = arith.constant 0 : index
    %109 = vector.load %arg3[%c488, %c0_61] : memref<496x32xf32, #tpu.memory_space<vmem>>, vector<8x32xf32>
    %110 = vector.extract_strided_slice %109 {offsets = [0, 0], sizes = [1, 32], strides = [1, 1]} : vector<8x32xf32> to vector<1x32xf32>
    %111 = vector.extract_strided_slice %109 {offsets = [1, 0], sizes = [1, 32], strides = [1, 1]} : vector<8x32xf32> to vector<1x32xf32>
    %112 = vector.extract_strided_slice %109 {offsets = [2, 0], sizes = [1, 1], strides = [1, 1]} : vector<8x32xf32> to vector<1x1xf32>
    %c456 = arith.constant 456 : index
    %c0_62 = arith.constant 0 : index
    %113 = vector.load %arg3[%c456, %c0_62] : memref<496x32xf32, #tpu.memory_space<vmem>>, vector<32x32xf32>
    %cst_63 = arith.constant dense<0.000000e+00> : vector<16x32xf32>
    %114 = tpu.matmul %108, %113, %cst_63 {dimension_numbers = #tpu.dot_dimension_numbers<[1], [0], [0], [1], [0, 0, 1, 1], [], []>} : vector<16x32xf32>, vector<32x32xf32>, vector<16x32xf32> -> vector<16x32xf32>
    %115 = vector.broadcast %110 : vector<1x32xf32> to vector<16x32xf32>
    %116 = arith.addf %114, %115 : vector<16x32xf32>
    %cst_64 = arith.constant 5.000000e-01 : f32
    %117 = vector.broadcast %cst_64 : f32 to vector<16x32xf32>
    %118 = arith.mulf %117, %116 : vector<16x32xf32>
    %119 = math.tanh %118 : vector<16x32xf32>
    %cst_65 = arith.constant 5.000000e-01 : f32
    %120 = vector.broadcast %cst_65 : f32 to vector<16x32xf32>
    %121 = arith.mulf %120, %119 : vector<16x32xf32>
    %cst_66 = arith.constant 5.000000e-01 : f32
    %122 = vector.broadcast %cst_66 : f32 to vector<16x32xf32>
    %123 = arith.addf %121, %122 : vector<16x32xf32>
    %124 = arith.mulf %116, %123 : vector<16x32xf32>
    %125 = vector.broadcast %111 : vector<1x32xf32> to vector<16x32xf32>
    %126 = arith.mulf %124, %125 : vector<16x32xf32>
    %cst_67 = arith.constant dense<0.000000e+00> : vector<16xf32>
    %127 = vector.multi_reduction <add>, %126, %cst_67 [1] : vector<16x32xf32> to vector<16xf32>
    %128 = vector.shape_cast %127 : vector<16xf32> to vector<16x1xf32>
    %129 = vector.broadcast %112 : vector<1x1xf32> to vector<16x1xf32>
    %130 = arith.addf %128, %129 : vector<16x1xf32>
    %cst_68 = arith.constant dense<0.000000e+00> : vector<2x1xf32>
    %131 = tpu.matmul %4, %130, %cst_68 {dimension_numbers = #tpu.dot_dimension_numbers<[0], [0], [1], [1], [0, 1, 1, 1], [], []>} : vector<16x2xf32>, vector<16x1xf32>, vector<2x1xf32> -> vector<2x1xf32>
    %c0_69 = arith.constant 0 : index
    %c0_70 = arith.constant 0 : index
    %132 = vector.load %arg4[%c0_69, %c0_70] : memref<2x1xf32, #tpu.memory_space<vmem>>, vector<2x1xf32>
    tpu.vector_store %arg4[%c0_69, %c0_70], %131 {strides = array<i32>} : memref<2x1xf32, #tpu.memory_space<vmem>>, vector<2x1xf32>,
    return
  }
}

</mosaic_0001>

<llo_original>
// kernel: sake_forward.1
$region0: #{sake_forward.1}
  #allocation0 [shape = 'u32[]', space=smem, size = 0x4, offset = 0x4, fixed_abs, tag = 'smem constant byte address 0x4 - core index']
  #allocation1 [shape = 'u32[144,128]{1,0:T(1,128)}', space=vmem, size = 0x12000, scoped, tag = 'internal scratch']
  %s0 = inlined_call_operand.vmem [shape: f32[16,7], index: 0, kind: input, shape index: {}]
  %s1 = inlined_call_operand.vmem [shape: f32[256,40], index: 1, kind: input, shape index: {}]
  %s2 = inlined_call_operand.vmem [shape: f32[16,256], index: 2, kind: input, shape index: {}]
  %s3 = inlined_call_operand.vmem [shape: f32[496,32], index: 3, kind: input, shape index: {}]
  %s4 = inlined_call_operand.vmem [shape: f32[2,1], index: 4, kind: output, shape index: {}]
  %s5 = sld [smem:[#allocation0]]
  $region26: #{sake_forward.1} parent=0
    _
  %s7 = ssub.s32 1, %s5
  %s8 = scalar_select 0, %s7, %s5
  // Predicated region
  $region2: #{sake_forward.1} parent=0 // pred_check
    _
  $region3: #{sake_forward.1} parent=0 // pred_check_branch
    %10 = sbr.rel (0) target = $region5
  $region4: #{sake_forward.1} parent=0 // pred_region
    _
  $region5: #{sake_forward.1} parent=0 // pred_fallthru
    _
  // Predicated region
  $region6: #{sake_forward.1} parent=0 // pred_check
    _
  $region7: #{sake_forward.1} parent=0 // pred_check_branch
    %12 = sbr.rel (0) target = $region9
  $region8: #{sake_forward.1} parent=0 // pred_region
    _
  $region9: #{sake_forward.1} parent=0 // pred_fallthru
    _
  // Predicated region
  $region10: #{sake_forward.1} parent=0 // pred_check
    _
  $region11: #{sake_forward.1} parent=0 // pred_check_branch
    %14 = sbr.rel (0) target = $region13
  $region12: #{sake_forward.1} parent=0 // pred_region
    _
  $region13: #{sake_forward.1} parent=0 // pred_fallthru
    _
  // Predicated region
  $region14: #{sake_forward.1} parent=0 // pred_check
    _
  $region15: #{sake_forward.1} parent=0 // pred_check_branch
    %16 = sbr.rel (0) target = $region17
  $region16: #{sake_forward.1} parent=0 // pred_region
    _
  $region17: #{sake_forward.1} parent=0 // pred_fallthru
    _
  %v17 = vld [vmem:[%s0] sm:$0xff]
  %v18 = vld [vmem:[%s0 + $0x8] sm:$0xff]
  %v19 = vld [vmem:[%s1] sm:$0xff]
  %v20 = vld [vmem:[%s1 + $0x8] sm:$0xff]
  %v21 = vld [vmem:[%s1 + $0x10] sm:$0xff]
  %v22 = vld [vmem:[%s1 + $0x18] sm:$0xff]
  %v23 = vld [vmem:[%s1 + $0x20] sm:$0xff]
  %v24 = vld [vmem:[%s1 + $0x28] sm:$0xff]
  %v25 = vld [vmem:[%s1 + $0x30] sm:$0xff]
  %v26 = vld [vmem:[%s1 + $0x38] sm:$0xff]
  %v27 = vld [vmem:[%s1 + $0x40] sm:$0xff]
  %v28 = vld [vmem:[%s1 + $0x48] sm:$0xff]
  %v29 = vld [vmem:[%s1 + $0x50] sm:$0xff]
  %v30 = vld [vmem:[%s1 + $0x58] sm:$0xff]
  %v31 = vld [vmem:[%s1 + $0x60] sm:$0xff]
  %v32 = vld [vmem:[%s1 + $0x68] sm:$0xff]
  %v33 = vld [vmem:[%s1 + $0x70] sm:$0xff]
  %v34 = vld [vmem:[%s1 + $0x78] sm:$0xff]
  %v35 = vld [vmem:[%s1 + $0x80] sm:$0xff]
  %v36 = vld [vmem:[%s1 + $0x88] sm:$0xff]
  %v37 = vld [vmem:[%s1 + $0x90] sm:$0xff]
  %v38 = vld [vmem:[%s1 + $0x98] sm:$0xff]
  %v39 = vld [vmem:[%s1 + $0xa0] sm:$0xff]
  %v40 = vld [vmem:[%s1 + $0xa8] sm:$0xff]
  %v41 = vld [vmem:[%s1 + $0xb0] sm:$0xff]
  %v42 = vld [vmem:[%s1 + $0xb8] sm:$0xff]
  %v43 = vld [vmem:[%s1 + $0xc0] sm:$0xff]
  %v44 = vld [vmem:[%s1 + $0xc8] sm:$0xff]
  %v45 = vld [vmem:[%s1 + $0xd0] sm:$0xff]
  %v46 = vld [vmem:[%s1 + $0xd8] sm:$0xff]
  %v47 = vld [vmem:[%s1 + $0xe0] sm:$0xff]
  %v48 = vld [vmem:[%s1 + $0xe8] sm:$0xff]
  %v49 = vld [vmem:[%s1 + $0xf0] sm:$0xff]
  %v50 = vld [vmem:[%s1 + $0xf8] sm:$0xff]
  %v51 = vld [vmem:[%s2] sm:$0xff]
  %v52 = vld [vmem:[%s2 + $0x8] sm:$0xff]
  %v53 = vld [vmem:[%s2 + $0x10] sm:$0xff]
  %v54 = vld [vmem:[%s2 + $0x18] sm:$0xff]
  %v55 = vld [vmem:[%s3] sm:$0x1f]
  %vm56 = vcmask 39936
  %v58 = vsel %vm56, %v17, 0
  %v61 = vsel %vm56, %v18, 0
  %vm63 = vcmask 1044480
  %v65 = vsel %vm63, %v55, 0
  %67 = vmatprep.subr.mxu0 0.0
  %68 = vmatpush1.msra.mxu0 0.0
  %69 = vmatprep.subr.mxu0 0.0
  %70 = vmatpush1.msra.mxu0 0.0
  %71 = vmatprep.subr.mxu0 0.0
  %72 = vmatpush1.msra.mxu0 0.0
  %73 = vmatprep.subr.mxu0 0.0
  %74 = vmatpush1.msra.mxu0 0.0
  %75 = vmatprep.subr.mxu0 0.0
  %76 = vmatpush1.msra.mxu0 0.0
  %77 = vmatprep.subr.mxu0 0.0
  %78 = vmatpush1.msra.mxu0 0.0
  %79 = vmatprep.subr.mxu0 0.0
  %80 = vmatpush1.msra.mxu0 0.0
  %81 = vmatprep.subr.mxu0 0.0
  %82 = vmatpush1.msra.mxu0 0.0
  %83 = vmatprep.subr.mxu0 0.0
  %84 = vmatpush1.msra.mxu0 0.0
  %85 = vmatprep.subr.mxu0 0.0
  %86 = vmatpush1.msra.mxu0 0.0
  %87 = vmatprep.subr.mxu0 0.0
  %88 = vmatpush1.msra.mxu0 0.0
  %89 = vmatprep.subr.mxu0 0.0
  %90 = vmatpush1.msra.mxu0 0.0
  %91 = vmatprep.subr.mxu0 0.0
  %92 = vmatpush1.msra.mxu0 0.0
  %93 = vmatprep.subr.mxu0 0.0
  %94 = vmatpush1.msra.mxu0 0.0
  %95 = vmatprep.subr.mxu0 0.0
  %96 = vmatpush1.msra.mxu0 0.0
  %97 = vmatprep.subr.mxu0 0.0
  %98 = vmatpush1.msra.mxu0 %v65
  %99 = vmatprep.subr.mxu0 0.0
  %100 = vmatpush2.msra.mxu0 0.0
  %101 = vmatprep.subr.mxu0 0.0
  %102 = vmatpush2.msra.mxu0 0.0
  %103 = vmatprep.subr.mxu0 0.0
  %104 = vmatpush2.msra.mxu0 0.0
  %105 = vmatprep.subr.mxu0 0.0
  %106 = vmatpush2.msra.mxu0 0.0
  %107 = vmatprep.subr.mxu0 0.0
  %108 = vmatpush2.msra.mxu0 0.0
  %109 = vmatprep.subr.mxu0 0.0
  %110 = vmatpush2.msra.mxu0 0.0
  %111 = vmatprep.subr.mxu0 0.0
  %112 = vmatpush2.msra.mxu0 0.0
  %113 = vmatprep.subr.mxu0 0.0
  %114 = vmatpush2.msra.mxu0 0.0
  %115 = vmatprep.subr.mxu0 0.0
  %116 = vmatpush2.msra.mxu0 0.0
  %117 = vmatprep.subr.mxu0 0.0
  %118 = vmatpush2.msra.mxu0 0.0
  %119 = vmatprep.subr.mxu0 0.0
  %120 = vmatpush2.msra.mxu0 0.0
  %121 = vmatprep.subr.mxu0 0.0
  %122 = vmatpush2.msra.mxu0 0.0
  %123 = vmatprep.subr.mxu0 0.0
  %124 = vmatpush2.msra.mxu0 0.0
  %125 = vmatprep.subr.mxu0 0.0
  %126 = vmatpush2.msra.mxu0 0.0
  %127 = vmatprep.subr.mxu0 0.0
  %128 = vmatpush2.msra.mxu0 0.0
  %129 = vmatprep.subr.mxu0 0.0
  %130 = vmatpush2.msra.mxu0 0.0
  %131 = vmatprep.mubr.f32.mxu0 0.0
  %132 = vmatmul.mubr.f32.gmra.mxu0 %v58
  %v133 = vpop.f32.mrf.mxu0
  %v134 = vadd.f32 0.0, %v133
  %v135 = vpop.f32.mrf.mxu0
  %136 = vmatprep.mubr.f32.mxu0 0.0
  %137 = vmatmul.mubr.f32.gmra.mxu0 %v61
  %v138 = vpop.f32.mrf.mxu0
  %v139 = vadd.f32 0.0, %v138
  %v140 = vpop.f32.mrf.mxu0
  %141 = vdwg.mxu0
  %v142 = vld [vmem:[%s3 + $0x8] sm:$0xff]
  %v143 = vld [vmem:[%s3 + $0x10] sm:$0xff]
  %v144 = vld [vmem:[%s3 + $0x18] sm:$0xff]
  %v145 = vld [vmem:[%s3 + $0x20] sm:$0xff]
  %vm146 = vcmask 261120
  %v148 = vsel %vm146, %v134, 0
  %v151 = vsel %vm146, %v139, 0
  %153 = vmatprep.subr.mxu0 0.0
  %154 = vmatpush1.msra.mxu0 0.0
  %155 = vmatprep.subr.mxu0 0.0
  %156 = vmatpush1.msra.mxu0 0.0
  %157 = vmatprep.subr.mxu0 0.0
  %158 = vmatpush1.msra.mxu0 0.0
  %159 = vmatprep.subr.mxu0 0.0
  %160 = vmatpush1.msra.mxu0 0.0
  %161 = vmatprep.subr.mxu0 0.0
  %162 = vmatpush1.msra.mxu0 0.0
  %163 = vmatprep.subr.mxu0 0.0
  %164 = vmatpush1.msra.mxu0 0.0
  %165 = vmatprep.subr.mxu0 0.0
  %166 = vmatpush1.msra.mxu0 0.0
  %167 = vmatprep.subr.mxu0 0.0
  %168 = vmatpush1.msra.mxu0 0.0
  %169 = vmatprep.subr.mxu0 0.0
  %170 = vmatpush1.msra.mxu0 0.0
  %171 = vmatprep.subr.mxu0 0.0
  %172 = vmatpush1.msra.mxu0 0.0
  %173 = vmatprep.subr.mxu0 0.0
  %174 = vmatpush1.msra.mxu0 0.0
  %175 = vmatprep.subr.mxu0 0.0
  %176 = vmatpush1.msra.mxu0 0.0
  %177 = vmatprep.subr.mxu0 0.0
  %178 = vmatpush1.msra.mxu0 %v145
  %179 = vmatprep.subr.mxu0 0.0
  %180 = vmatpush1.msra.mxu0 %v144
  %181 = vmatprep.subr.mxu0 0.0
  %182 = vmatpush1.msra.mxu0 %v143
  %183 = vmatprep.subr.mxu0 0.0
  %184 = vmatpush1.msra.mxu0 %v142
  %185 = vmatprep.subr.mxu0 0.0
  %186 = vmatpush2.msra.mxu0 0.0
  %187 = vmatprep.subr.mxu0 0.0
  %188 = vmatpush2.msra.mxu0 0.0
  %189 = vmatprep.subr.mxu0 0.0
  %190 = vmatpush2.msra.mxu0 0.0
  %191 = vmatprep.subr.mxu0 0.0
  %192 = vmatpush2.msra.mxu0 0.0
  %193 = vmatprep.subr.mxu0 0.0
  %194 = vmatpush2.msra.mxu0 0.0
  %195 = vmatprep.subr.mxu0 0.0
  %196 = vmatpush2.msra.mxu0 0.0
  %197 = vmatprep.subr.mxu0 0.0
  %198 = vmatpush2.msra.mxu0 0.0
  %199 = vmatprep.subr.mxu0 0.0
  %200 = vmatpush2.msra.mxu0 0.0
  %201 = vmatprep.subr.mxu0 0.0
  %202 = vmatpush2.msra.mxu0 0.0
  %203 = vmatprep.subr.mxu0 0.0
  %204 = vmatpush2.msra.mxu0 0.0
  %205 = vmatprep.subr.mxu0 0.0
  %206 = vmatpush2.msra.mxu0 0.0
  %207 = vmatprep.subr.mxu0 0.0
  %208 = vmatpush2.msra.mxu0 0.0
  %209 = vmatprep.subr.mxu0 0.0
  %210 = vmatpush2.msra.mxu0 0.0
  %211 = vmatprep.subr.mxu0 0.0
  %212 = vmatpush2.msra.mxu0 0.0
  %213 = vmatprep.subr.mxu0 0.0
  %214 = vmatpush2.msra.mxu0 0.0
  %215 = vmatprep.subr.mxu0 0.0
  %216 = vmatpush2.msra.mxu0 0.0
  %217 = vmatprep.mubr.f32.mxu0 0.0
  %218 = vmatmul.mubr.f32.gmra.mxu0 %v148
  %v219 = vpop.f32.mrf.mxu0
  %v220 = vadd.f32 0.0, %v219
  %v221 = vpop.f32.mrf.mxu0
  %222 = vmatprep.mubr.f32.mxu0 0.0
  %223 = vmatmul.mubr.f32.gmra.mxu0 %v151
  %v224 = vpop.f32.mrf.mxu0
  %v225 = vadd.f32 0.0, %v224
  %v226 = vpop.f32.mrf.mxu0
  %227 = vdwg.mxu0
  %v228 = vld [vmem:[%s3 + $0x28] sm:$0xff]
  %v229 = vld [vmem:[%s3 + $0x30] sm:$0xff]
  %v230 = vld [vmem:[%s3 + $0x38] sm:$0xff]
  %v231 = vld [vmem:[%s3 + $0x40] sm:$0xff]
  %232 = vmatprep.subr.mxu0 0.0
  %233 = vmatpush1.msra.mxu0 0.0
  %234 = vmatprep.subr.mxu0 0.0
  %235 = vmatpush1.msra.mxu0 0.0
  %236 = vmatprep.subr.mxu0 0.0
  %237 = vmatpush1.msra.mxu0 0.0
  %238 = vmatprep.subr.mxu0 0.0
  %239 = vmatpush1.msra.mxu0 0.0
  %240 = vmatprep.subr.mxu0 0.0
  %241 = vmatpush1.msra.mxu0 0.0
  %242 = vmatprep.subr.mxu0 0.0
  %243 = vmatpush1.msra.mxu0 0.0
  %244 = vmatprep.subr.mxu0 0.0
  %245 = vmatpush1.msra.mxu0 0.0
  %246 = vmatprep.subr.mxu0 0.0
  %247 = vmatpush1.msra.mxu0 0.0
  %248 = vmatprep.subr.mxu0 0.0
  %249 = vmatpush1.msra.mxu0 0.0
  %250 = vmatprep.subr.mxu0 0.0
  %251 = vmatpush1.msra.mxu0 0.0
  %252 = vmatprep.subr.mxu0 0.0
  %253 = vmatpush1.msra.mxu0 0.0
  %254 = vmatprep.subr.mxu0 0.0
  %255 = vmatpush1.msra.mxu0 0.0
  %256 = vmatprep.subr.mxu0 0.0
  %257 = vmatpush1.msra.mxu0 %v231
  %258 = vmatprep.subr.mxu0 0.0
  %259 = vmatpush1.msra.mxu0 %v230
  %260 = vmatprep.subr.mxu0 0.0
  %261 = vmatpush1.msra.mxu0 %v229
  %262 = vmatprep.subr.mxu0 0.0
  %263 = vmatpush1.msra.mxu0 %v228
  %264 = vmatprep.subr.mxu0 0.0
  %265 = vmatpush2.msra.mxu0 0.0
  %266 = vmatprep.subr.mxu0 0.0
  %267 = vmatpush2.msra.mxu0 0.0
  %268 = vmatprep.subr.mxu0 0.0
  %269 = vmatpush2.msra.mxu0 0.0
  %270 = vmatprep.subr.mxu0 0.0
  %271 = vmatpush2.msra.mxu0 0.0
  %272 = vmatprep.subr.mxu0 0.0
  %273 = vmatpush2.msra.mxu0 0.0
  %274 = vmatprep.subr.mxu0 0.0
  %275 = vmatpush2.msra.mxu0 0.0
  %276 = vmatprep.subr.mxu0 0.0
  %277 = vmatpush2.msra.mxu0 0.0
  %278 = vmatprep.subr.mxu0 0.0
  %279 = vmatpush2.msra.mxu0 0.0
  %280 = vmatprep.subr.mxu0 0.0
  %281 = vmatpush2.msra.mxu0 0.0
  %282 = vmatprep.subr.mxu0 0.0
  %283 = vmatpush2.msra.mxu0 0.0
  %284 = vmatprep.subr.mxu0 0.0
  %285 = vmatpush2.msra.mxu0 0.0
  %286 = vmatprep.subr.mxu0 0.0
  %287 = vmatpush2.msra.mxu0 0.0
  %288 = vmatprep.subr.mxu0 0.0
  %289 = vmatpush2.msra.mxu0 0.0
  %290 = vmatprep.subr.mxu0 0.0
  %291 = vmatpush2.msra.mxu0 0.0
  %292 = vmatprep.subr.mxu0 0.0
  %293 = vmatpush2.msra.mxu0 0.0
  %294 = vmatprep.subr.mxu0 0.0
  %295 = vmatpush2.msra.mxu0 0.0
  %296 = vmatprep.mubr.f32.mxu0 0.0
  %297 = vmatmul.mubr.f32.gmra.mxu0 %v148
  %v298 = vpop.f32.mrf.mxu0
  %v299 = vadd.f32 0.0, %v298
  %v300 = vpop.f32.mrf.mxu0
  %301 = vmatprep.mubr.f32.mxu0 0.0
  %302 = vmatmul.mubr.f32.gmra.mxu0 %v151
  %v303 = vpop.f32.mrf.mxu0
  %v304 = vadd.f32 0.0, %v303
  %v305 = vpop.f32.mrf.mxu0
  %306 = vdwg.mxu0
  %v307 = vld [vmem:[%s3 + $0x48] sm:$0xff]
  %vm308 = vcmask 326656
  %v310 = vsel %vm308, %v19, 0
  %v313 = vsel %vm308, %v20, 0
  %v316 = vsel %vm308, %v21, 0
  %v319 = vsel %vm308, %v22, 0
  %v322 = vsel %vm308, %v23, 0
  %v325 = vsel %vm308, %v24, 0
  %v328 = vsel %vm308, %v25, 0
  %v331 = vsel %vm308, %v26, 0
  %v334 = vsel %vm308, %v27, 0
  %v337 = vsel %vm308, %v28, 0
  %v340 = vsel %vm308, %v29, 0
  %v343 = vsel %vm308, %v30, 0
  %v346 = vsel %vm308, %v31, 0
  %v349 = vsel %vm308, %v32, 0
  %v352 = vsel %vm308, %v33, 0
  %v355 = vsel %vm308, %v34, 0
  %v358 = vsel %vm308, %v35, 0
  %v361 = vsel %vm308, %v36, 0
  %v364 = vsel %vm308, %v37, 0
  %v367 = vsel %vm308, %v38, 0
  %v370 = vsel %vm308, %v39, 0
  %v373 = vsel %vm308, %v40, 0
  %v376 = vsel %vm308, %v41, 0
  %v379 = vsel %vm308, %v42, 0
  %v382 = vsel %vm308, %v43, 0
  %v385 = vsel %vm308, %v44, 0
  %v388 = vsel %vm308, %v45, 0
  %v391 = vsel %vm308, %v46, 0
  %v394 = vsel %vm308, %v47, 0
  %v397 = vsel %vm308, %v48, 0
  %v400 = vsel %vm308, %v49, 0
  %v403 = vsel %vm308, %v50, 0
  %405 = vmatprep.subr.mxu0 0.0
  %406 = vmatpush1.msra.mxu0 0.0
  %407 = vmatprep.subr.mxu0 0.0
  %408 = vmatpush1.msra.mxu0 0.0
  %409 = vmatprep.subr.mxu0 0.0
  %410 = vmatpush1.msra.mxu0 0.0
  %411 = vmatprep.subr.mxu0 0.0
  %412 = vmatpush1.msra.mxu0 0.0
  %413 = vmatprep.subr.mxu0 0.0
  %414 = vmatpush1.msra.mxu0 0.0
  %415 = vmatprep.subr.mxu0 0.0
  %416 = vmatpush1.msra.mxu0 0.0
  %417 = vmatprep.subr.mxu0 0.0
  %418 = vmatpush1.msra.mxu0 0.0
  %419 = vmatprep.subr.mxu0 0.0
  %420 = vmatpush1.msra.mxu0 0.0
  %421 = vmatprep.subr.mxu0 0.0
  %422 = vmatpush1.msra.mxu0 0.0
  %423 = vmatprep.subr.mxu0 0.0
  %424 = vmatpush1.msra.mxu0 0.0
  %425 = vmatprep.subr.mxu0 0.0
  %426 = vmatpush1.msra.mxu0 0.0
  %427 = vmatprep.subr.mxu0 0.0
  %428 = vmatpush1.msra.mxu0 %v307
  %429 = vmatprep.subr.mxu0 0.0
  %430 = vmatpush1.msra.mxu0 %v304
  %431 = vmatprep.subr.mxu0 0.0
  %432 = vmatpush1.msra.mxu0 %v299
  %433 = vmatprep.subr.mxu0 0.0
  %434 = vmatpush1.msra.mxu0 %v225
  %435 = vmatprep.subr.mxu0 0.0
  %436 = vmatpush1.msra.mxu0 %v220
  %437 = vmatprep.subr.mxu0 0.0
  %438 = vmatpush2.msra.mxu0 0.0
  %439 = vmatprep.subr.mxu0 0.0
  %440 = vmatpush2.msra.mxu0 0.0
  %441 = vmatprep.subr.mxu0 0.0
  %442 = vmatpush2.msra.mxu0 0.0
  %443 = vmatprep.subr.mxu0 0.0
  %444 = vmatpush2.msra.mxu0 0.0
  %445 = vmatprep.subr.mxu0 0.0
  %446 = vmatpush2.msra.mxu0 0.0
  %447 = vmatprep.subr.mxu0 0.0
  %448 = vmatpush2.msra.mxu0 0.0
  %449 = vmatprep.subr.mxu0 0.0
  %450 = vmatpush2.msra.mxu0 0.0
  %451 = vmatprep.subr.mxu0 0.0
  %452 = vmatpush2.msra.mxu0 0.0
  %453 = vmatprep.subr.mxu0 0.0
  %454 = vmatpush2.msra.mxu0 0.0
  %455 = vmatprep.subr.mxu0 0.0
  %456 = vmatpush2.msra.mxu0 0.0
  %457 = vmatprep.subr.mxu0 0.0
  %458 = vmatpush2.msra.mxu0 0.0
  %459 = vmatprep.subr.mxu0 0.0
  %460 = vmatpush2.msra.mxu0 0.0
  %461 = vmatprep.subr.mxu0 0.0
  %462 = vmatpush2.msra.mxu0 0.0
  %463 = vmatprep.subr.mxu0 0.0
  %464 = vmatpush2.msra.mxu0 0.0
  %465 = vmatprep.subr.mxu0 0.0
  %466 = vmatpush2.msra.mxu0 0.0
  %467 = vmatprep.subr.mxu0 0.0
  %468 = vmatpush2.msra.mxu0 0.0
  %469 = vmatprep.mubr.f32.mxu0 0.0
  %470 = vmatmul.mubr.f32.gmra.mxu0 %v310
  %v471 = vpop.f32.mrf.mxu0
  %v472 = vadd.f32 0.0, %v471
  %v473 = vpop.f32.mrf.mxu0
  %474 = vmatprep.mubr.f32.mxu0 0.0
  %475 = vmatmul.mubr.f32.gmra.mxu0 %v313
  %v476 = vpop.f32.mrf.mxu0
  %v477 = vadd.f32 0.0, %v476
  %v478 = vpop.f32.mrf.mxu0
  %479 = vmatprep.mubr.f32.mxu0 0.0
  %480 = vmatmul.mubr.f32.gmra.mxu0 %v316
  %v481 = vpop.f32.mrf.mxu0
  %v482 = vadd.f32 0.0, %v481
  %v483 = vpop.f32.mrf.mxu0
  %484 = vmatprep.mubr.f32.mxu0 0.0
  %485 = vmatmul.mubr.f32.gmra.mxu0 %v319
  %v486 = vpop.f32.mrf.mxu0
  %v487 = vadd.f32 0.0, %v486
  %v488 = vpop.f32.mrf.mxu0
  %489 = vmatprep.mubr.f32.mxu0 0.0
  %490 = vmatmul.mubr.f32.gmra.mxu0 %v322
  %v491 = vpop.f32.mrf.mxu0
  %v492 = vadd.f32 0.0, %v491
  %v493 = vpop.f32.mrf.mxu0
  %494 = vmatprep.mubr.f32.mxu0 0.0
  %495 = vmatmul.mubr.f32.gmra.mxu0 %v325
  %v496 = vpop.f32.mrf.mxu0
  %v497 = vadd.f32 0.0, %v496
  %v498 = vpop.f32.mrf.mxu0
  %499 = vmatprep.mubr.f32.mxu0 0.0
  %500 = vmatmul.mubr.f32.gmra.mxu0 %v328
  %v501 = vpop.f32.mrf.mxu0
  %v502 = vadd.f32 0.0, %v501
  %v503 = vpop.f32.mrf.mxu0
  %504 = vmatprep.mubr.f32.mxu0 0.0
  %505 = vmatmul.mubr.f32.gmra.mxu0 %v331
  %v506 = vpop.f32.mrf.mxu0
  %v507 = vadd.f32 0.0, %v506
  %v508 = vpop.f32.mrf.mxu0
  %509 = vmatprep.mubr.f32.mxu0 0.0
  %510 = vmatmul.mubr.f32.gmra.mxu0 %v334
  %v511 = vpop.f32.mrf.mxu0
  %v512 = vadd.f32 0.0, %v511
  %v513 = vpop.f32.mrf.mxu0
  %514 = vmatprep.mubr.f32.mxu0 0.0
  %515 = vmatmul.mubr.f32.gmra.mxu0 %v337
  %v516 = vpop.f32.mrf.mxu0
  %v517 = vadd.f32 0.0, %v516
  %v518 = vpop.f32.mrf.mxu0
  %519 = vmatprep.mubr.f32.mxu0 0.0
  %520 = vmatmul.mubr.f32.gmra.mxu0 %v340
  %v521 = vpop.f32.mrf.mxu0
  %v522 = vadd.f32 0.0, %v521
  %v523 = vpop.f32.mrf.mxu0
  %524 = vmatprep.mubr.f32.mxu0 0.0
  %525 = vmatmul.mubr.f32.gmra.mxu0 %v343
  %v526 = vpop.f32.mrf.mxu0
  %v527 = vadd.f32 0.0, %v526
  %v528 = vpop.f32.mrf.mxu0
  %529 = vmatprep.mubr.f32.mxu0 0.0
  %530 = vmatmul.mubr.f32.gmra.mxu0 %v346
  %v531 = vpop.f32.mrf.mxu0
  %v532 = vadd.f32 0.0, %v531
  %v533 = vpop.f32.mrf.mxu0
  %534 = vmatprep.mubr.f32.mxu0 0.0
  %535 = vmatmul.mubr.f32.gmra.mxu0 %v349
  %v536 = vpop.f32.mrf.mxu0
  %v537 = vadd.f32 0.0, %v536
  %v538 = vpop.f32.mrf.mxu0
  %539 = vmatprep.mubr.f32.mxu0 0.0
  %540 = vmatmul.mubr.f32.gmra.mxu0 %v352
  %v541 = vpop.f32.mrf.mxu0
  %v542 = vadd.f32 0.0, %v541
  %v543 = vpop.f32.mrf.mxu0
  %544 = vmatprep.mubr.f32.mxu0 0.0
  %545 = vmatmul.mubr.f32.gmra.mxu0 %v355
  %v546 = vpop.f32.mrf.mxu0
  %v547 = vadd.f32 0.0, %v546
  %v548 = vpop.f32.mrf.mxu0
  %549 = vmatprep.mubr.f32.mxu0 0.0
  %550 = vmatmul.mubr.f32.gmra.mxu0 %v358
  %v551 = vpop.f32.mrf.mxu0
  %v552 = vadd.f32 0.0, %v551
  %v553 = vpop.f32.mrf.mxu0
  %554 = vmatprep.mubr.f32.mxu0 0.0
  %555 = vmatmul.mubr.f32.gmra.mxu0 %v361
  %v556 = vpop.f32.mrf.mxu0
  %v557 = vadd.f32 0.0, %v556
  %v558 = vpop.f32.mrf.mxu0
  %559 = vmatprep.mubr.f32.mxu0 0.0
  %560 = vmatmul.mubr.f32.gmra.mxu0 %v364
  %v561 = vpop.f32.mrf.mxu0
  %v562 = vadd.f32 0.0, %v561
  %v563 = vpop.f32.mrf.mxu0
  %564 = vmatprep.mubr.f32.mxu0 0.0
  %565 = vmatmul.mubr.f32.gmra.mxu0 %v367
  %v566 = vpop.f32.mrf.mxu0
  %v567 = vadd.f32 0.0, %v566
  %v568 = vpop.f32.mrf.mxu0
  %569 = vmatprep.mubr.f32.mxu0 0.0
  %570 = vmatmul.mubr.f32.gmra.mxu0 %v370
  %v571 = vpop.f32.mrf.mxu0
  %v572 = vadd.f32 0.0, %v571
  %v573 = vpop.f32.mrf.mxu0
  %574 = vmatprep.mubr.f32.mxu0 0.0
  %575 = vmatmul.mubr.f32.gmra.mxu0 %v373
  %v576 = vpop.f32.mrf.mxu0
  %v577 = vadd.f32 0.0, %v576
  %v578 = vpop.f32.mrf.mxu0
  %579 = vmatprep.mubr.f32.mxu0 0.0
  %580 = vmatmul.mubr.f32.gmra.mxu0 %v376
  %v581 = vpop.f32.mrf.mxu0
  %v582 = vadd.f32 0.0, %v581
  %v583 = vpop.f32.mrf.mxu0
  %584 = vmatprep.mubr.f32.mxu0 0.0
  %585 = vmatmul.mubr.f32.gmra.mxu0 %v379
  %v586 = vpop.f32.mrf.mxu0
  %v587 = vadd.f32 0.0, %v586
  %v588 = vpop.f32.mrf.mxu0
  %589 = vmatprep.mubr.f32.mxu0 0.0
  %590 = vmatmul.mubr.f32.gmra.mxu0 %v382
  %v591 = vpop.f32.mrf.mxu0
  %v592 = vadd.f32 0.0, %v591
  %v593 = vpop.f32.mrf.mxu0
  %594 = vmatprep.mubr.f32.mxu0 0.0
  %595 = vmatmul.mubr.f32.gmra.mxu0 %v385
  %v596 = vpop.f32.mrf.mxu0
  %v597 = vadd.f32 0.0, %v596
  %v598 = vpop.f32.mrf.mxu0
  %599 = vmatprep.mubr.f32.mxu0 0.0
  %600 = vmatmul.mubr.f32.gmra.mxu0 %v388
  %v601 = vpop.f32.mrf.mxu0
  %v602 = vadd.f32 0.0, %v601
  %v603 = vpop.f32.mrf.mxu0
  %604 = vmatprep.mubr.f32.mxu0 0.0
  %605 = vmatmul.mubr.f32.gmra.mxu0 %v391
  %v606 = vpop.f32.mrf.mxu0
  %v607 = vadd.f32 0.0, %v606
  %v608 = vpop.f32.mrf.mxu0
  %609 = vmatprep.mubr.f32.mxu0 0.0
  %610 = vmatmul.mubr.f32.gmra.mxu0 %v394
  %v611 = vpop.f32.mrf.mxu0
  %v612 = vadd.f32 0.0, %v611
  %v613 = vpop.f32.mrf.mxu0
  %614 = vmatprep.mubr.f32.mxu0 0.0
  %615 = vmatmul.mubr.f32.gmra.mxu0 %v397
  %v616 = vpop.f32.mrf.mxu0
  %v617 = vadd.f32 0.0, %v616
  %v618 = vpop.f32.mrf.mxu0
  %619 = vmatprep.mubr.f32.mxu0 0.0
  %620 = vmatmul.mubr.f32.gmra.mxu0 %v400
  %v621 = vpop.f32.mrf.mxu0
  %v622 = vadd.f32 0.0, %v621
  %v623 = vpop.f32.mrf.mxu0
  %624 = vmatprep.mubr.f32.mxu0 0.0
  %625 = vmatmul.mubr.f32.gmra.mxu0 %v403
  %v626 = vpop.f32.mrf.mxu0
  %v627 = vadd.f32 0.0, %v626
  %v628 = vpop.f32.mrf.mxu0
  %629 = vdwg.mxu0
  %v630 = vmul.f32 %v472, 0.5
  %v631 = vmul.f32 %v477, 0.5
  %v632 = vmul.f32 %v482, 0.5
  %v633 = vmul.f32 %v487, 0.5
  %v634 = vmul.f32 %v492, 0.5
  %v635 = vmul.f32 %v497, 0.5
  %v636 = vmul.f32 %v502, 0.5
  %v637 = vmul.f32 %v507, 0.5
  %v638 = vmul.f32 %v512, 0.5
  %v639 = vmul.f32 %v517, 0.5
  %v640 = vmul.f32 %v522, 0.5
  %v641 = vmul.f32 %v527, 0.5
  %v642 = vmul.f32 %v532, 0.5
  %v643 = vmul.f32 %v537, 0.5
  %v644 = vmul.f32 %v542, 0.5
  %v645 = vmul.f32 %v547, 0.5
  %v646 = vmul.f32 %v552, 0.5
  %v647 = vmul.f32 %v557, 0.5
  %v648 = vmul.f32 %v562, 0.5
  %v649 = vmul.f32 %v567, 0.5
  %v650 = vmul.f32 %v572, 0.5
  %v651 = vmul.f32 %v577, 0.5
  %v652 = vmul.f32 %v582, 0.5
  %v653 = vmul.f32 %v587, 0.5
  %v654 = vmul.f32 %v592, 0.5
  %v655 = vmul.f32 %v597, 0.5
  %v656 = vmul.f32 %v602, 0.5
  %v657 = vmul.f32 %v607, 0.5
  %v658 = vmul.f32 %v612, 0.5
  %v659 = vmul.f32 %v617, 0.5
  %v660 = vmul.f32 %v622, 0.5
  %v661 = vmul.f32 %v627, 0.5
  %v662 = vtanh.pop %v630
  %v663 = vtanh.pop %v631
  %v664 = vtanh.pop %v632
  %v665 = vtanh.pop %v633
  %v666 = vtanh.pop %v634
  %v667 = vtanh.pop %v635
  %v668 = vtanh.pop %v636
  %v669 = vtanh.pop %v637
  %v670 = vtanh.pop %v638
  %v671 = vtanh.pop %v639
  %v672 = vtanh.pop %v640
  %v673 = vtanh.pop %v641
  %v674 = vtanh.pop %v642
  %v675 = vtanh.pop %v643
  %v676 = vtanh.pop %v644
  %v677 = vtanh.pop %v645
  %v678 = vtanh.pop %v646
  %v679 = vtanh.pop %v647
  %v680 = vtanh.pop %v648
  %v681 = vtanh.pop %v649
  %v682 = vtanh.pop %v650
  %v683 = vtanh.pop %v651
  %v684 = vtanh.pop %v652
  %v685 = vtanh.pop %v653
  %v686 = vtanh.pop %v654
  %v687 = vtanh.pop %v655
  %v688 = vtanh.pop %v656
  %v689 = vtanh.pop %v657
  %v690 = vtanh.pop %v658
  %v691 = vtanh.pop %v659
  %v692 = vtanh.pop %v660
  %v693 = vtanh.pop %v661
  %v694 = vmul.f32 %v662, 0.5
  %v695 = vmul.f32 %v663, 0.5
  %v696 = vmul.f32 %v664, 0.5
  %v697 = vmul.f32 %v665, 0.5
  %v698 = vmul.f32 %v666, 0.5
  %v699 = vmul.f32 %v667, 0.5
  %v700 = vmul.f32 %v668, 0.5
  %v701 = vmul.f32 %v669, 0.5
  %v702 = vmul.f32 %v670, 0.5
  %v703 = vmul.f32 %v671, 0.5
  %v704 = vmul.f32 %v672, 0.5
  %v705 = vmul.f32 %v673, 0.5
  %v706 = vmul.f32 %v674, 0.5
  %v707 = vmul.f32 %v675, 0.5
  %v708 = vmul.f32 %v676, 0.5
  %v709 = vmul.f32 %v677, 0.5
  %v710 = vmul.f32 %v678, 0.5
  %v711 = vmul.f32 %v679, 0.5
  %v712 = vmul.f32 %v680, 0.5
  %v713 = vmul.f32 %v681, 0.5
  %v714 = vmul.f32 %v682, 0.5
  %v715 = vmul.f32 %v683, 0.5
  %v716 = vmul.f32 %v684, 0.5
  %v717 = vmul.f32 %v685, 0.5
  %v718 = vmul.f32 %v686, 0.5
  %v719 = vmul.f32 %v687, 0.5
  %v720 = vmul.f32 %v688, 0.5
  %v721 = vmul.f32 %v689, 0.5
  %v722 = vmul.f32 %v690, 0.5
  %v723 = vmul.f32 %v691, 0.5
  %v724 = vmul.f32 %v692, 0.5
  %v725 = vmul.f32 %v693, 0.5
  %v726 = vadd.f32 %v694, 0.5
  %v727 = vadd.f32 %v695, 0.5
  %v728 = vadd.f32 %v696, 0.5
  %v729 = vadd.f32 %v697, 0.5
  %v730 = vadd.f32 %v698, 0.5
  %v731 = vadd.f32 %v699, 0.5
  %v732 = vadd.f32 %v700, 0.5
  %v733 = vadd.f32 %v701, 0.5
  %v734 = vadd.f32 %v702, 0.5
  %v735 = vadd.f32 %v703, 0.5
  %v736 = vadd.f32 %v704, 0.5
  %v737 = vadd.f32 %v705, 0.5
  %v738 = vadd.f32 %v706, 0.5
  %v739 = vadd.f32 %v707, 0.5
  %v740 = vadd.f32 %v708, 0.5
  %v741 = vadd.f32 %v709, 0.5
  %v742 = vadd.f32 %v710, 0.5
  %v743 = vadd.f32 %v711, 0.5
  %v744 = vadd.f32 %v712, 0.5
  %v745 = vadd.f32 %v713, 0.5
  %v746 = vadd.f32 %v714, 0.5
  %v747 = vadd.f32 %v715, 0.5
  %v748 = vadd.f32 %v716, 0.5
  %v749 = vadd.f32 %v717, 0.5
  %v750 = vadd.f32 %v718, 0.5
  %v751 = vadd.f32 %v719, 0.5
  %v752 = vadd.f32 %v720, 0.5
  %v753 = vadd.f32 %v721, 0.5
  %v754 = vadd.f32 %v722, 0.5
  %v755 = vadd.f32 %v723, 0.5
  %v756 = vadd.f32 %v724, 0.5
  %v757 = vadd.f32 %v725, 0.5
  %v758 = vmul.f32 %v472, %v726
  %v759 = vmul.f32 %v477, %v727
  %v760 = vmul.f32 %v482, %v728
  %v761 = vmul.f32 %v487, %v729
  %v762 = vmul.f32 %v492, %v730
  %v763 = vmul.f32 %v497, %v731
  %v764 = vmul.f32 %v502, %v732
  %v765 = vmul.f32 %v507, %v733
  %v766 = vmul.f32 %v512, %v734
  %v767 = vmul.f32 %v517, %v735
  %v768 = vmul.f32 %v522, %v736
  %v769 = vmul.f32 %v527, %v737
  %v770 = vmul.f32 %v532, %v738
  %v771 = vmul.f32 %v537, %v739
  %v772 = vmul.f32 %v542, %v740
  %v773 = vmul.f32 %v547, %v741
  %v774 = vmul.f32 %v552, %v742
  %v775 = vmul.f32 %v557, %v743
  %v776 = vmul.f32 %v562, %v744
  %v777 = vmul.f32 %v567, %v745
  %v778 = vmul.f32 %v572, %v746
  %v779 = vmul.f32 %v577, %v747
  %v780 = vmul.f32 %v582, %v748
  %v781 = vmul.f32 %v587, %v749
  %v782 = vmul.f32 %v592, %v750
  %v783 = vmul.f32 %v597, %v751
  %v784 = vmul.f32 %v602, %v752
  %v785 = vmul.f32 %v607, %v753
  %v786 = vmul.f32 %v612, %v754
  %v787 = vmul.f32 %v617, %v755
  %v788 = vmul.f32 %v622, %v756
  %v789 = vmul.f32 %v627, %v757
  %v790 = vld [vmem:[%s3 + $0x50] sm:$0xff]
  %v791 = vld [vmem:[%s3 + $0x58] sm:$0xff]
  %v792 = vld [vmem:[%s3 + $0x60] sm:$0xff]
  %v793 = vld [vmem:[%s3 + $0x68] sm:$0xff]
  %v794 = vld [vmem:[%s3 + $0x70] sm:$0x1]
  %v795 = vlaneseq
  %v796 = vshrl.u32 %v795, 7
  %v797 = vsub.s32 0, %v796
  %v798 = vrot.slane %v794, %v797
  %v800 = vsel %vm146, %v758, 0
  %v803 = vsel %vm146, %v759, 0
  %v806 = vsel %vm146, %v760, 0
  %v809 = vsel %vm146, %v761, 0
  %v812 = vsel %vm146, %v762, 0
  %v815 = vsel %vm146, %v763, 0
  %v818 = vsel %vm146, %v764, 0
  %v821 = vsel %vm146, %v765, 0
  %v824 = vsel %vm146, %v766, 0
  %v827 = vsel %vm146, %v767, 0
  %v830 = vsel %vm146, %v768, 0
  %v833 = vsel %vm146, %v769, 0
  %v836 = vsel %vm146, %v770, 0
  %v839 = vsel %vm146, %v771, 0
  %v842 = vsel %vm146, %v772, 0
  %v845 = vsel %vm146, %v773, 0
  %v848 = vsel %vm146, %v774, 0
  %v851 = vsel %vm146, %v775, 0
  %v854 = vsel %vm146, %v776, 0
  %v857 = vsel %vm146, %v777, 0
  %v860 = vsel %vm146, %v778, 0
  %v863 = vsel %vm146, %v779, 0
  %v866 = vsel %vm146, %v780, 0
  %v869 = vsel %vm146, %v781, 0
  %v872 = vsel %vm146, %v782, 0
  %v875 = vsel %vm146, %v783, 0
  %v878 = vsel %vm146, %v784, 0
  %v881 = vsel %vm146, %v785, 0
  %v884 = vsel %vm146, %v786, 0
  %v887 = vsel %vm146, %v787, 0
  %v890 = vsel %vm146, %v788, 0
  %v893 = vsel %vm146, %v789, 0
  %895 = vmatprep.subr.mxu0 0.0
  %896 = vmatpush1.msra.mxu0 0.0
  %897 = vmatprep.subr.mxu0 0.0
  %898 = vmatpush1.msra.mxu0 0.0
  %899 = vmatprep.subr.mxu0 0.0
  %900 = vmatpush1.msra.mxu0 0.0
  %901 = vmatprep.subr.mxu0 0.0
  %902 = vmatpush1.msra.mxu0 0.0
  %903 = vmatprep.subr.mxu0 0.0
  %904 = vmatpush1.msra.mxu0 0.0
  %905 = vmatprep.subr.mxu0 0.0
  %906 = vmatpush1.msra.mxu0 0.0
  %907 = vmatprep.subr.mxu0 0.0
  %908 = vmatpush1.msra.mxu0 0.0
  %909 = vmatprep.subr.mxu0 0.0
  %910 = vmatpush1.msra.mxu0 0.0
  %911 = vmatprep.subr.mxu0 0.0
  %912 = vmatpush1.msra.mxu0 0.0
  %913 = vmatprep.subr.mxu0 0.0
  %914 = vmatpush1.msra.mxu0 0.0
  %915 = vmatprep.subr.mxu0 0.0
  %916 = vmatpush1.msra.mxu0 0.0
  %917 = vmatprep.subr.mxu0 0.0
  %918 = vmatpush1.msra.mxu0 0.0
  %919 = vmatprep.subr.mxu0 0.0
  %920 = vmatpush1.msra.mxu0 %v793
  %921 = vmatprep.subr.mxu0 0.0
  %922 = vmatpush1.msra.mxu0 %v792
  %923 = vmatprep.subr.mxu0 0.0
  %924 = vmatpush1.msra.mxu0 %v791
  %925 = vmatprep.subr.mxu0 0.0
  %926 = vmatpush1.msra.mxu0 %v790
  %927 = vmatprep.subr.mxu0 0.0
  %928 = vmatpush2.msra.mxu0 0.0
  %929 = vmatprep.subr.mxu0 0.0
  %930 = vmatpush2.msra.mxu0 0.0
  %931 = vmatprep.subr.mxu0 0.0
  %932 = vmatpush2.msra.mxu0 0.0
  %933 = vmatprep.subr.mxu0 0.0
  %934 = vmatpush2.msra.mxu0 0.0
  %935 = vmatprep.subr.mxu0 0.0
  %936 = vmatpush2.msra.mxu0 0.0
  %937 = vmatprep.subr.mxu0 0.0
  %938 = vmatpush2.msra.mxu0 0.0
  %939 = vmatprep.subr.mxu0 0.0
  %940 = vmatpush2.msra.mxu0 0.0
  %941 = vmatprep.subr.mxu0 0.0
  %942 = vmatpush2.msra.mxu0 0.0
  %943 = vmatprep.subr.mxu0 0.0
  %944 = vmatpush2.msra.mxu0 0.0
  %945 = vmatprep.subr.mxu0 0.0
  %946 = vmatpush2.msra.mxu0 0.0
  %947 = vmatprep.subr.mxu0 0.0
  %948 = vmatpush2.msra.mxu0 0.0
  %949 = vmatprep.subr.mxu0 0.0
  %950 = vmatpush2.msra.mxu0 0.0
  %951 = vmatprep.subr.mxu0 0.0
  %952 = vmatpush2.msra.mxu0 0.0
  %953 = vmatprep.subr.mxu0 0.0
  %954 = vmatpush2.msra.mxu0 0.0
  %955 = vmatprep.subr.mxu0 0.0
  %956 = vmatpush2.msra.mxu0 0.0
  %957 = vmatprep.subr.mxu0 0.0
  %958 = vmatpush2.msra.mxu0 0.0
  %959 = vmatprep.mubr.f32.mxu0 0.0
  %960 = vmatmul.mubr.f32.gmra.mxu0 %v800
  %v961 = vpop.f32.mrf.mxu0
  %v962 = vadd.f32 %v798, %v961
  %v963 = vpop.f32.mrf.mxu0
  %964 = vmatprep.mubr.f32.mxu0 0.0
  %965 = vmatmul.mubr.f32.gmra.mxu0 %v803
  %v966 = vpop.f32.mrf.mxu0
  %v967 = vadd.f32 %v798, %v966
  %v968 = vpop.f32.mrf.mxu0
  %969 = vmatprep.mubr.f32.mxu0 0.0
  %970 = vmatmul.mubr.f32.gmra.mxu0 %v806
  %v971 = vpop.f32.mrf.mxu0
  %v972 = vadd.f32 %v798, %v971
  %v973 = vpop.f32.mrf.mxu0
  %974 = vmatprep.mubr.f32.mxu0 0.0
  %975 = vmatmul.mubr.f32.gmra.mxu0 %v809
  %v976 = vpop.f32.mrf.mxu0
  %v977 = vadd.f32 %v798, %v976
  %v978 = vpop.f32.mrf.mxu0
  %979 = vmatprep.mubr.f32.mxu0 0.0
  %980 = vmatmul.mubr.f32.gmra.mxu0 %v812
  %v981 = vpop.f32.mrf.mxu0
  %v982 = vadd.f32 %v798, %v981
  %v983 = vpop.f32.mrf.mxu0
  %984 = vmatprep.mubr.f32.mxu0 0.0
  %985 = vmatmul.mubr.f32.gmra.mxu0 %v815
  %v986 = vpop.f32.mrf.mxu0
  %v987 = vadd.f32 %v798, %v986
  %v988 = vpop.f32.mrf.mxu0
  %989 = vmatprep.mubr.f32.mxu0 0.0
  %990 = vmatmul.mubr.f32.gmra.mxu0 %v818
  %v991 = vpop.f32.mrf.mxu0
  %v992 = vadd.f32 %v798, %v991
  %v993 = vpop.f32.mrf.mxu0
  %994 = vmatprep.mubr.f32.mxu0 0.0
  %995 = vmatmul.mubr.f32.gmra.mxu0 %v821
  %v996 = vpop.f32.mrf.mxu0
  %v997 = vadd.f32 %v798, %v996
  %v998 = vpop.f32.mrf.mxu0
  %999 = vmatprep.mubr.f32.mxu0 0.0
  %1000 = vmatmul.mubr.f32.gmra.mxu0 %v824
  %v1001 = vpop.f32.mrf.mxu0
  %v1002 = vadd.f32 %v798, %v1001
  %v1003 = vpop.f32.mrf.mxu0
  %1004 = vmatprep.mubr.f32.mxu0 0.0
  %1005 = vmatmul.mubr.f32.gmra.mxu0 %v827
  %v1006 = vpop.f32.mrf.mxu0
  %v1007 = vadd.f32 %v798, %v1006
  %v1008 = vpop.f32.mrf.mxu0
  %1009 = vmatprep.mubr.f32.mxu0 0.0
  %1010 = vmatmul.mubr.f32.gmra.mxu0 %v830
  %v1011 = vpop.f32.mrf.mxu0
  %v1012 = vadd.f32 %v798, %v1011
  %v1013 = vpop.f32.mrf.mxu0
  %1014 = vmatprep.mubr.f32.mxu0 0.0
  %1015 = vmatmul.mubr.f32.gmra.mxu0 %v833
  %v1016 = vpop.f32.mrf.mxu0
  %v1017 = vadd.f32 %v798, %v1016
  %v1018 = vpop.f32.mrf.mxu0
  %1019 = vmatprep.mubr.f32.mxu0 0.0
  %1020 = vmatmul.mubr.f32.gmra.mxu0 %v836
  %v1021 = vpop.f32.mrf.mxu0
  %v1022 = vadd.f32 %v798, %v1021
  %v1023 = vpop.f32.mrf.mxu0
  %1024 = vmatprep.mubr.f32.mxu0 0.0
  %1025 = vmatmul.mubr.f32.gmra.mxu0 %v839
  %v1026 = vpop.f32.mrf.mxu0
  %v1027 = vadd.f32 %v798, %v1026
  %v1028 = vpop.f32.mrf.mxu0
  %1029 = vmatprep.mubr.f32.mxu0 0.0
  %1030 = vmatmul.mubr.f32.gmra.mxu0 %v842
  %v1031 = vpop.f32.mrf.mxu0
  %v1032 = vadd.f32 %v798, %v1031
  %v1033 = vpop.f32.mrf.mxu0
  %1034 = vmatprep.mubr.f32.mxu0 0.0
  %1035 = vmatmul.mubr.f32.gmra.mxu0 %v845
  %v1036 = vpop.f32.mrf.mxu0
  %v1037 = vadd.f32 %v798, %v1036
  %v1038 = vpop.f32.mrf.mxu0
  %1039 = vmatprep.mubr.f32.mxu0 0.0
  %1040 = vmatmul.mubr.f32.gmra.mxu0 %v848
  %v1041 = vpop.f32.mrf.mxu0
  %v1042 = vadd.f32 %v798, %v1041
  %v1043 = vpop.f32.mrf.mxu0
  %1044 = vmatprep.mubr.f32.mxu0 0.0
  %1045 = vmatmul.mubr.f32.gmra.mxu0 %v851
  %v1046 = vpop.f32.mrf.mxu0
  %v1047 = vadd.f32 %v798, %v1046
  %v1048 = vpop.f32.mrf.mxu0
  %1049 = vmatprep.mubr.f32.mxu0 0.0
  %1050 = vmatmul.mubr.f32.gmra.mxu0 %v854
  %v1051 = vpop.f32.mrf.mxu0
  %v1052 = vadd.f32 %v798, %v1051
  %v1053 = vpop.f32.mrf.mxu0
  %1054 = vmatprep.mubr.f32.mxu0 0.0
  %1055 = vmatmul.mubr.f32.gmra.mxu0 %v857
  %v1056 = vpop.f32.mrf.mxu0
  %v1057 = vadd.f32 %v798, %v1056
  %v1058 = vpop.f32.mrf.mxu0
  %1059 = vmatprep.mubr.f32.mxu0 0.0
  %1060 = vmatmul.mubr.f32.gmra.mxu0 %v860
  %v1061 = vpop.f32.mrf.mxu0
  %v1062 = vadd.f32 %v798, %v1061
  %v1063 = vpop.f32.mrf.mxu0
  %1064 = vmatprep.mubr.f32.mxu0 0.0
  %1065 = vmatmul.mubr.f32.gmra.mxu0 %v863
  %v1066 = vpop.f32.mrf.mxu0
  %v1067 = vadd.f32 %v798, %v1066
  %v1068 = vpop.f32.mrf.mxu0
  %1069 = vmatprep.mubr.f32.mxu0 0.0
  %1070 = vmatmul.mubr.f32.gmra.mxu0 %v866
  %v1071 = vpop.f32.mrf.mxu0
  %v1072 = vadd.f32 %v798, %v1071
  %v1073 = vpop.f32.mrf.mxu0
  %1074 = vmatprep.mubr.f32.mxu0 0.0
  %1075 = vmatmul.mubr.f32.gmra.mxu0 %v869
  %v1076 = vpop.f32.mrf.mxu0
  %v1077 = vadd.f32 %v798, %v1076
  %v1078 = vpop.f32.mrf.mxu0
  %1079 = vmatprep.mubr.f32.mxu0 0.0
  %1080 = vmatmul.mubr.f32.gmra.mxu0 %v872
  %v1081 = vpop.f32.mrf.mxu0
  %v1082 = vadd.f32 %v798, %v1081
  %v1083 = vpop.f32.mrf.mxu0
  %1084 = vmatprep.mubr.f32.mxu0 0.0
  %1085 = vmatmul.mubr.f32.gmra.mxu0 %v875
  %v1086 = vpop.f32.mrf.mxu0
  %v1087 = vadd.f32 %v798, %v1086
  %v1088 = vpop.f32.mrf.mxu0
  %1089 = vmatprep.mubr.f32.mxu0 0.0
  %1090 = vmatmul.mubr.f32.gmra.mxu0 %v878
  %v1091 = vpop.f32.mrf.mxu0
  %v1092 = vadd.f32 %v798, %v1091
  %v1093 = vpop.f32.mrf.mxu0
  %1094 = vmatprep.mubr.f32.mxu0 0.0
  %1095 = vmatmul.mubr.f32.gmra.mxu0 %v881
  %v1096 = vpop.f32.mrf.mxu0
  %v1097 = vadd.f32 %v798, %v1096
  %v1098 = vpop.f32.mrf.mxu0
  %1099 = vmatprep.mubr.f32.mxu0 0.0
  %1100 = vmatmul.mubr.f32.gmra.mxu0 %v884
  %v1101 = vpop.f32.mrf.mxu0
  %v1102 = vadd.f32 %v798, %v1101
  %v1103 = vpop.f32.mrf.mxu0
  %1104 = vmatprep.mubr.f32.mxu0 0.0
  %1105 = vmatmul.mubr.f32.gmra.mxu0 %v887
  %v1106 = vpop.f32.mrf.mxu0
  %v1107 = vadd.f32 %v798, %v1106
  %v1108 = vpop.f32.mrf.mxu0
  %1109 = vmatprep.mubr.f32.mxu0 0.0
  %1110 = vmatmul.mubr.f32.gmra.mxu0 %v890
  %v1111 = vpop.f32.mrf.mxu0
  %v1112 = vadd.f32 %v798, %v1111
  %v1113 = vpop.f32.mrf.mxu0
  %1114 = vmatprep.mubr.f32.mxu0 0.0
  %1115 = vmatmul.mubr.f32.gmra.mxu0 %v893
  %v1116 = vpop.f32.mrf.mxu0
  %v1117 = vadd.f32 %v798, %v1116
  %v1118 = vpop.f32.mrf.mxu0
  %1119 = vdwg.mxu0
  %v1120 = vmul.f32 %v962, 0.5
  %v1121 = vmul.f32 %v967, 0.5
  %v1122 = vmul.f32 %v972, 0.5
  %v1123 = vmul.f32 %v977, 0.5
  %v1124 = vmul.f32 %v982, 0.5
  %v1125 = vmul.f32 %v987, 0.5
  %v1126 = vmul.f32 %v992, 0.5
  %v1127 = vmul.f32 %v997, 0.5
  %v1128 = vmul.f32 %v1002, 0.5
  %v1129 = vmul.f32 %v1007, 0.5
  %v1130 = vmul.f32 %v1012, 0.5
  %v1131 = vmul.f32 %v1017, 0.5
  %v1132 = vmul.f32 %v1022, 0.5
  %v1133 = vmul.f32 %v1027, 0.5
  %v1134 = vmul.f32 %v1032, 0.5
  %v1135 = vmul.f32 %v1037, 0.5
  %v1136 = vmul.f32 %v1042, 0.5
  %v1137 = vmul.f32 %v1047, 0.5
  %v1138 = vmul.f32 %v1052, 0.5
  %v1139 = vmul.f32 %v1057, 0.5
  %v1140 = vmul.f32 %v1062, 0.5
  %v1141 = vmul.f32 %v1067, 0.5
  %v1142 = vmul.f32 %v1072, 0.5
  %v1143 = vmul.f32 %v1077, 0.5
  %v1144 = vmul.f32 %v1082, 0.5
  %v1145 = vmul.f32 %v1087, 0.5
  %v1146 = vmul.f32 %v1092, 0.5
  %v1147 = vmul.f32 %v1097, 0.5
  %v1148 = vmul.f32 %v1102, 0.5
  %v1149 = vmul.f32 %v1107, 0.5
  %v1150 = vmul.f32 %v1112, 0.5
  %v1151 = vmul.f32 %v1117, 0.5
  %v1152 = vtanh.pop %v1120
  %v1153 = vtanh.pop %v1121
  %v1154 = vtanh.pop %v1122
  %v1155 = vtanh.pop %v1123
  %v1156 = vtanh.pop %v1124
  %v1157 = vtanh.pop %v1125
  %v1158 = vtanh.pop %v1126
  %v1159 = vtanh.pop %v1127
  %v1160 = vtanh.pop %v1128
  %v1161 = vtanh.pop %v1129
  %v1162 = vtanh.pop %v1130
  %v1163 = vtanh.pop %v1131
  %v1164 = vtanh.pop %v1132
  %v1165 = vtanh.pop %v1133
  %v1166 = vtanh.pop %v1134
  %v1167 = vtanh.pop %v1135
  %v1168 = vtanh.pop %v1136
  %v1169 = vtanh.pop %v1137
  %v1170 = vtanh.pop %v1138
  %v1171 = vtanh.pop %v1139
  %v1172 = vtanh.pop %v1140
  %v1173 = vtanh.pop %v1141
  %v1174 = vtanh.pop %v1142
  %v1175 = vtanh.pop %v1143
  %v1176 = vtanh.pop %v1144
  %v1177 = vtanh.pop %v1145
  %v1178 = vtanh.pop %v1146
  %v1179 = vtanh.pop %v1147
  %v1180 = vtanh.pop %v1148
  %v1181 = vtanh.pop %v1149
  %v1182 = vtanh.pop %v1150
  %v1183 = vtanh.pop %v1151
  %v1184 = vmul.f32 %v1152, 0.5
  %v1185 = vmul.f32 %v1153, 0.5
  %v1186 = vmul.f32 %v1154, 0.5
  %v1187 = vmul.f32 %v1155, 0.5
  %v1188 = vmul.f32 %v1156, 0.5
  %v1189 = vmul.f32 %v1157, 0.5
  %v1190 = vmul.f32 %v1158, 0.5
  %v1191 = vmul.f32 %v1159, 0.5
  %v1192 = vmul.f32 %v1160, 0.5
  %v1193 = vmul.f32 %v1161, 0.5
  %v1194 = vmul.f32 %v1162, 0.5
  %v1195 = vmul.f32 %v1163, 0.5
  %v1196 = vmul.f32 %v1164, 0.5
  %v1197 = vmul.f32 %v1165, 0.5
  %v1198 = vmul.f32 %v1166, 0.5
  %v1199 = vmul.f32 %v1167, 0.5
  %v1200 = vmul.f32 %v1168, 0.5
  %v1201 = vmul.f32 %v1169, 0.5
  %v1202 = vmul.f32 %v1170, 0.5
  %v1203 = vmul.f32 %v1171, 0.5
  %v1204 = vmul.f32 %v1172, 0.5
  %v1205 = vmul.f32 %v1173, 0.5
  %v1206 = vmul.f32 %v1174, 0.5
  %v1207 = vmul.f32 %v1175, 0.5
  %v1208 = vmul.f32 %v1176, 0.5
  %v1209 = vmul.f32 %v1177, 0.5
  %v1210 = vmul.f32 %v1178, 0.5
  %v1211 = vmul.f32 %v1179, 0.5
  %v1212 = vmul.f32 %v1180, 0.5
  %v1213 = vmul.f32 %v1181, 0.5
  %v1214 = vmul.f32 %v1182, 0.5
  %v1215 = vmul.f32 %v1183, 0.5
  %v1216 = vadd.f32 %v1184, 0.5
  %v1217 = vadd.f32 %v1185, 0.5
  %v1218 = vadd.f32 %v1186, 0.5
  %v1219 = vadd.f32 %v1187, 0.5
  %v1220 = vadd.f32 %v1188, 0.5
  %v1221 = vadd.f32 %v1189, 0.5
  %v1222 = vadd.f32 %v1190, 0.5
  %v1223 = vadd.f32 %v1191, 0.5
  %v1224 = vadd.f32 %v1192, 0.5
  %v1225 = vadd.f32 %v1193, 0.5
  %v1226 = vadd.f32 %v1194, 0.5
  %v1227 = vadd.f32 %v1195, 0.5
  %v1228 = vadd.f32 %v1196, 0.5
  %v1229 = vadd.f32 %v1197, 0.5
  %v1230 = vadd.f32 %v1198, 0.5
  %v1231 = vadd.f32 %v1199, 0.5
  %v1232 = vadd.f32 %v1200, 0.5
  %v1233 = vadd.f32 %v1201, 0.5
  %v1234 = vadd.f32 %v1202, 0.5
  %v1235 = vadd.f32 %v1203, 0.5
  %v1236 = vadd.f32 %v1204, 0.5
  %v1237 = vadd.f32 %v1205, 0.5
  %v1238 = vadd.f32 %v1206, 0.5
  %v1239 = vadd.f32 %v1207, 0.5
  %v1240 = vadd.f32 %v1208, 0.5
  %v1241 = vadd.f32 %v1209, 0.5
  %v1242 = vadd.f32 %v1210, 0.5
  %v1243 = vadd.f32 %v1211, 0.5
  %v1244 = vadd.f32 %v1212, 0.5
  %v1245 = vadd.f32 %v1213, 0.5
  %v1246 = vadd.f32 %v1214, 0.5
  %v1247 = vadd.f32 %v1215, 0.5
  %v1248 = vmul.f32 %v962, %v1216
  %v1249 = vmul.f32 %v967, %v1217
  %v1250 = vmul.f32 %v972, %v1218
  %v1251 = vmul.f32 %v977, %v1219
  %v1252 = vmul.f32 %v982, %v1220
  %v1253 = vmul.f32 %v987, %v1221
  %v1254 = vmul.f32 %v992, %v1222
  %v1255 = vmul.f32 %v997, %v1223
  %v1256 = vmul.f32 %v1002, %v1224
  %v1257 = vmul.f32 %v1007, %v1225
  %v1258 = vmul.f32 %v1012, %v1226
  %v1259 = vmul.f32 %v1017, %v1227
  %v1260 = vmul.f32 %v1022, %v1228
  %v1261 = vmul.f32 %v1027, %v1229
  %v1262 = vmul.f32 %v1032, %v1230
  %v1263 = vmul.f32 %v1037, %v1231
  %v1264 = vmul.f32 %v1042, %v1232
  %v1265 = vmul.f32 %v1047, %v1233
  %v1266 = vmul.f32 %v1052, %v1234
  %v1267 = vmul.f32 %v1057, %v1235
  %v1268 = vmul.f32 %v1062, %v1236
  %v1269 = vmul.f32 %v1067, %v1237
  %v1270 = vmul.f32 %v1072, %v1238
  %v1271 = vmul.f32 %v1077, %v1239
  %v1272 = vmul.f32 %v1082, %v1240
  %v1273 = vmul.f32 %v1087, %v1241
  %v1274 = vmul.f32 %v1092, %v1242
  %v1275 = vmul.f32 %v1097, %v1243
  %v1276 = vmul.f32 %v1102, %v1244
  %v1277 = vmul.f32 %v1107, %v1245
  %v1278 = vmul.f32 %v1112, %v1246
  %v1279 = vmul.f32 %v1117, %v1247
  %1280 = vmatprep.subr.mxu0 0.0
  %1281 = vmatpush1.msra.mxu0 %v1263
  %1282 = vmatprep.subr.mxu0 0.0
  %1283 = vmatpush1.msra.mxu0 %v1262
  %1284 = vmatprep.subr.mxu0 0.0
  %1285 = vmatpush1.msra.mxu0 %v1261
  %1286 = vmatprep.subr.mxu0 0.0
  %1287 = vmatpush1.msra.mxu0 %v1260
  %1288 = vmatprep.subr.mxu0 0.0
  %1289 = vmatpush1.msra.mxu0 %v1259
  %1290 = vmatprep.subr.mxu0 0.0
  %1291 = vmatpush1.msra.mxu0 %v1258
  %1292 = vmatprep.subr.mxu0 0.0
  %1293 = vmatpush1.msra.mxu0 %v1257
  %1294 = vmatprep.subr.mxu0 0.0
  %1295 = vmatpush1.msra.mxu0 %v1256
  %1296 = vmatprep.subr.mxu0 0.0
  %1297 = vmatpush1.msra.mxu0 %v1255
  %1298 = vmatprep.subr.mxu0 0.0
  %1299 = vmatpush1.msra.mxu0 %v1254
  %1300 = vmatprep.subr.mxu0 0.0
  %1301 = vmatpush1.msra.mxu0 %v1253
  %1302 = vmatprep.subr.mxu0 0.0
  %1303 = vmatpush1.msra.mxu0 %v1252
  %1304 = vmatprep.subr.mxu0 0.0
  %1305 = vmatpush1.msra.mxu0 %v1251
  %1306 = vmatprep.subr.mxu0 0.0
  %1307 = vmatpush1.msra.mxu0 %v1250
  %1308 = vmatprep.subr.mxu0 0.0
  %1309 = vmatpush1.msra.mxu0 %v1249
  %1310 = vmatprep.subr.mxu0 0.0
  %1311 = vmatpush1.msra.mxu0 %v1248
  %1312 = vmatprep.subr.mxu0 0.0
  %1313 = vmatpush2.msra.mxu0 %v1279
  %1314 = vmatprep.subr.mxu0 0.0
  %1315 = vmatpush2.msra.mxu0 %v1278
  %1316 = vmatprep.subr.mxu0 0.0
  %1317 = vmatpush2.msra.mxu0 %v1277
  %1318 = vmatprep.subr.mxu0 0.0
  %1319 = vmatpush2.msra.mxu0 %v1276
  %1320 = vmatprep.subr.mxu0 0.0
  %1321 = vmatpush2.msra.mxu0 %v1275
  %1322 = vmatprep.subr.mxu0 0.0
  %1323 = vmatpush2.msra.mxu0 %v1274
  %1324 = vmatprep.subr.mxu0 0.0
  %1325 = vmatpush2.msra.mxu0 %v1273
  %1326 = vmatprep.subr.mxu0 0.0
  %1327 = vmatpush2.msra.mxu0 %v1272
  %1328 = vmatprep.subr.mxu0 0.0
  %1329 = vmatpush2.msra.mxu0 %v1271
  %1330 = vmatprep.subr.mxu0 0.0
  %1331 = vmatpush2.msra.mxu0 %v1270
  %1332 = vmatprep.subr.mxu0 0.0
  %1333 = vmatpush2.msra.mxu0 %v1269
  %1334 = vmatprep.subr.mxu0 0.0
  %1335 = vmatpush2.msra.mxu0 %v1268
  %1336 = vmatprep.subr.mxu0 0.0
  %1337 = vmatpush2.msra.mxu0 %v1267
  %1338 = vmatprep.subr.mxu0 0.0
  %1339 = vmatpush2.msra.mxu0 %v1266
  %1340 = vmatprep.subr.mxu0 0.0
  %1341 = vmatpush2.msra.mxu0 %v1265
  %1342 = vmatprep.subr.mxu0 0.0
  %1343 = vmatpush2.msra.mxu0 %v1264
  %1344 = vmatprep.mubr.f32.mxu0 %v52
  %1345 = vmatmul.mubr.f32.gmra.mxu0 %v51
  %v1346 = vpop.f32.mrf.mxu0
  %v1347 = vadd.f32 0.0, %v1346
  %v1348 = vpop.f32.mrf.mxu0
  %1349 = vmatprep.mubr.f32.mxu0 %v54
  %1350 = vmatmul.mubr.f32.gmra.mxu0 %v53
  %v1351 = vpop.f32.mrf.mxu0
  %v1352 = vadd.f32 0.0, %v1351
  %v1353 = vpop.f32.mrf.mxu0
  %1354 = vdwg.mxu0
  %v1355 = vld [vmem:[%s3 + $0x78] sm:$0xff]
  %v1356 = vld [vmem:[%s3 + $0x80] sm:$0xff]
  %v1357 = vld [vmem:[%s3 + $0x88] sm:$0xff]
  %v1358 = vld [vmem:[%s3 + $0x90] sm:$0xff]
  %v1359 = vld [vmem:[%s3 + $0x98] sm:$0xff]
  %v1360 = vld [vmem:[%s3 + $0xa0] sm:$0xff]
  %v1361 = vld [vmem:[%s3 + $0xa8] sm:$0xff]
  %v1362 = vld [vmem:[%s3 + $0xb0] sm:$0xff]
  %v1364 = vsel %vm146, %v1347, 0
  %v1367 = vsel %vm146, %v1352, 0
  %1369 = vmatprep.subr.mxu0 0.0
  %1370 = vmatpush1.msra.mxu0 0.0
  %1371 = vmatprep.subr.mxu0 0.0
  %1372 = vmatpush1.msra.mxu0 0.0
  %1373 = vmatprep.subr.mxu0 0.0
  %1374 = vmatpush1.msra.mxu0 0.0
  %1375 = vmatprep.subr.mxu0 0.0
  %1376 = vmatpush1.msra.mxu0 0.0
  %1377 = vmatprep.subr.mxu0 0.0
  %1378 = vmatpush1.msra.mxu0 0.0
  %1379 = vmatprep.subr.mxu0 0.0
  %1380 = vmatpush1.msra.mxu0 0.0
  %1381 = vmatprep.subr.mxu0 0.0
  %1382 = vmatpush1.msra.mxu0 0.0
  %1383 = vmatprep.subr.mxu0 0.0
  %1384 = vmatpush1.msra.mxu0 0.0
  %1385 = vmatprep.subr.mxu0 0.0
  %1386 = vmatpush1.msra.mxu0 0.0
  %1387 = vmatprep.subr.mxu0 0.0
  %1388 = vmatpush1.msra.mxu0 0.0
  %1389 = vmatprep.subr.mxu0 0.0
  %1390 = vmatpush1.msra.mxu0 0.0
  %1391 = vmatprep.subr.mxu0 0.0
  %1392 = vmatpush1.msra.mxu0 0.0
  %1393 = vmatprep.subr.mxu0 0.0
  %1394 = vmatpush1.msra.mxu0 %v1362
  %1395 = vmatprep.subr.mxu0 0.0
  %1396 = vmatpush1.msra.mxu0 %v1361
  %1397 = vmatprep.subr.mxu0 0.0
  %1398 = vmatpush1.msra.mxu0 %v1360
  %1399 = vmatprep.subr.mxu0 0.0
  %1400 = vmatpush1.msra.mxu0 %v1359
  %1401 = vmatprep.subr.mxu0 0.0
  %1402 = vmatpush2.msra.mxu0 0.0
  %1403 = vmatprep.subr.mxu0 0.0
  %1404 = vmatpush2.msra.mxu0 0.0
  %1405 = vmatprep.subr.mxu0 0.0
  %1406 = vmatpush2.msra.mxu0 0.0
  %1407 = vmatprep.subr.mxu0 0.0
  %1408 = vmatpush2.msra.mxu0 0.0
  %1409 = vmatprep.subr.mxu0 0.0
  %1410 = vmatpush2.msra.mxu0 0.0
  %1411 = vmatprep.subr.mxu0 0.0
  %1412 = vmatpush2.msra.mxu0 0.0
  %1413 = vmatprep.subr.mxu0 0.0
  %1414 = vmatpush2.msra.mxu0 0.0
  %1415 = vmatprep.subr.mxu0 0.0
  %1416 = vmatpush2.msra.mxu0 0.0
  %1417 = vmatprep.subr.mxu0 0.0
  %1418 = vmatpush2.msra.mxu0 0.0
  %1419 = vmatprep.subr.mxu0 0.0
  %1420 = vmatpush2.msra.mxu0 0.0
  %1421 = vmatprep.subr.mxu0 0.0
  %1422 = vmatpush2.msra.mxu0 0.0
  %1423 = vmatprep.subr.mxu0 0.0
  %1424 = vmatpush2.msra.mxu0 0.0
  %1425 = vmatprep.subr.mxu0 0.0
  %1426 = vmatpush2.msra.mxu0 0.0
  %1427 = vmatprep.subr.mxu0 0.0
  %1428 = vmatpush2.msra.mxu0 0.0
  %1429 = vmatprep.subr.mxu0 0.0
  %1430 = vmatpush2.msra.mxu0 0.0
  %1431 = vmatprep.subr.mxu0 0.0
  %1432 = vmatpush2.msra.mxu0 0.0
  %1433 = vmatprep.mubr.f32.mxu0 0.0
  %1434 = vmatmul.mubr.f32.gmra.mxu0 %v1364
  %v1435 = vpop.f32.mrf.mxu0
  %v1436 = vadd.f32 0.0, %v1435
  %v1437 = vpop.f32.mrf.mxu0
  %1438 = vmatprep.mubr.f32.mxu0 0.0
  %1439 = vmatmul.mubr.f32.gmra.mxu0 %v1367
  %v1440 = vpop.f32.mrf.mxu0
  %v1441 = vadd.f32 0.0, %v1440
  %v1442 = vpop.f32.mrf.mxu0
  %1443 = vdwg.mxu0
  %1444 = vmatprep.subr.mxu0 0.0
  %1445 = vmatpush1.msra.mxu0 0.0
  %1446 = vmatprep.subr.mxu0 0.0
  %1447 = vmatpush1.msra.mxu0 0.0
  %1448 = vmatprep.subr.mxu0 0.0
  %1449 = vmatpush1.msra.mxu0 0.0
  %1450 = vmatprep.subr.mxu0 0.0
  %1451 = vmatpush1.msra.mxu0 0.0
  %1452 = vmatprep.subr.mxu0 0.0
  %1453 = vmatpush1.msra.mxu0 0.0
  %1454 = vmatprep.subr.mxu0 0.0
  %1455 = vmatpush1.msra.mxu0 0.0
  %1456 = vmatprep.subr.mxu0 0.0
  %1457 = vmatpush1.msra.mxu0 0.0
  %1458 = vmatprep.subr.mxu0 0.0
  %1459 = vmatpush1.msra.mxu0 0.0
  %1460 = vmatprep.subr.mxu0 0.0
  %1461 = vmatpush1.msra.mxu0 0.0
  %1462 = vmatprep.subr.mxu0 0.0
  %1463 = vmatpush1.msra.mxu0 0.0
  %1464 = vmatprep.subr.mxu0 0.0
  %1465 = vmatpush1.msra.mxu0 0.0
  %1466 = vmatprep.subr.mxu0 0.0
  %1467 = vmatpush1.msra.mxu0 0.0
  %1468 = vmatprep.subr.mxu0 0.0
  %1469 = vmatpush1.msra.mxu0 %v1358
  %1470 = vmatprep.subr.mxu0 0.0
  %1471 = vmatpush1.msra.mxu0 %v1357
  %1472 = vmatprep.subr.mxu0 0.0
  %1473 = vmatpush1.msra.mxu0 %v1356
  %1474 = vmatprep.subr.mxu0 0.0
  %1475 = vmatpush1.msra.mxu0 %v1355
  %1476 = vmatprep.subr.mxu0 0.0
  %1477 = vmatpush2.msra.mxu0 0.0
  %1478 = vmatprep.subr.mxu0 0.0
  %1479 = vmatpush2.msra.mxu0 0.0
  %1480 = vmatprep.subr.mxu0 0.0
  %1481 = vmatpush2.msra.mxu0 0.0
  %1482 = vmatprep.subr.mxu0 0.0
  %1483 = vmatpush2.msra.mxu0 0.0
  %1484 = vmatprep.subr.mxu0 0.0
  %1485 = vmatpush2.msra.mxu0 0.0
  %1486 = vmatprep.subr.mxu0 0.0
  %1487 = vmatpush2.msra.mxu0 0.0
  %1488 = vmatprep.subr.mxu0 0.0
  %1489 = vmatpush2.msra.mxu0 0.0
  %1490 = vmatprep.subr.mxu0 0.0
  %1491 = vmatpush2.msra.mxu0 0.0
  %1492 = vmatprep.subr.mxu0 0.0
  %1493 = vmatpush2.msra.mxu0 0.0
  %1494 = vmatprep.subr.mxu0 0.0
  %1495 = vmatpush2.msra.mxu0 0.0
  %1496 = vmatprep.subr.mxu0 0.0
  %1497 = vmatpush2.msra.mxu0 0.0
  %1498 = vmatprep.subr.mxu0 0.0
  %1499 = vmatpush2.msra.mxu0 0.0
  %1500 = vmatprep.subr.mxu0 0.0
  %1501 = vmatpush2.msra.mxu0 0.0
  %1502 = vmatprep.subr.mxu0 0.0
  %1503 = vmatpush2.msra.mxu0 0.0
  %1504 = vmatprep.subr.mxu0 0.0
  %1505 = vmatpush2.msra.mxu0 0.0
  %1506 = vmatprep.subr.mxu0 0.0
  %1507 = vmatpush2.msra.mxu0 0.0
  %1508 = vmatprep.mubr.f32.mxu0 0.0
  %1509 = vmatmul.mubr.f32.gmra.mxu0 %v148
  %v1510 = vpop.f32.mrf.mxu0
  %v1511 = vadd.f32 %v1436, %v1510
  %v1512 = vpop.f32.mrf.mxu0
  %1513 = vmatprep.mubr.f32.mxu0 0.0
  %1514 = vmatmul.mubr.f32.gmra.mxu0 %v151
  %v1515 = vpop.f32.mrf.mxu0
  %v1516 = vadd.f32 %v1441, %v1515
  %v1517 = vpop.f32.mrf.mxu0
  %1518 = vdwg.mxu0
  %v1519 = vld [vmem:[%s3 + $0xb8] sm:$0x1]
  %v1520 = vlaneseq
  %v1521 = vshrl.u32 %v1520, 7
  %v1522 = vsub.s32 0, %v1521
  %v1523 = vrot.slane %v1519, %v1522
  %v1524 = vadd.f32 %v1511, %v1523
  %v1525 = vadd.f32 %v1516, %v1523
  %v1526 = vmul.f32 %v1524, 0.5
  %v1527 = vmul.f32 %v1525, 0.5
  %v1528 = vtanh.pop %v1526
  %v1529 = vtanh.pop %v1527
  %v1530 = vmul.f32 %v1528, 0.5
  %v1531 = vmul.f32 %v1529, 0.5
  %v1532 = vadd.f32 %v1530, 0.5
  %v1533 = vadd.f32 %v1531, 0.5
  %v1534 = vmul.f32 %v1524, %v1532
  %v1535 = vmul.f32 %v1525, %v1533
  %v1536 = vld [vmem:[%s3 + $0xc0] sm:$0xff]
  %v1537 = vld [vmem:[%s3 + $0xc8] sm:$0xff]
  %v1538 = vld [vmem:[%s3 + $0xd0] sm:$0xff]
  %v1539 = vld [vmem:[%s3 + $0xd8] sm:$0xff]
  %v1541 = vsel %vm146, %v1534, 0
  %v1544 = vsel %vm146, %v1535, 0
  %1546 = vmatprep.subr.mxu0 0.0
  %1547 = vmatpush1.msra.mxu0 0.0
  %1548 = vmatprep.subr.mxu0 0.0
  %1549 = vmatpush1.msra.mxu0 0.0
  %1550 = vmatprep.subr.mxu0 0.0
  %1551 = vmatpush1.msra.mxu0 0.0
  %1552 = vmatprep.subr.mxu0 0.0
  %1553 = vmatpush1.msra.mxu0 0.0
  %1554 = vmatprep.subr.mxu0 0.0
  %1555 = vmatpush1.msra.mxu0 0.0
  %1556 = vmatprep.subr.mxu0 0.0
  %1557 = vmatpush1.msra.mxu0 0.0
  %1558 = vmatprep.subr.mxu0 0.0
  %1559 = vmatpush1.msra.mxu0 0.0
  %1560 = vmatprep.subr.mxu0 0.0
  %1561 = vmatpush1.msra.mxu0 0.0
  %1562 = vmatprep.subr.mxu0 0.0
  %1563 = vmatpush1.msra.mxu0 0.0
  %1564 = vmatprep.subr.mxu0 0.0
  %1565 = vmatpush1.msra.mxu0 0.0
  %1566 = vmatprep.subr.mxu0 0.0
  %1567 = vmatpush1.msra.mxu0 0.0
  %1568 = vmatprep.subr.mxu0 0.0
  %1569 = vmatpush1.msra.mxu0 0.0
  %1570 = vmatprep.subr.mxu0 0.0
  %1571 = vmatpush1.msra.mxu0 %v1539
  %1572 = vmatprep.subr.mxu0 0.0
  %1573 = vmatpush1.msra.mxu0 %v1538
  %1574 = vmatprep.subr.mxu0 0.0
  %1575 = vmatpush1.msra.mxu0 %v1537
  %1576 = vmatprep.subr.mxu0 0.0
  %1577 = vmatpush1.msra.mxu0 %v1536
  %1578 = vmatprep.subr.mxu0 0.0
  %1579 = vmatpush2.msra.mxu0 0.0
  %1580 = vmatprep.subr.mxu0 0.0
  %1581 = vmatpush2.msra.mxu0 0.0
  %1582 = vmatprep.subr.mxu0 0.0
  %1583 = vmatpush2.msra.mxu0 0.0
  %1584 = vmatprep.subr.mxu0 0.0
  %1585 = vmatpush2.msra.mxu0 0.0
  %1586 = vmatprep.subr.mxu0 0.0
  %1587 = vmatpush2.msra.mxu0 0.0
  %1588 = vmatprep.subr.mxu0 0.0
  %1589 = vmatpush2.msra.mxu0 0.0
  %1590 = vmatprep.subr.mxu0 0.0
  %1591 = vmatpush2.msra.mxu0 0.0
  %1592 = vmatprep.subr.mxu0 0.0
  %1593 = vmatpush2.msra.mxu0 0.0
  %1594 = vmatprep.subr.mxu0 0.0
  %1595 = vmatpush2.msra.mxu0 0.0
  %1596 = vmatprep.subr.mxu0 0.0
  %1597 = vmatpush2.msra.mxu0 0.0
  %1598 = vmatprep.subr.mxu0 0.0
  %1599 = vmatpush2.msra.mxu0 0.0
  %1600 = vmatprep.subr.mxu0 0.0
  %1601 = vmatpush2.msra.mxu0 0.0
  %1602 = vmatprep.subr.mxu0 0.0
  %1603 = vmatpush2.msra.mxu0 0.0
  %1604 = vmatprep.subr.mxu0 0.0
  %1605 = vmatpush2.msra.mxu0 0.0
  %1606 = vmatprep.subr.mxu0 0.0
  %1607 = vmatpush2.msra.mxu0 0.0
  %1608 = vmatprep.subr.mxu0 0.0
  %1609 = vmatpush2.msra.mxu0 0.0
  %1610 = vmatprep.mubr.f32.mxu0 0.0
  %1611 = vmatmul.mubr.f32.gmra.mxu0 %v1541
  %v1612 = vpop.f32.mrf.mxu0
  %v1613 = vadd.f32 0.0, %v1612
  %v1614 = vpop.f32.mrf.mxu0
  %1615 = vmatprep.mubr.f32.mxu0 0.0
  %1616 = vmatmul.mubr.f32.gmra.mxu0 %v1544
  %v1617 = vpop.f32.mrf.mxu0
  %v1618 = vadd.f32 0.0, %v1617
  %v1619 = vpop.f32.mrf.mxu0
  %1620 = vdwg.mxu0
  %v1621 = vadd.f32 %v134, %v1613
  %v1622 = vadd.f32 %v139, %v1618
  %v1623 = vld [vmem:[%s3 + $0xe0] sm:$0x1]
  %v1624 = vlaneseq
  %v1625 = vshrl.u32 %v1624, 7
  %v1626 = vsub.s32 0, %v1625
  %v1627 = vrot.slane %v1623, %v1626
  %v1628 = vadd.f32 %v1621, %v1627
  %v1629 = vadd.f32 %v1622, %v1627
  %v1630 = vld [vmem:[%s3 + $0xe8] sm:$0xff]
  %v1631 = vld [vmem:[%s3 + $0xf0] sm:$0xff]
  %v1632 = vld [vmem:[%s3 + $0xf8] sm:$0xff]
  %v1633 = vld [vmem:[%s3 + $0x100] sm:$0xff]
  %v1635 = vsel %vm146, %v1628, 0
  %v1638 = vsel %vm146, %v1629, 0
  %1640 = vmatprep.subr.mxu0 0.0
  %1641 = vmatpush1.msra.mxu0 0.0
  %1642 = vmatprep.subr.mxu0 0.0
  %1643 = vmatpush1.msra.mxu0 0.0
  %1644 = vmatprep.subr.mxu0 0.0
  %1645 = vmatpush1.msra.mxu0 0.0
  %1646 = vmatprep.subr.mxu0 0.0
  %1647 = vmatpush1.msra.mxu0 0.0
  %1648 = vmatprep.subr.mxu0 0.0
  %1649 = vmatpush1.msra.mxu0 0.0
  %1650 = vmatprep.subr.mxu0 0.0
  %1651 = vmatpush1.msra.mxu0 0.0
  %1652 = vmatprep.subr.mxu0 0.0
  %1653 = vmatpush1.msra.mxu0 0.0
  %1654 = vmatprep.subr.mxu0 0.0
  %1655 = vmatpush1.msra.mxu0 0.0
  %1656 = vmatprep.subr.mxu0 0.0
  %1657 = vmatpush1.msra.mxu0 0.0
  %1658 = vmatprep.subr.mxu0 0.0
  %1659 = vmatpush1.msra.mxu0 0.0
  %1660 = vmatprep.subr.mxu0 0.0
  %1661 = vmatpush1.msra.mxu0 0.0
  %1662 = vmatprep.subr.mxu0 0.0
  %1663 = vmatpush1.msra.mxu0 0.0
  %1664 = vmatprep.subr.mxu0 0.0
  %1665 = vmatpush1.msra.mxu0 %v1633
  %1666 = vmatprep.subr.mxu0 0.0
  %1667 = vmatpush1.msra.mxu0 %v1632
  %1668 = vmatprep.subr.mxu0 0.0
  %1669 = vmatpush1.msra.mxu0 %v1631
  %1670 = vmatprep.subr.mxu0 0.0
  %1671 = vmatpush1.msra.mxu0 %v1630
  %1672 = vmatprep.subr.mxu0 0.0
  %1673 = vmatpush2.msra.mxu0 0.0
  %1674 = vmatprep.subr.mxu0 0.0
  %1675 = vmatpush2.msra.mxu0 0.0
  %1676 = vmatprep.subr.mxu0 0.0
  %1677 = vmatpush2.msra.mxu0 0.0
  %1678 = vmatprep.subr.mxu0 0.0
  %1679 = vmatpush2.msra.mxu0 0.0
  %1680 = vmatprep.subr.mxu0 0.0
  %1681 = vmatpush2.msra.mxu0 0.0
  %1682 = vmatprep.subr.mxu0 0.0
  %1683 = vmatpush2.msra.mxu0 0.0
  %1684 = vmatprep.subr.mxu0 0.0
  %1685 = vmatpush2.msra.mxu0 0.0
  %1686 = vmatprep.subr.mxu0 0.0
  %1687 = vmatpush2.msra.mxu0 0.0
  %1688 = vmatprep.subr.mxu0 0.0
  %1689 = vmatpush2.msra.mxu0 0.0
  %1690 = vmatprep.subr.mxu0 0.0
  %1691 = vmatpush2.msra.mxu0 0.0
  %1692 = vmatprep.subr.mxu0 0.0
  %1693 = vmatpush2.msra.mxu0 0.0
  %1694 = vmatprep.subr.mxu0 0.0
  %1695 = vmatpush2.msra.mxu0 0.0
  %1696 = vmatprep.subr.mxu0 0.0
  %1697 = vmatpush2.msra.mxu0 0.0
  %1698 = vmatprep.subr.mxu0 0.0
  %1699 = vmatpush2.msra.mxu0 0.0
  %1700 = vmatprep.subr.mxu0 0.0
  %1701 = vmatpush2.msra.mxu0 0.0
  %1702 = vmatprep.subr.mxu0 0.0
  %1703 = vmatpush2.msra.mxu0 0.0
  %1704 = vmatprep.mubr.f32.mxu0 0.0
  %1705 = vmatmul.mubr.f32.gmra.mxu0 %v1635
  %v1706 = vpop.f32.mrf.mxu0
  %v1707 = vadd.f32 0.0, %v1706
  %v1708 = vpop.f32.mrf.mxu0
  %1709 = vmatprep.mubr.f32.mxu0 0.0
  %1710 = vmatmul.mubr.f32.gmra.mxu0 %v1638
  %v1711 = vpop.f32.mrf.mxu0
  %v1712 = vadd.f32 0.0, %v1711
  %v1713 = vpop.f32.mrf.mxu0
  %1714 = vdwg.mxu0
  %v1715 = vld [vmem:[%s3 + $0x108] sm:$0xff]
  %v1716 = vld [vmem:[%s3 + $0x110] sm:$0xff]
  %v1717 = vld [vmem:[%s3 + $0x118] sm:$0xff]
  %v1718 = vld [vmem:[%s3 + $0x120] sm:$0xff]
  %1719 = vmatprep.subr.mxu0 0.0
  %1720 = vmatpush1.msra.mxu0 0.0
  %1721 = vmatprep.subr.mxu0 0.0
  %1722 = vmatpush1.msra.mxu0 0.0
  %1723 = vmatprep.subr.mxu0 0.0
  %1724 = vmatpush1.msra.mxu0 0.0
  %1725 = vmatprep.subr.mxu0 0.0
  %1726 = vmatpush1.msra.mxu0 0.0
  %1727 = vmatprep.subr.mxu0 0.0
  %1728 = vmatpush1.msra.mxu0 0.0
  %1729 = vmatprep.subr.mxu0 0.0
  %1730 = vmatpush1.msra.mxu0 0.0
  %1731 = vmatprep.subr.mxu0 0.0
  %1732 = vmatpush1.msra.mxu0 0.0
  %1733 = vmatprep.subr.mxu0 0.0
  %1734 = vmatpush1.msra.mxu0 0.0
  %1735 = vmatprep.subr.mxu0 0.0
  %1736 = vmatpush1.msra.mxu0 0.0
  %1737 = vmatprep.subr.mxu0 0.0
  %1738 = vmatpush1.msra.mxu0 0.0
  %1739 = vmatprep.subr.mxu0 0.0
  %1740 = vmatpush1.msra.mxu0 0.0
  %1741 = vmatprep.subr.mxu0 0.0
  %1742 = vmatpush1.msra.mxu0 0.0
  %1743 = vmatprep.subr.mxu0 0.0
  %1744 = vmatpush1.msra.mxu0 %v1718
  %1745 = vmatprep.subr.mxu0 0.0
  %1746 = vmatpush1.msra.mxu0 %v1717
  %1747 = vmatprep.subr.mxu0 0.0
  %1748 = vmatpush1.msra.mxu0 %v1716
  %1749 = vmatprep.subr.mxu0 0.0
  %1750 = vmatpush1.msra.mxu0 %v1715
  %1751 = vmatprep.subr.mxu0 0.0
  %1752 = vmatpush2.msra.mxu0 0.0
  %1753 = vmatprep.subr.mxu0 0.0
  %1754 = vmatpush2.msra.mxu0 0.0
  %1755 = vmatprep.subr.mxu0 0.0
  %1756 = vmatpush2.msra.mxu0 0.0
  %1757 = vmatprep.subr.mxu0 0.0
  %1758 = vmatpush2.msra.mxu0 0.0
  %1759 = vmatprep.subr.mxu0 0.0
  %1760 = vmatpush2.msra.mxu0 0.0
  %1761 = vmatprep.subr.mxu0 0.0
  %1762 = vmatpush2.msra.mxu0 0.0
  %1763 = vmatprep.subr.mxu0 0.0
  %1764 = vmatpush2.msra.mxu0 0.0
  %1765 = vmatprep.subr.mxu0 0.0
  %1766 = vmatpush2.msra.mxu0 0.0
  %1767 = vmatprep.subr.mxu0 0.0
  %1768 = vmatpush2.msra.mxu0 0.0
  %1769 = vmatprep.subr.mxu0 0.0
  %1770 = vmatpush2.msra.mxu0 0.0
  %1771 = vmatprep.subr.mxu0 0.0
  %1772 = vmatpush2.msra.mxu0 0.0
  %1773 = vmatprep.subr.mxu0 0.0
  %1774 = vmatpush2.msra.mxu0 0.0
  %1775 = vmatprep.subr.mxu0 0.0
  %1776 = vmatpush2.msra.mxu0 0.0
  %1777 = vmatprep.subr.mxu0 0.0
  %1778 = vmatpush2.msra.mxu0 0.0
  %1779 = vmatprep.subr.mxu0 0.0
  %1780 = vmatpush2.msra.mxu0 0.0
  %1781 = vmatprep.subr.mxu0 0.0
  %1782 = vmatpush2.msra.mxu0 0.0
  %1783 = vmatprep.mubr.f32.mxu0 0.0
  %1784 = vmatmul.mubr.f32.gmra.mxu0 %v1635
  %v1785 = vpop.f32.mrf.mxu0
  %v1786 = vadd.f32 0.0, %v1785
  %v1787 = vpop.f32.mrf.mxu0
  %1788 = vmatprep.mubr.f32.mxu0 0.0
  %1789 = vmatmul.mubr.f32.gmra.mxu0 %v1638
  %v1790 = vpop.f32.mrf.mxu0
  %v1791 = vadd.f32 0.0, %v1790
  %v1792 = vpop.f32.mrf.mxu0
  %1793 = vdwg.mxu0
  %v1794 = vld [vmem:[%s3 + $0x128] sm:$0xff]
  %1795 = vmatprep.subr.mxu0 0.0
  %1796 = vmatpush1.msra.mxu0 0.0
  %1797 = vmatprep.subr.mxu0 0.0
  %1798 = vmatpush1.msra.mxu0 0.0
  %1799 = vmatprep.subr.mxu0 0.0
  %1800 = vmatpush1.msra.mxu0 0.0
  %1801 = vmatprep.subr.mxu0 0.0
  %1802 = vmatpush1.msra.mxu0 0.0
  %1803 = vmatprep.subr.mxu0 0.0
  %1804 = vmatpush1.msra.mxu0 0.0
  %1805 = vmatprep.subr.mxu0 0.0
  %1806 = vmatpush1.msra.mxu0 0.0
  %1807 = vmatprep.subr.mxu0 0.0
  %1808 = vmatpush1.msra.mxu0 0.0
  %1809 = vmatprep.subr.mxu0 0.0
  %1810 = vmatpush1.msra.mxu0 0.0
  %1811 = vmatprep.subr.mxu0 0.0
  %1812 = vmatpush1.msra.mxu0 0.0
  %1813 = vmatprep.subr.mxu0 0.0
  %1814 = vmatpush1.msra.mxu0 0.0
  %1815 = vmatprep.subr.mxu0 0.0
  %1816 = vmatpush1.msra.mxu0 0.0
  %1817 = vmatprep.subr.mxu0 0.0
  %1818 = vmatpush1.msra.mxu0 %v1794
  %1819 = vmatprep.subr.mxu0 0.0
  %1820 = vmatpush1.msra.mxu0 %v1791
  %1821 = vmatprep.subr.mxu0 0.0
  %1822 = vmatpush1.msra.mxu0 %v1786
  %1823 = vmatprep.subr.mxu0 0.0
  %1824 = vmatpush1.msra.mxu0 %v1712
  %1825 = vmatprep.subr.mxu0 0.0
  %1826 = vmatpush1.msra.mxu0 %v1707
  %1827 = vmatprep.subr.mxu0 0.0
  %1828 = vmatpush2.msra.mxu0 0.0
  %1829 = vmatprep.subr.mxu0 0.0
  %1830 = vmatpush2.msra.mxu0 0.0
  %1831 = vmatprep.subr.mxu0 0.0
  %1832 = vmatpush2.msra.mxu0 0.0
  %1833 = vmatprep.subr.mxu0 0.0
  %1834 = vmatpush2.msra.mxu0 0.0
  %1835 = vmatprep.subr.mxu0 0.0
  %1836 = vmatpush2.msra.mxu0 0.0
  %1837 = vmatprep.subr.mxu0 0.0
  %1838 = vmatpush2.msra.mxu0 0.0
  %1839 = vmatprep.subr.mxu0 0.0
  %1840 = vmatpush2.msra.mxu0 0.0
  %1841 = vmatprep.subr.mxu0 0.0
  %1842 = vmatpush2.msra.mxu0 0.0
  %1843 = vmatprep.subr.mxu0 0.0
  %1844 = vmatpush2.msra.mxu0 0.0
  %1845 = vmatprep.subr.mxu0 0.0
  %1846 = vmatpush2.msra.mxu0 0.0
  %1847 = vmatprep.subr.mxu0 0.0
  %1848 = vmatpush2.msra.mxu0 0.0
  %1849 = vmatprep.subr.mxu0 0.0
  %1850 = vmatpush2.msra.mxu0 0.0
  %1851 = vmatprep.subr.mxu0 0.0
  %1852 = vmatpush2.msra.mxu0 0.0
  %1853 = vmatprep.subr.mxu0 0.0
  %1854 = vmatpush2.msra.mxu0 0.0
  %1855 = vmatprep.subr.mxu0 0.0
  %1856 = vmatpush2.msra.mxu0 0.0
  %1857 = vmatprep.subr.mxu0 0.0
  %1858 = vmatpush2.msra.mxu0 0.0
  %1859 = vmatprep.mubr.f32.mxu0 0.0
  %1860 = vmatmul.mubr.f32.gmra.mxu0 %v310
  %v1861 = vpop.f32.mrf.mxu0
  %v1862 = vadd.f32 0.0, %v1861
  %v1863 = vpop.f32.mrf.mxu0
  %1864 = vmatprep.mubr.f32.mxu0 0.0
  %1865 = vmatmul.mubr.f32.gmra.mxu0 %v313
  %v1866 = vpop.f32.mrf.mxu0
  %v1867 = vadd.f32 0.0, %v1866
  %v1868 = vpop.f32.mrf.mxu0
  %1869 = vmatprep.mubr.f32.mxu0 0.0
  %1870 = vmatmul.mubr.f32.gmra.mxu0 %v316
  %v1871 = vpop.f32.mrf.mxu0
  %v1872 = vadd.f32 0.0, %v1871
  %v1873 = vpop.f32.mrf.mxu0
  %1874 = vmatprep.mubr.f32.mxu0 0.0
  %1875 = vmatmul.mubr.f32.gmra.mxu0 %v319
  %v1876 = vpop.f32.mrf.mxu0
  %v1877 = vadd.f32 0.0, %v1876
  %v1878 = vpop.f32.mrf.mxu0
  %1879 = vmatprep.mubr.f32.mxu0 0.0
  %1880 = vmatmul.mubr.f32.gmra.mxu0 %v322
  %v1881 = vpop.f32.mrf.mxu0
  %v1882 = vadd.f32 0.0, %v1881
  %v1883 = vpop.f32.mrf.mxu0
  %1884 = vmatprep.mubr.f32.mxu0 0.0
  %1885 = vmatmul.mubr.f32.gmra.mxu0 %v325
  %v1886 = vpop.f32.mrf.mxu0
  %v1887 = vadd.f32 0.0, %v1886
  %v1888 = vpop.f32.mrf.mxu0
  %1889 = vmatprep.mubr.f32.mxu0 0.0
  %1890 = vmatmul.mubr.f32.gmra.mxu0 %v328
  %v1891 = vpop.f32.mrf.mxu0
  %v1892 = vadd.f32 0.0, %v1891
  %v1893 = vpop.f32.mrf.mxu0
  %1894 = vmatprep.mubr.f32.mxu0 0.0
  %1895 = vmatmul.mubr.f32.gmra.mxu0 %v331
  %v1896 = vpop.f32.mrf.mxu0
  %v1897 = vadd.f32 0.0, %v1896
  %v1898 = vpop.f32.mrf.mxu0
  %1899 = vmatprep.mubr.f32.mxu0 0.0
  %1900 = vmatmul.mubr.f32.gmra.mxu0 %v334
  %v1901 = vpop.f32.mrf.mxu0
  %v1902 = vadd.f32 0.0, %v1901
  %v1903 = vpop.f32.mrf.mxu0
  %1904 = vmatprep.mubr.f32.mxu0 0.0
  %1905 = vmatmul.mubr.f32.gmra.mxu0 %v337
  %v1906 = vpop.f32.mrf.mxu0
  %v1907 = vadd.f32 0.0, %v1906
  %v1908 = vpop.f32.mrf.mxu0
  %1909 = vmatprep.mubr.f32.mxu0 0.0
  %1910 = vmatmul.mubr.f32.gmra.mxu0 %v340
  %v1911 = vpop.f32.mrf.mxu0
  %v1912 = vadd.f32 0.0, %v1911
  %v1913 = vpop.f32.mrf.mxu0
  %1914 = vmatprep.mubr.f32.mxu0 0.0
  %1915 = vmatmul.mubr.f32.gmra.mxu0 %v343
  %v1916 = vpop.f32.mrf.mxu0
  %v1917 = vadd.f32 0.0, %v1916
  %v1918 = vpop.f32.mrf.mxu0
  %1919 = vmatprep.mubr.f32.mxu0 0.0
  %1920 = vmatmul.mubr.f32.gmra.mxu0 %v346
  %v1921 = vpop.f32.mrf.mxu0
  %v1922 = vadd.f32 0.0, %v1921
  %v1923 = vpop.f32.mrf.mxu0
  %1924 = vmatprep.mubr.f32.mxu0 0.0
  %1925 = vmatmul.mubr.f32.gmra.mxu0 %v349
  %v1926 = vpop.f32.mrf.mxu0
  %v1927 = vadd.f32 0.0, %v1926
  %v1928 = vpop.f32.mrf.mxu0
  %1929 = vmatprep.mubr.f32.mxu0 0.0
  %1930 = vmatmul.mubr.f32.gmra.mxu0 %v352
  %v1931 = vpop.f32.mrf.mxu0
  %v1932 = vadd.f32 0.0, %v1931
  %v1933 = vpop.f32.mrf.mxu0
  %1934 = vmatprep.mubr.f32.mxu0 0.0
  %1935 = vmatmul.mubr.f32.gmra.mxu0 %v355
  %v1936 = vpop.f32.mrf.mxu0
  %v1937 = vadd.f32 0.0, %v1936
  %v1938 = vpop.f32.mrf.mxu0
  %1939 = vmatprep.mubr.f32.mxu0 0.0
  %1940 = vmatmul.mubr.f32.gmra.mxu0 %v358
  %v1941 = vpop.f32.mrf.mxu0
  %v1942 = vadd.f32 0.0, %v1941
  %v1943 = vpop.f32.mrf.mxu0
  %1944 = vmatprep.mubr.f32.mxu0 0.0
  %1945 = vmatmul.mubr.f32.gmra.mxu0 %v361
  %v1946 = vpop.f32.mrf.mxu0
  %v1947 = vadd.f32 0.0, %v1946
  %v1948 = vpop.f32.mrf.mxu0
  %1949 = vmatprep.mubr.f32.mxu0 0.0
  %1950 = vmatmul.mubr.f32.gmra.mxu0 %v364
  %v1951 = vpop.f32.mrf.mxu0
  %v1952 = vadd.f32 0.0, %v1951
  %v1953 = vpop.f32.mrf.mxu0
  %1954 = vmatprep.mubr.f32.mxu0 0.0
  %1955 = vmatmul.mubr.f32.gmra.mxu0 %v367
  %v1956 = vpop.f32.mrf.mxu0
  %v1957 = vadd.f32 0.0, %v1956
  %v1958 = vpop.f32.mrf.mxu0
  %1959 = vmatprep.mubr.f32.mxu0 0.0
  %1960 = vmatmul.mubr.f32.gmra.mxu0 %v370
  %v1961 = vpop.f32.mrf.mxu0
  %v1962 = vadd.f32 0.0, %v1961
  %v1963 = vpop.f32.mrf.mxu0
  %1964 = vmatprep.mubr.f32.mxu0 0.0
  %1965 = vmatmul.mubr.f32.gmra.mxu0 %v373
  %v1966 = vpop.f32.mrf.mxu0
  %v1967 = vadd.f32 0.0, %v1966
  %v1968 = vpop.f32.mrf.mxu0
  %1969 = vmatprep.mubr.f32.mxu0 0.0
  %1970 = vmatmul.mubr.f32.gmra.mxu0 %v376
  %v1971 = vpop.f32.mrf.mxu0
  %v1972 = vadd.f32 0.0, %v1971
  %v1973 = vpop.f32.mrf.mxu0
  %1974 = vmatprep.mubr.f32.mxu0 0.0
  %1975 = vmatmul.mubr.f32.gmra.mxu0 %v379
  %v1976 = vpop.f32.mrf.mxu0
  %v1977 = vadd.f32 0.0, %v1976
  %v1978 = vpop.f32.mrf.mxu0
  %1979 = vmatprep.mubr.f32.mxu0 0.0
  %1980 = vmatmul.mubr.f32.gmra.mxu0 %v382
  %v1981 = vpop.f32.mrf.mxu0
  %v1982 = vadd.f32 0.0, %v1981
  %v1983 = vpop.f32.mrf.mxu0
  %1984 = vmatprep.mubr.f32.mxu0 0.0
  %1985 = vmatmul.mubr.f32.gmra.mxu0 %v385
  %v1986 = vpop.f32.mrf.mxu0
  %v1987 = vadd.f32 0.0, %v1986
  %v1988 = vpop.f32.mrf.mxu0
  %1989 = vmatprep.mubr.f32.mxu0 0.0
  %1990 = vmatmul.mubr.f32.gmra.mxu0 %v388
  %v1991 = vpop.f32.mrf.mxu0
  %v1992 = vadd.f32 0.0, %v1991
  %v1993 = vpop.f32.mrf.mxu0
  %1994 = vmatprep.mubr.f32.mxu0 0.0
  %1995 = vmatmul.mubr.f32.gmra.mxu0 %v391
  %v1996 = vpop.f32.mrf.mxu0
  %v1997 = vadd.f32 0.0, %v1996
  %v1998 = vpop.f32.mrf.mxu0
  %1999 = vmatprep.mubr.f32.mxu0 0.0
  %2000 = vmatmul.mubr.f32.gmra.mxu0 %v394
  %v2001 = vpop.f32.mrf.mxu0
  %v2002 = vadd.f32 0.0, %v2001
  %v2003 = vpop.f32.mrf.mxu0
  %2004 = vmatprep.mubr.f32.mxu0 0.0
  %2005 = vmatmul.mubr.f32.gmra.mxu0 %v397
  %v2006 = vpop.f32.mrf.mxu0
  %v2007 = vadd.f32 0.0, %v2006
  %v2008 = vpop.f32.mrf.mxu0
  %2009 = vmatprep.mubr.f32.mxu0 0.0
  %2010 = vmatmul.mubr.f32.gmra.mxu0 %v400
  %v2011 = vpop.f32.mrf.mxu0
  %v2012 = vadd.f32 0.0, %v2011
  %v2013 = vpop.f32.mrf.mxu0
  %2014 = vmatprep.mubr.f32.mxu0 0.0
  %2015 = vmatmul.mubr.f32.gmra.mxu0 %v403
  %v2016 = vpop.f32.mrf.mxu0
  %v2017 = vadd.f32 0.0, %v2016
  %v2018 = vpop.f32.mrf.mxu0
  %2019 = vdwg.mxu0
  %v2020 = vmul.f32 %v1862, 0.5
  %v2021 = vmul.f32 %v1867, 0.5
  %v2022 = vmul.f32 %v1872, 0.5
  %v2023 = vmul.f32 %v1877, 0.5
  %v2024 = vmul.f32 %v1882, 0.5
  %v2025 = vmul.f32 %v1887, 0.5
  %v2026 = vmul.f32 %v1892, 0.5
  %v2027 = vmul.f32 %v1897, 0.5
  %v2028 = vmul.f32 %v1902, 0.5
  %v2029 = vmul.f32 %v1907, 0.5
  %v2030 = vmul.f32 %v1912, 0.5
  %v2031 = vmul.f32 %v1917, 0.5
  %v2032 = vmul.f32 %v1922, 0.5
  %v2033 = vmul.f32 %v1927, 0.5
  %v2034 = vmul.f32 %v1932, 0.5
  %v2035 = vmul.f32 %v1937, 0.5
  %v2036 = vmul.f32 %v1942, 0.5
  %v2037 = vmul.f32 %v1947, 0.5
  %v2038 = vmul.f32 %v1952, 0.5
  %v2039 = vmul.f32 %v1957, 0.5
  %v2040 = vmul.f32 %v1962, 0.5
  %v2041 = vmul.f32 %v1967, 0.5
  %v2042 = vmul.f32 %v1972, 0.5
  %v2043 = vmul.f32 %v1977, 0.5
  %v2044 = vmul.f32 %v1982, 0.5
  %v2045 = vmul.f32 %v1987, 0.5
  %v2046 = vmul.f32 %v1992, 0.5
  %v2047 = vmul.f32 %v1997, 0.5
  %v2048 = vmul.f32 %v2002, 0.5
  %v2049 = vmul.f32 %v2007, 0.5
  %v2050 = vmul.f32 %v2012, 0.5
  %v2051 = vmul.f32 %v2017, 0.5
  %v2052 = vtanh.pop %v2020
  %v2053 = vtanh.pop %v2021
  %v2054 = vtanh.pop %v2022
  %v2055 = vtanh.pop %v2023
  %v2056 = vtanh.pop %v2024
  %v2057 = vtanh.pop %v2025
  %v2058 = vtanh.pop %v2026
  %v2059 = vtanh.pop %v2027
  %v2060 = vtanh.pop %v2028
  %v2061 = vtanh.pop %v2029
  %v2062 = vtanh.pop %v2030
  %v2063 = vtanh.pop %v2031
  %v2064 = vtanh.pop %v2032
  %v2065 = vtanh.pop %v2033
  %v2066 = vtanh.pop %v2034
  %v2067 = vtanh.pop %v2035
  %v2068 = vtanh.pop %v2036
  %v2069 = vtanh.pop %v2037
  %v2070 = vtanh.pop %v2038
  %v2071 = vtanh.pop %v2039
  %v2072 = vtanh.pop %v2040
  %v2073 = vtanh.pop %v2041
  %v2074 = vtanh.pop %v2042
  %v2075 = vtanh.pop %v2043
  %v2076 = vtanh.pop %v2044
  %v2077 = vtanh.pop %v2045
  %v2078 = vtanh.pop %v2046
  %v2079 = vtanh.pop %v2047
  %v2080 = vtanh.pop %v2048
  %v2081 = vtanh.pop %v2049
  %v2082 = vtanh.pop %v2050
  %v2083 = vtanh.pop %v2051
  %v2084 = vmul.f32 %v2052, 0.5
  %v2085 = vmul.f32 %v2053, 0.5
  %v2086 = vmul.f32 %v2054, 0.5
  %v2087 = vmul.f32 %v2055, 0.5
  %v2088 = vmul.f32 %v2056, 0.5
  %v2089 = vmul.f32 %v2057, 0.5
  %v2090 = vmul.f32 %v2058, 0.5
  %v2091 = vmul.f32 %v2059, 0.5
  %v2092 = vmul.f32 %v2060, 0.5
  %v2093 = vmul.f32 %v2061, 0.5
  %v2094 = vmul.f32 %v2062, 0.5
  %v2095 = vmul.f32 %v2063, 0.5
  %v2096 = vmul.f32 %v2064, 0.5
  %v2097 = vmul.f32 %v2065, 0.5
  %v2098 = vmul.f32 %v2066, 0.5
  %v2099 = vmul.f32 %v2067, 0.5
  %v2100 = vmul.f32 %v2068, 0.5
  %v2101 = vmul.f32 %v2069, 0.5
  %v2102 = vmul.f32 %v2070, 0.5
  %v2103 = vmul.f32 %v2071, 0.5
  %v2104 = vmul.f32 %v2072, 0.5
  %v2105 = vmul.f32 %v2073, 0.5
  %v2106 = vmul.f32 %v2074, 0.5
  %v2107 = vmul.f32 %v2075, 0.5
  %v2108 = vmul.f32 %v2076, 0.5
  %v2109 = vmul.f32 %v2077, 0.5
  %v2110 = vmul.f32 %v2078, 0.5
  %v2111 = vmul.f32 %v2079, 0.5
  %v2112 = vmul.f32 %v2080, 0.5
  %v2113 = vmul.f32 %v2081, 0.5
  %v2114 = vmul.f32 %v2082, 0.5
  %v2115 = vmul.f32 %v2083, 0.5
  %v2116 = vadd.f32 %v2084, 0.5
  %v2117 = vadd.f32 %v2085, 0.5
  %v2118 = vadd.f32 %v2086, 0.5
  %v2119 = vadd.f32 %v2087, 0.5
  %v2120 = vadd.f32 %v2088, 0.5
  %v2121 = vadd.f32 %v2089, 0.5
  %v2122 = vadd.f32 %v2090, 0.5
  %v2123 = vadd.f32 %v2091, 0.5
  %v2124 = vadd.f32 %v2092, 0.5
  %v2125 = vadd.f32 %v2093, 0.5
  %v2126 = vadd.f32 %v2094, 0.5
  %v2127 = vadd.f32 %v2095, 0.5
  %v2128 = vadd.f32 %v2096, 0.5
  %v2129 = vadd.f32 %v2097, 0.5
  %v2130 = vadd.f32 %v2098, 0.5
  %v2131 = vadd.f32 %v2099, 0.5
  %v2132 = vadd.f32 %v2100, 0.5
  %v2133 = vadd.f32 %v2101, 0.5
  %v2134 = vadd.f32 %v2102, 0.5
  %v2135 = vadd.f32 %v2103, 0.5
  %v2136 = vadd.f32 %v2104, 0.5
  %v2137 = vadd.f32 %v2105, 0.5
  %v2138 = vadd.f32 %v2106, 0.5
  %v2139 = vadd.f32 %v2107, 0.5
  %v2140 = vadd.f32 %v2108, 0.5
  %v2141 = vadd.f32 %v2109, 0.5
  %v2142 = vadd.f32 %v2110, 0.5
  %v2143 = vadd.f32 %v2111, 0.5
  %v2144 = vadd.f32 %v2112, 0.5
  %v2145 = vadd.f32 %v2113, 0.5
  %v2146 = vadd.f32 %v2114, 0.5
  %v2147 = vadd.f32 %v2115, 0.5
  %v2148 = vmul.f32 %v1862, %v2116
  %v2149 = vmul.f32 %v1867, %v2117
  %v2150 = vmul.f32 %v1872, %v2118
  %v2151 = vmul.f32 %v1877, %v2119
  %v2152 = vmul.f32 %v1882, %v2120
  %v2153 = vmul.f32 %v1887, %v2121
  %v2154 = vmul.f32 %v1892, %v2122
  %v2155 = vmul.f32 %v1897, %v2123
  %v2156 = vmul.f32 %v1902, %v2124
  %v2157 = vmul.f32 %v1907, %v2125
  %v2158 = vmul.f32 %v1912, %v2126
  %v2159 = vmul.f32 %v1917, %v2127
  %v2160 = vmul.f32 %v1922, %v2128
  %v2161 = vmul.f32 %v1927, %v2129
  %v2162 = vmul.f32 %v1932, %v2130
  %v2163 = vmul.f32 %v1937, %v2131
  %v2164 = vmul.f32 %v1942, %v2132
  %v2165 = vmul.f32 %v1947, %v2133
  %v2166 = vmul.f32 %v1952, %v2134
  %v2167 = vmul.f32 %v1957, %v2135
  %v2168 = vmul.f32 %v1962, %v2136
  %v2169 = vmul.f32 %v1967, %v2137
  %v2170 = vmul.f32 %v1972, %v2138
  %v2171 = vmul.f32 %v1977, %v2139
  %v2172 = vmul.f32 %v1982, %v2140
  %v2173 = vmul.f32 %v1987, %v2141
  %v2174 = vmul.f32 %v1992, %v2142
  %v2175 = vmul.f32 %v1997, %v2143
  %v2176 = vmul.f32 %v2002, %v2144
  %v2177 = vmul.f32 %v2007, %v2145
  %v2178 = vmul.f32 %v2012, %v2146
  %v2179 = vmul.f32 %v2017, %v2147
  %v2180 = vld [vmem:[%s3 + $0x130] sm:$0xff]
  %v2181 = vld [vmem:[%s3 + $0x138] sm:$0xff]
  %v2182 = vld [vmem:[%s3 + $0x140] sm:$0xff]
  %v2183 = vld [vmem:[%s3 + $0x148] sm:$0xff]
  %v2184 = vld [vmem:[%s3 + $0x150] sm:$0x1]
  %v2185 = vlaneseq
  %v2186 = vshrl.u32 %v2185, 7
  %v2187 = vsub.s32 0, %v2186
  %v2188 = vrot.slane %v2184, %v2187
  %v2190 = vsel %vm146, %v2148, 0
  %v2193 = vsel %vm146, %v2149, 0
  %v2196 = vsel %vm146, %v2150, 0
  %v2199 = vsel %vm146, %v2151, 0
  %v2202 = vsel %vm146, %v2152, 0
  %v2205 = vsel %vm146, %v2153, 0
  %v2208 = vsel %vm146, %v2154, 0
  %v2211 = vsel %vm146, %v2155, 0
  %v2214 = vsel %vm146, %v2156, 0
  %v2217 = vsel %vm146, %v2157, 0
  %v2220 = vsel %vm146, %v2158, 0
  %v2223 = vsel %vm146, %v2159, 0
  %v2226 = vsel %vm146, %v2160, 0
  %v2229 = vsel %vm146, %v2161, 0
  %v2232 = vsel %vm146, %v2162, 0
  %v2235 = vsel %vm146, %v2163, 0
  %v2238 = vsel %vm146, %v2164, 0
  %v2241 = vsel %vm146, %v2165, 0
  %v2244 = vsel %vm146, %v2166, 0
  %v2247 = vsel %vm146, %v2167, 0
  %v2250 = vsel %vm146, %v2168, 0
  %v2253 = vsel %vm146, %v2169, 0
  %v2256 = vsel %vm146, %v2170, 0
  %v2259 = vsel %vm146, %v2171, 0
  %v2262 = vsel %vm146, %v2172, 0
  %v2265 = vsel %vm146, %v2173, 0
  %v2268 = vsel %vm146, %v2174, 0
  %v2271 = vsel %vm146, %v2175, 0
  %v2274 = vsel %vm146, %v2176, 0
  %v2277 = vsel %vm146, %v2177, 0
  %v2280 = vsel %vm146, %v2178, 0
  %v2283 = vsel %vm146, %v2179, 0
  %2285 = vmatprep.subr.mxu0 0.0
  %2286 = vmatpush1.msra.mxu0 0.0
  %2287 = vmatprep.subr.mxu0 0.0
  %2288 = vmatpush1.msra.mxu0 0.0
  %2289 = vmatprep.subr.mxu0 0.0
  %2290 = vmatpush1.msra.mxu0 0.0
  %2291 = vmatprep.subr.mxu0 0.0
  %2292 = vmatpush1.msra.mxu0 0.0
  %2293 = vmatprep.subr.mxu0 0.0
  %2294 = vmatpush1.msra.mxu0 0.0
  %2295 = vmatprep.subr.mxu0 0.0
  %2296 = vmatpush1.msra.mxu0 0.0
  %2297 = vmatprep.subr.mxu0 0.0
  %2298 = vmatpush1.msra.mxu0 0.0
  %2299 = vmatprep.subr.mxu0 0.0
  %2300 = vmatpush1.msra.mxu0 0.0
  %2301 = vmatprep.subr.mxu0 0.0
  %2302 = vmatpush1.msra.mxu0 0.0
  %2303 = vmatprep.subr.mxu0 0.0
  %2304 = vmatpush1.msra.mxu0 0.0
  %2305 = vmatprep.subr.mxu0 0.0
  %2306 = vmatpush1.msra.mxu0 0.0
  %2307 = vmatprep.subr.mxu0 0.0
  %2308 = vmatpush1.msra.mxu0 0.0
  %2309 = vmatprep.subr.mxu0 0.0
  %2310 = vmatpush1.msra.mxu0 %v2183
  %2311 = vmatprep.subr.mxu0 0.0
  %2312 = vmatpush1.msra.mxu0 %v2182
  %2313 = vmatprep.subr.mxu0 0.0
  %2314 = vmatpush1.msra.mxu0 %v2181
  %2315 = vmatprep.subr.mxu0 0.0
  %2316 = vmatpush1.msra.mxu0 %v2180
  %2317 = vmatprep.subr.mxu0 0.0
  %2318 = vmatpush2.msra.mxu0 0.0
  %2319 = vmatprep.subr.mxu0 0.0
  %2320 = vmatpush2.msra.mxu0 0.0
  %2321 = vmatprep.subr.mxu0 0.0
  %2322 = vmatpush2.msra.mxu0 0.0
  %2323 = vmatprep.subr.mxu0 0.0
  %2324 = vmatpush2.msra.mxu0 0.0
  %2325 = vmatprep.subr.mxu0 0.0
  %2326 = vmatpush2.msra.mxu0 0.0
  %2327 = vmatprep.subr.mxu0 0.0
  %2328 = vmatpush2.msra.mxu0 0.0
  %2329 = vmatprep.subr.mxu0 0.0
  %2330 = vmatpush2.msra.mxu0 0.0
  %2331 = vmatprep.subr.mxu0 0.0
  %2332 = vmatpush2.msra.mxu0 0.0
  %2333 = vmatprep.subr.mxu0 0.0
  %2334 = vmatpush2.msra.mxu0 0.0
  %2335 = vmatprep.subr.mxu0 0.0
  %2336 = vmatpush2.msra.mxu0 0.0
  %2337 = vmatprep.subr.mxu0 0.0
  %2338 = vmatpush2.msra.mxu0 0.0
  %2339 = vmatprep.subr.mxu0 0.0
  %2340 = vmatpush2.msra.mxu0 0.0
  %2341 = vmatprep.subr.mxu0 0.0
  %2342 = vmatpush2.msra.mxu0 0.0
  %2343 = vmatprep.subr.mxu0 0.0
  %2344 = vmatpush2.msra.mxu0 0.0
  %2345 = vmatprep.subr.mxu0 0.0
  %2346 = vmatpush2.msra.mxu0 0.0
  %2347 = vmatprep.subr.mxu0 0.0
  %2348 = vmatpush2.msra.mxu0 0.0
  %2349 = vmatprep.mubr.f32.mxu0 0.0
  %2350 = vmatmul.mubr.f32.gmra.mxu0 %v2190
  %v2351 = vpop.f32.mrf.mxu0
  %v2352 = vadd.f32 %v2188, %v2351
  %v2353 = vpop.f32.mrf.mxu0
  %2354 = vmatprep.mubr.f32.mxu0 0.0
  %2355 = vmatmul.mubr.f32.gmra.mxu0 %v2193
  %v2356 = vpop.f32.mrf.mxu0
  %v2357 = vadd.f32 %v2188, %v2356
  %v2358 = vpop.f32.mrf.mxu0
  %2359 = vmatprep.mubr.f32.mxu0 0.0
  %2360 = vmatmul.mubr.f32.gmra.mxu0 %v2196
  %v2361 = vpop.f32.mrf.mxu0
  %v2362 = vadd.f32 %v2188, %v2361
  %v2363 = vpop.f32.mrf.mxu0
  %2364 = vmatprep.mubr.f32.mxu0 0.0
  %2365 = vmatmul.mubr.f32.gmra.mxu0 %v2199
  %v2366 = vpop.f32.mrf.mxu0
  %v2367 = vadd.f32 %v2188, %v2366
  %v2368 = vpop.f32.mrf.mxu0
  %2369 = vmatprep.mubr.f32.mxu0 0.0
  %2370 = vmatmul.mubr.f32.gmra.mxu0 %v2202
  %v2371 = vpop.f32.mrf.mxu0
  %v2372 = vadd.f32 %v2188, %v2371
  %v2373 = vpop.f32.mrf.mxu0
  %2374 = vmatprep.mubr.f32.mxu0 0.0
  %2375 = vmatmul.mubr.f32.gmra.mxu0 %v2205
  %v2376 = vpop.f32.mrf.mxu0
  %v2377 = vadd.f32 %v2188, %v2376
  %v2378 = vpop.f32.mrf.mxu0
  %2379 = vmatprep.mubr.f32.mxu0 0.0
  %2380 = vmatmul.mubr.f32.gmra.mxu0 %v2208
  %v2381 = vpop.f32.mrf.mxu0
  %v2382 = vadd.f32 %v2188, %v2381
  %v2383 = vpop.f32.mrf.mxu0
  %2384 = vmatprep.mubr.f32.mxu0 0.0
  %2385 = vmatmul.mubr.f32.gmra.mxu0 %v2211
  %v2386 = vpop.f32.mrf.mxu0
  %v2387 = vadd.f32 %v2188, %v2386
  %v2388 = vpop.f32.mrf.mxu0
  %2389 = vmatprep.mubr.f32.mxu0 0.0
  %2390 = vmatmul.mubr.f32.gmra.mxu0 %v2214
  %v2391 = vpop.f32.mrf.mxu0
  %v2392 = vadd.f32 %v2188, %v2391
  %v2393 = vpop.f32.mrf.mxu0
  %2394 = vmatprep.mubr.f32.mxu0 0.0
  %2395 = vmatmul.mubr.f32.gmra.mxu0 %v2217
  %v2396 = vpop.f32.mrf.mxu0
  %v2397 = vadd.f32 %v2188, %v2396
  %v2398 = vpop.f32.mrf.mxu0
  %2399 = vmatprep.mubr.f32.mxu0 0.0
  %2400 = vmatmul.mubr.f32.gmra.mxu0 %v2220
  %v2401 = vpop.f32.mrf.mxu0
  %v2402 = vadd.f32 %v2188, %v2401
  %v2403 = vpop.f32.mrf.mxu0
  %2404 = vmatprep.mubr.f32.mxu0 0.0
  %2405 = vmatmul.mubr.f32.gmra.mxu0 %v2223
  %v2406 = vpop.f32.mrf.mxu0
  %v2407 = vadd.f32 %v2188, %v2406
  %v2408 = vpop.f32.mrf.mxu0
  %2409 = vmatprep.mubr.f32.mxu0 0.0
  %2410 = vmatmul.mubr.f32.gmra.mxu0 %v2226
  %v2411 = vpop.f32.mrf.mxu0
  %v2412 = vadd.f32 %v2188, %v2411
  %v2413 = vpop.f32.mrf.mxu0
  %2414 = vmatprep.mubr.f32.mxu0 0.0
  %2415 = vmatmul.mubr.f32.gmra.mxu0 %v2229
  %v2416 = vpop.f32.mrf.mxu0
  %v2417 = vadd.f32 %v2188, %v2416
  %v2418 = vpop.f32.mrf.mxu0
  %2419 = vmatprep.mubr.f32.mxu0 0.0
  %2420 = vmatmul.mubr.f32.gmra.mxu0 %v2232
  %v2421 = vpop.f32.mrf.mxu0
  %v2422 = vadd.f32 %v2188, %v2421
  %v2423 = vpop.f32.mrf.mxu0
  %2424 = vmatprep.mubr.f32.mxu0 0.0
  %2425 = vmatmul.mubr.f32.gmra.mxu0 %v2235
  %v2426 = vpop.f32.mrf.mxu0
  %v2427 = vadd.f32 %v2188, %v2426
  %v2428 = vpop.f32.mrf.mxu0
  %2429 = vmatprep.mubr.f32.mxu0 0.0
  %2430 = vmatmul.mubr.f32.gmra.mxu0 %v2238
  %v2431 = vpop.f32.mrf.mxu0
  %v2432 = vadd.f32 %v2188, %v2431
  %v2433 = vpop.f32.mrf.mxu0
  %2434 = vmatprep.mubr.f32.mxu0 0.0
  %2435 = vmatmul.mubr.f32.gmra.mxu0 %v2241
  %v2436 = vpop.f32.mrf.mxu0
  %v2437 = vadd.f32 %v2188, %v2436
  %v2438 = vpop.f32.mrf.mxu0
  %2439 = vmatprep.mubr.f32.mxu0 0.0
  %2440 = vmatmul.mubr.f32.gmra.mxu0 %v2244
  %v2441 = vpop.f32.mrf.mxu0
  %v2442 = vadd.f32 %v2188, %v2441
  %v2443 = vpop.f32.mrf.mxu0
  %2444 = vmatprep.mubr.f32.mxu0 0.0
  %2445 = vmatmul.mubr.f32.gmra.mxu0 %v2247
  %v2446 = vpop.f32.mrf.mxu0
  %v2447 = vadd.f32 %v2188, %v2446
  %v2448 = vpop.f32.mrf.mxu0
  %2449 = vmatprep.mubr.f32.mxu0 0.0
  %2450 = vmatmul.mubr.f32.gmra.mxu0 %v2250
  %v2451 = vpop.f32.mrf.mxu0
  %v2452 = vadd.f32 %v2188, %v2451
  %v2453 = vpop.f32.mrf.mxu0
  %2454 = vmatprep.mubr.f32.mxu0 0.0
  %2455 = vmatmul.mubr.f32.gmra.mxu0 %v2253
  %v2456 = vpop.f32.mrf.mxu0
  %v2457 = vadd.f32 %v2188, %v2456
  %v2458 = vpop.f32.mrf.mxu0
  %2459 = vmatprep.mubr.f32.mxu0 0.0
  %2460 = vmatmul.mubr.f32.gmra.mxu0 %v2256
  %v2461 = vpop.f32.mrf.mxu0
  %v2462 = vadd.f32 %v2188, %v2461
  %v2463 = vpop.f32.mrf.mxu0
  %2464 = vmatprep.mubr.f32.mxu0 0.0
  %2465 = vmatmul.mubr.f32.gmra.mxu0 %v2259
  %v2466 = vpop.f32.mrf.mxu0
  %v2467 = vadd.f32 %v2188, %v2466
  %v2468 = vpop.f32.mrf.mxu0
  %2469 = vmatprep.mubr.f32.mxu0 0.0
  %2470 = vmatmul.mubr.f32.gmra.mxu0 %v2262
  %v2471 = vpop.f32.mrf.mxu0
  %v2472 = vadd.f32 %v2188, %v2471
  %v2473 = vpop.f32.mrf.mxu0
  %2474 = vmatprep.mubr.f32.mxu0 0.0
  %2475 = vmatmul.mubr.f32.gmra.mxu0 %v2265
  %v2476 = vpop.f32.mrf.mxu0
  %v2477 = vadd.f32 %v2188, %v2476
  %v2478 = vpop.f32.mrf.mxu0
  %2479 = vmatprep.mubr.f32.mxu0 0.0
  %2480 = vmatmul.mubr.f32.gmra.mxu0 %v2268
  %v2481 = vpop.f32.mrf.mxu0
  %v2482 = vadd.f32 %v2188, %v2481
  %v2483 = vpop.f32.mrf.mxu0
  %2484 = vmatprep.mubr.f32.mxu0 0.0
  %2485 = vmatmul.mubr.f32.gmra.mxu0 %v2271
  %v2486 = vpop.f32.mrf.mxu0
  %v2487 = vadd.f32 %v2188, %v2486
  %v2488 = vpop.f32.mrf.mxu0
  %2489 = vmatprep.mubr.f32.mxu0 0.0
  %2490 = vmatmul.mubr.f32.gmra.mxu0 %v2274
  %v2491 = vpop.f32.mrf.mxu0
  %v2492 = vadd.f32 %v2188, %v2491
  %v2493 = vpop.f32.mrf.mxu0
  %2494 = vmatprep.mubr.f32.mxu0 0.0
  %2495 = vmatmul.mubr.f32.gmra.mxu0 %v2277
  %v2496 = vpop.f32.mrf.mxu0
  %v2497 = vadd.f32 %v2188, %v2496
  %v2498 = vpop.f32.mrf.mxu0
  %2499 = vmatprep.mubr.f32.mxu0 0.0
  %2500 = vmatmul.mubr.f32.gmra.mxu0 %v2280
  %v2501 = vpop.f32.mrf.mxu0
  %v2502 = vadd.f32 %v2188, %v2501
  %v2503 = vpop.f32.mrf.mxu0
  %2504 = vmatprep.mubr.f32.mxu0 0.0
  %2505 = vmatmul.mubr.f32.gmra.mxu0 %v2283
  %v2506 = vpop.f32.mrf.mxu0
  %v2507 = vadd.f32 %v2188, %v2506
  %v2508 = vpop.f32.mrf.mxu0
  %2509 = vdwg.mxu0
  %v2510 = vmul.f32 %v2352, 0.5
  %v2511 = vmul.f32 %v2357, 0.5
  %v2512 = vmul.f32 %v2362, 0.5
  %v2513 = vmul.f32 %v2367, 0.5
  %v2514 = vmul.f32 %v2372, 0.5
  %v2515 = vmul.f32 %v2377, 0.5
  %v2516 = vmul.f32 %v2382, 0.5
  %v2517 = vmul.f32 %v2387, 0.5
  %v2518 = vmul.f32 %v2392, 0.5
  %v2519 = vmul.f32 %v2397, 0.5
  %v2520 = vmul.f32 %v2402, 0.5
  %v2521 = vmul.f32 %v2407, 0.5
  %v2522 = vmul.f32 %v2412, 0.5
  %v2523 = vmul.f32 %v2417, 0.5
  %v2524 = vmul.f32 %v2422, 0.5
  %v2525 = vmul.f32 %v2427, 0.5
  %v2526 = vmul.f32 %v2432, 0.5
  %v2527 = vmul.f32 %v2437, 0.5
  %v2528 = vmul.f32 %v2442, 0.5
  %v2529 = vmul.f32 %v2447, 0.5
  %v2530 = vmul.f32 %v2452, 0.5
  %v2531 = vmul.f32 %v2457, 0.5
  %v2532 = vmul.f32 %v2462, 0.5
  %v2533 = vmul.f32 %v2467, 0.5
  %v2534 = vmul.f32 %v2472, 0.5
  %v2535 = vmul.f32 %v2477, 0.5
  %v2536 = vmul.f32 %v2482, 0.5
  %v2537 = vmul.f32 %v2487, 0.5
  %v2538 = vmul.f32 %v2492, 0.5
  %v2539 = vmul.f32 %v2497, 0.5
  %v2540 = vmul.f32 %v2502, 0.5
  %v2541 = vmul.f32 %v2507, 0.5
  %v2542 = vtanh.pop %v2510
  %v2543 = vtanh.pop %v2511
  %v2544 = vtanh.pop %v2512
  %v2545 = vtanh.pop %v2513
  %v2546 = vtanh.pop %v2514
  %v2547 = vtanh.pop %v2515
  %v2548 = vtanh.pop %v2516
  %v2549 = vtanh.pop %v2517
  %v2550 = vtanh.pop %v2518
  %v2551 = vtanh.pop %v2519
  %v2552 = vtanh.pop %v2520
  %v2553 = vtanh.pop %v2521
  %v2554 = vtanh.pop %v2522
  %v2555 = vtanh.pop %v2523
  %v2556 = vtanh.pop %v2524
  %v2557 = vtanh.pop %v2525
  %v2558 = vtanh.pop %v2526
  %v2559 = vtanh.pop %v2527
  %v2560 = vtanh.pop %v2528
  %v2561 = vtanh.pop %v2529
  %v2562 = vtanh.pop %v2530
  %v2563 = vtanh.pop %v2531
  %v2564 = vtanh.pop %v2532
  %v2565 = vtanh.pop %v2533
  %v2566 = vtanh.pop %v2534
  %v2567 = vtanh.pop %v2535
  %v2568 = vtanh.pop %v2536
  %v2569 = vtanh.pop %v2537
  %v2570 = vtanh.pop %v2538
  %v2571 = vtanh.pop %v2539
  %v2572 = vtanh.pop %v2540
  %v2573 = vtanh.pop %v2541
  %v2574 = vmul.f32 %v2542, 0.5
  %v2575 = vmul.f32 %v2543, 0.5
  %v2576 = vmul.f32 %v2544, 0.5
  %v2577 = vmul.f32 %v2545, 0.5
  %v2578 = vmul.f32 %v2546, 0.5
  %v2579 = vmul.f32 %v2547, 0.5
  %v2580 = vmul.f32 %v2548, 0.5
  %v2581 = vmul.f32 %v2549, 0.5
  %v2582 = vmul.f32 %v2550, 0.5
  %v2583 = vmul.f32 %v2551, 0.5
  %v2584 = vmul.f32 %v2552, 0.5
  %v2585 = vmul.f32 %v2553, 0.5
  %v2586 = vmul.f32 %v2554, 0.5
  %v2587 = vmul.f32 %v2555, 0.5
  %v2588 = vmul.f32 %v2556, 0.5
  %v2589 = vmul.f32 %v2557, 0.5
  %v2590 = vmul.f32 %v2558, 0.5
  %v2591 = vmul.f32 %v2559, 0.5
  %v2592 = vmul.f32 %v2560, 0.5
  %v2593 = vmul.f32 %v2561, 0.5
  %v2594 = vmul.f32 %v2562, 0.5
  %v2595 = vmul.f32 %v2563, 0.5
  %v2596 = vmul.f32 %v2564, 0.5
  %v2597 = vmul.f32 %v2565, 0.5
  %v2598 = vmul.f32 %v2566, 0.5
  %v2599 = vmul.f32 %v2567, 0.5
  %v2600 = vmul.f32 %v2568, 0.5
  %v2601 = vmul.f32 %v2569, 0.5
  %v2602 = vmul.f32 %v2570, 0.5
  %v2603 = vmul.f32 %v2571, 0.5
  %v2604 = vmul.f32 %v2572, 0.5
  %v2605 = vmul.f32 %v2573, 0.5
  %v2606 = vadd.f32 %v2574, 0.5
  %v2607 = vadd.f32 %v2575, 0.5
  %v2608 = vadd.f32 %v2576, 0.5
  %v2609 = vadd.f32 %v2577, 0.5
  %v2610 = vadd.f32 %v2578, 0.5
  %v2611 = vadd.f32 %v2579, 0.5
  %v2612 = vadd.f32 %v2580, 0.5
  %v2613 = vadd.f32 %v2581, 0.5
  %v2614 = vadd.f32 %v2582, 0.5
  %v2615 = vadd.f32 %v2583, 0.5
  %v2616 = vadd.f32 %v2584, 0.5
  %v2617 = vadd.f32 %v2585, 0.5
  %v2618 = vadd.f32 %v2586, 0.5
  %v2619 = vadd.f32 %v2587, 0.5
  %v2620 = vadd.f32 %v2588, 0.5
  %v2621 = vadd.f32 %v2589, 0.5
  %v2622 = vadd.f32 %v2590, 0.5
  %v2623 = vadd.f32 %v2591, 0.5
  %v2624 = vadd.f32 %v2592, 0.5
  %v2625 = vadd.f32 %v2593, 0.5
  %v2626 = vadd.f32 %v2594, 0.5
  %v2627 = vadd.f32 %v2595, 0.5
  %v2628 = vadd.f32 %v2596, 0.5
  %v2629 = vadd.f32 %v2597, 0.5
  %v2630 = vadd.f32 %v2598, 0.5
  %v2631 = vadd.f32 %v2599, 0.5
  %v2632 = vadd.f32 %v2600, 0.5
  %v2633 = vadd.f32 %v2601, 0.5
  %v2634 = vadd.f32 %v2602, 0.5
  %v2635 = vadd.f32 %v2603, 0.5
  %v2636 = vadd.f32 %v2604, 0.5
  %v2637 = vadd.f32 %v2605, 0.5
  %v2638 = vmul.f32 %v2352, %v2606
  %v2639 = vmul.f32 %v2357, %v2607
  %v2640 = vmul.f32 %v2362, %v2608
  %v2641 = vmul.f32 %v2367, %v2609
  %v2642 = vmul.f32 %v2372, %v2610
  %v2643 = vmul.f32 %v2377, %v2611
  %v2644 = vmul.f32 %v2382, %v2612
  %v2645 = vmul.f32 %v2387, %v2613
  %v2646 = vmul.f32 %v2392, %v2614
  %v2647 = vmul.f32 %v2397, %v2615
  %v2648 = vmul.f32 %v2402, %v2616
  %v2649 = vmul.f32 %v2407, %v2617
  %v2650 = vmul.f32 %v2412, %v2618
  %v2651 = vmul.f32 %v2417, %v2619
  %v2652 = vmul.f32 %v2422, %v2620
  %v2653 = vmul.f32 %v2427, %v2621
  %v2654 = vmul.f32 %v2432, %v2622
  %v2655 = vmul.f32 %v2437, %v2623
  %v2656 = vmul.f32 %v2442, %v2624
  %v2657 = vmul.f32 %v2447, %v2625
  %v2658 = vmul.f32 %v2452, %v2626
  %v2659 = vmul.f32 %v2457, %v2627
  %v2660 = vmul.f32 %v2462, %v2628
  %v2661 = vmul.f32 %v2467, %v2629
  %v2662 = vmul.f32 %v2472, %v2630
  %v2663 = vmul.f32 %v2477, %v2631
  %v2664 = vmul.f32 %v2482, %v2632
  %v2665 = vmul.f32 %v2487, %v2633
  %v2666 = vmul.f32 %v2492, %v2634
  %v2667 = vmul.f32 %v2497, %v2635
  %v2668 = vmul.f32 %v2502, %v2636
  %v2669 = vmul.f32 %v2507, %v2637
  %2670 = vmatprep.subr.mxu0 0.0
  %2671 = vmatpush1.msra.mxu0 %v2653
  %2672 = vmatprep.subr.mxu0 0.0
  %2673 = vmatpush1.msra.mxu0 %v2652
  %2674 = vmatprep.subr.mxu0 0.0
  %2675 = vmatpush1.msra.mxu0 %v2651
  %2676 = vmatprep.subr.mxu0 0.0
  %2677 = vmatpush1.msra.mxu0 %v2650
  %2678 = vmatprep.subr.mxu0 0.0
  %2679 = vmatpush1.msra.mxu0 %v2649
  %2680 = vmatprep.subr.mxu0 0.0
  %2681 = vmatpush1.msra.mxu0 %v2648
  %2682 = vmatprep.subr.mxu0 0.0
  %2683 = vmatpush1.msra.mxu0 %v2647
  %2684 = vmatprep.subr.mxu0 0.0
  %2685 = vmatpush1.msra.mxu0 %v2646
  %2686 = vmatprep.subr.mxu0 0.0
  %2687 = vmatpush1.msra.mxu0 %v2645
  %2688 = vmatprep.subr.mxu0 0.0
  %2689 = vmatpush1.msra.mxu0 %v2644
  %2690 = vmatprep.subr.mxu0 0.0
  %2691 = vmatpush1.msra.mxu0 %v2643
  %2692 = vmatprep.subr.mxu0 0.0
  %2693 = vmatpush1.msra.mxu0 %v2642
  %2694 = vmatprep.subr.mxu0 0.0
  %2695 = vmatpush1.msra.mxu0 %v2641
  %2696 = vmatprep.subr.mxu0 0.0
  %2697 = vmatpush1.msra.mxu0 %v2640
  %2698 = vmatprep.subr.mxu0 0.0
  %2699 = vmatpush1.msra.mxu0 %v2639
  %2700 = vmatprep.subr.mxu0 0.0
  %2701 = vmatpush1.msra.mxu0 %v2638
  %2702 = vmatprep.subr.mxu0 0.0
  %2703 = vmatpush2.msra.mxu0 %v2669
  %2704 = vmatprep.subr.mxu0 0.0
  %2705 = vmatpush2.msra.mxu0 %v2668
  %2706 = vmatprep.subr.mxu0 0.0
  %2707 = vmatpush2.msra.mxu0 %v2667
  %2708 = vmatprep.subr.mxu0 0.0
  %2709 = vmatpush2.msra.mxu0 %v2666
  %2710 = vmatprep.subr.mxu0 0.0
  %2711 = vmatpush2.msra.mxu0 %v2665
  %2712 = vmatprep.subr.mxu0 0.0
  %2713 = vmatpush2.msra.mxu0 %v2664
  %2714 = vmatprep.subr.mxu0 0.0
  %2715 = vmatpush2.msra.mxu0 %v2663
  %2716 = vmatprep.subr.mxu0 0.0
  %2717 = vmatpush2.msra.mxu0 %v2662
  %2718 = vmatprep.subr.mxu0 0.0
  %2719 = vmatpush2.msra.mxu0 %v2661
  %2720 = vmatprep.subr.mxu0 0.0
  %2721 = vmatpush2.msra.mxu0 %v2660
  %2722 = vmatprep.subr.mxu0 0.0
  %2723 = vmatpush2.msra.mxu0 %v2659
  %2724 = vmatprep.subr.mxu0 0.0
  %2725 = vmatpush2.msra.mxu0 %v2658
  %2726 = vmatprep.subr.mxu0 0.0
  %2727 = vmatpush2.msra.mxu0 %v2657
  %2728 = vmatprep.subr.mxu0 0.0
  %2729 = vmatpush2.msra.mxu0 %v2656
  %2730 = vmatprep.subr.mxu0 0.0
  %2731 = vmatpush2.msra.mxu0 %v2655
  %2732 = vmatprep.subr.mxu0 0.0
  %2733 = vmatpush2.msra.mxu0 %v2654
  %2734 = vmatprep.mubr.f32.mxu0 %v52
  %2735 = vmatmul.mubr.f32.gmra.mxu0 %v51
  %v2736 = vpop.f32.mrf.mxu0
  %v2737 = vadd.f32 0.0, %v2736
  %v2738 = vpop.f32.mrf.mxu0
  %2739 = vmatprep.mubr.f32.mxu0 %v54
  %2740 = vmatmul.mubr.f32.gmra.mxu0 %v53
  %v2741 = vpop.f32.mrf.mxu0
  %v2742 = vadd.f32 0.0, %v2741
  %v2743 = vpop.f32.mrf.mxu0
  %2744 = vdwg.mxu0
  %v2745 = vld [vmem:[%s3 + $0x158] sm:$0xff]
  %v2746 = vld [vmem:[%s3 + $0x160] sm:$0xff]
  %v2747 = vld [vmem:[%s3 + $0x168] sm:$0xff]
  %v2748 = vld [vmem:[%s3 + $0x170] sm:$0xff]
  %v2749 = vld [vmem:[%s3 + $0x178] sm:$0xff]
  %v2750 = vld [vmem:[%s3 + $0x180] sm:$0xff]
  %v2751 = vld [vmem:[%s3 + $0x188] sm:$0xff]
  %v2752 = vld [vmem:[%s3 + $0x190] sm:$0xff]
  %v2754 = vsel %vm146, %v2737, 0
  %v2757 = vsel %vm146, %v2742, 0
  %2759 = vmatprep.subr.mxu0 0.0
  %2760 = vmatpush1.msra.mxu0 0.0
  %2761 = vmatprep.subr.mxu0 0.0
  %2762 = vmatpush1.msra.mxu0 0.0
  %2763 = vmatprep.subr.mxu0 0.0
  %2764 = vmatpush1.msra.mxu0 0.0
  %2765 = vmatprep.subr.mxu0 0.0
  %2766 = vmatpush1.msra.mxu0 0.0
  %2767 = vmatprep.subr.mxu0 0.0
  %2768 = vmatpush1.msra.mxu0 0.0
  %2769 = vmatprep.subr.mxu0 0.0
  %2770 = vmatpush1.msra.mxu0 0.0
  %2771 = vmatprep.subr.mxu0 0.0
  %2772 = vmatpush1.msra.mxu0 0.0
  %2773 = vmatprep.subr.mxu0 0.0
  %2774 = vmatpush1.msra.mxu0 0.0
  %2775 = vmatprep.subr.mxu0 0.0
  %2776 = vmatpush1.msra.mxu0 0.0
  %2777 = vmatprep.subr.mxu0 0.0
  %2778 = vmatpush1.msra.mxu0 0.0
  %2779 = vmatprep.subr.mxu0 0.0
  %2780 = vmatpush1.msra.mxu0 0.0
  %2781 = vmatprep.subr.mxu0 0.0
  %2782 = vmatpush1.msra.mxu0 0.0
  %2783 = vmatprep.subr.mxu0 0.0
  %2784 = vmatpush1.msra.mxu0 %v2752
  %2785 = vmatprep.subr.mxu0 0.0
  %2786 = vmatpush1.msra.mxu0 %v2751
  %2787 = vmatprep.subr.mxu0 0.0
  %2788 = vmatpush1.msra.mxu0 %v2750
  %2789 = vmatprep.subr.mxu0 0.0
  %2790 = vmatpush1.msra.mxu0 %v2749
  %2791 = vmatprep.subr.mxu0 0.0
  %2792 = vmatpush2.msra.mxu0 0.0
  %2793 = vmatprep.subr.mxu0 0.0
  %2794 = vmatpush2.msra.mxu0 0.0
  %2795 = vmatprep.subr.mxu0 0.0
  %2796 = vmatpush2.msra.mxu0 0.0
  %2797 = vmatprep.subr.mxu0 0.0
  %2798 = vmatpush2.msra.mxu0 0.0
  %2799 = vmatprep.subr.mxu0 0.0
  %2800 = vmatpush2.msra.mxu0 0.0
  %2801 = vmatprep.subr.mxu0 0.0
  %2802 = vmatpush2.msra.mxu0 0.0
  %2803 = vmatprep.subr.mxu0 0.0
  %2804 = vmatpush2.msra.mxu0 0.0
  %2805 = vmatprep.subr.mxu0 0.0
  %2806 = vmatpush2.msra.mxu0 0.0
  %2807 = vmatprep.subr.mxu0 0.0
  %2808 = vmatpush2.msra.mxu0 0.0
  %2809 = vmatprep.subr.mxu0 0.0
  %2810 = vmatpush2.msra.mxu0 0.0
  %2811 = vmatprep.subr.mxu0 0.0
  %2812 = vmatpush2.msra.mxu0 0.0
  %2813 = vmatprep.subr.mxu0 0.0
  %2814 = vmatpush2.msra.mxu0 0.0
  %2815 = vmatprep.subr.mxu0 0.0
  %2816 = vmatpush2.msra.mxu0 0.0
  %2817 = vmatprep.subr.mxu0 0.0
  %2818 = vmatpush2.msra.mxu0 0.0
  %2819 = vmatprep.subr.mxu0 0.0
  %2820 = vmatpush2.msra.mxu0 0.0
  %2821 = vmatprep.subr.mxu0 0.0
  %2822 = vmatpush2.msra.mxu0 0.0
  %2823 = vmatprep.mubr.f32.mxu0 0.0
  %2824 = vmatmul.mubr.f32.gmra.mxu0 %v2754
  %v2825 = vpop.f32.mrf.mxu0
  %v2826 = vadd.f32 0.0, %v2825
  %v2827 = vpop.f32.mrf.mxu0
  %2828 = vmatprep.mubr.f32.mxu0 0.0
  %2829 = vmatmul.mubr.f32.gmra.mxu0 %v2757
  %v2830 = vpop.f32.mrf.mxu0
  %v2831 = vadd.f32 0.0, %v2830
  %v2832 = vpop.f32.mrf.mxu0
  %2833 = vdwg.mxu0
  %2834 = vmatprep.subr.mxu0 0.0
  %2835 = vmatpush1.msra.mxu0 0.0
  %2836 = vmatprep.subr.mxu0 0.0
  %2837 = vmatpush1.msra.mxu0 0.0
  %2838 = vmatprep.subr.mxu0 0.0
  %2839 = vmatpush1.msra.mxu0 0.0
  %2840 = vmatprep.subr.mxu0 0.0
  %2841 = vmatpush1.msra.mxu0 0.0
  %2842 = vmatprep.subr.mxu0 0.0
  %2843 = vmatpush1.msra.mxu0 0.0
  %2844 = vmatprep.subr.mxu0 0.0
  %2845 = vmatpush1.msra.mxu0 0.0
  %2846 = vmatprep.subr.mxu0 0.0
  %2847 = vmatpush1.msra.mxu0 0.0
  %2848 = vmatprep.subr.mxu0 0.0
  %2849 = vmatpush1.msra.mxu0 0.0
  %2850 = vmatprep.subr.mxu0 0.0
  %2851 = vmatpush1.msra.mxu0 0.0
  %2852 = vmatprep.subr.mxu0 0.0
  %2853 = vmatpush1.msra.mxu0 0.0
  %2854 = vmatprep.subr.mxu0 0.0
  %2855 = vmatpush1.msra.mxu0 0.0
  %2856 = vmatprep.subr.mxu0 0.0
  %2857 = vmatpush1.msra.mxu0 0.0
  %2858 = vmatprep.subr.mxu0 0.0
  %2859 = vmatpush1.msra.mxu0 %v2748
  %2860 = vmatprep.subr.mxu0 0.0
  %2861 = vmatpush1.msra.mxu0 %v2747
  %2862 = vmatprep.subr.mxu0 0.0
  %2863 = vmatpush1.msra.mxu0 %v2746
  %2864 = vmatprep.subr.mxu0 0.0
  %2865 = vmatpush1.msra.mxu0 %v2745
  %2866 = vmatprep.subr.mxu0 0.0
  %2867 = vmatpush2.msra.mxu0 0.0
  %2868 = vmatprep.subr.mxu0 0.0
  %2869 = vmatpush2.msra.mxu0 0.0
  %2870 = vmatprep.subr.mxu0 0.0
  %2871 = vmatpush2.msra.mxu0 0.0
  %2872 = vmatprep.subr.mxu0 0.0
  %2873 = vmatpush2.msra.mxu0 0.0
  %2874 = vmatprep.subr.mxu0 0.0
  %2875 = vmatpush2.msra.mxu0 0.0
  %2876 = vmatprep.subr.mxu0 0.0
  %2877 = vmatpush2.msra.mxu0 0.0
  %2878 = vmatprep.subr.mxu0 0.0
  %2879 = vmatpush2.msra.mxu0 0.0
  %2880 = vmatprep.subr.mxu0 0.0
  %2881 = vmatpush2.msra.mxu0 0.0
  %2882 = vmatprep.subr.mxu0 0.0
  %2883 = vmatpush2.msra.mxu0 0.0
  %2884 = vmatprep.subr.mxu0 0.0
  %2885 = vmatpush2.msra.mxu0 0.0
  %2886 = vmatprep.subr.mxu0 0.0
  %2887 = vmatpush2.msra.mxu0 0.0
  %2888 = vmatprep.subr.mxu0 0.0
  %2889 = vmatpush2.msra.mxu0 0.0
  %2890 = vmatprep.subr.mxu0 0.0
  %2891 = vmatpush2.msra.mxu0 0.0
  %2892 = vmatprep.subr.mxu0 0.0
  %2893 = vmatpush2.msra.mxu0 0.0
  %2894 = vmatprep.subr.mxu0 0.0
  %2895 = vmatpush2.msra.mxu0 0.0
  %2896 = vmatprep.subr.mxu0 0.0
  %2897 = vmatpush2.msra.mxu0 0.0
  %2898 = vmatprep.mubr.f32.mxu0 0.0
  %2899 = vmatmul.mubr.f32.gmra.mxu0 %v1635
  %v2900 = vpop.f32.mrf.mxu0
  %v2901 = vadd.f32 %v2826, %v2900
  %v2902 = vpop.f32.mrf.mxu0
  %2903 = vmatprep.mubr.f32.mxu0 0.0
  %2904 = vmatmul.mubr.f32.gmra.mxu0 %v1638
  %v2905 = vpop.f32.mrf.mxu0
  %v2906 = vadd.f32 %v2831, %v2905
  %v2907 = vpop.f32.mrf.mxu0
  %2908 = vdwg.mxu0
  %v2909 = vld [vmem:[%s3 + $0x198] sm:$0x1]
  %v2910 = vlaneseq
  %v2911 = vshrl.u32 %v2910, 7
  %v2912 = vsub.s32 0, %v2911
  %v2913 = vrot.slane %v2909, %v2912
  %v2914 = vadd.f32 %v2901, %v2913
  %v2915 = vadd.f32 %v2906, %v2913
  %v2916 = vmul.f32 %v2914, 0.5
  %v2917 = vmul.f32 %v2915, 0.5
  %v2918 = vtanh.pop %v2916
  %v2919 = vtanh.pop %v2917
  %v2920 = vmul.f32 %v2918, 0.5
  %v2921 = vmul.f32 %v2919, 0.5
  %v2922 = vadd.f32 %v2920, 0.5
  %v2923 = vadd.f32 %v2921, 0.5
  %v2924 = vmul.f32 %v2914, %v2922
  %v2925 = vmul.f32 %v2915, %v2923
  %v2926 = vld [vmem:[%s3 + $0x1a0] sm:$0xff]
  %v2927 = vld [vmem:[%s3 + $0x1a8] sm:$0xff]
  %v2928 = vld [vmem:[%s3 + $0x1b0] sm:$0xff]
  %v2929 = vld [vmem:[%s3 + $0x1b8] sm:$0xff]
  %v2931 = vsel %vm146, %v2924, 0
  %v2934 = vsel %vm146, %v2925, 0
  %2936 = vmatprep.subr.mxu0 0.0
  %2937 = vmatpush1.msra.mxu0 0.0
  %2938 = vmatprep.subr.mxu0 0.0
  %2939 = vmatpush1.msra.mxu0 0.0
  %2940 = vmatprep.subr.mxu0 0.0
  %2941 = vmatpush1.msra.mxu0 0.0
  %2942 = vmatprep.subr.mxu0 0.0
  %2943 = vmatpush1.msra.mxu0 0.0
  %2944 = vmatprep.subr.mxu0 0.0
  %2945 = vmatpush1.msra.mxu0 0.0
  %2946 = vmatprep.subr.mxu0 0.0
  %2947 = vmatpush1.msra.mxu0 0.0
  %2948 = vmatprep.subr.mxu0 0.0
  %2949 = vmatpush1.msra.mxu0 0.0
  %2950 = vmatprep.subr.mxu0 0.0
  %2951 = vmatpush1.msra.mxu0 0.0
  %2952 = vmatprep.subr.mxu0 0.0
  %2953 = vmatpush1.msra.mxu0 0.0
  %2954 = vmatprep.subr.mxu0 0.0
  %2955 = vmatpush1.msra.mxu0 0.0
  %2956 = vmatprep.subr.mxu0 0.0
  %2957 = vmatpush1.msra.mxu0 0.0
  %2958 = vmatprep.subr.mxu0 0.0
  %2959 = vmatpush1.msra.mxu0 0.0
  %2960 = vmatprep.subr.mxu0 0.0
  %2961 = vmatpush1.msra.mxu0 %v2929
  %2962 = vmatprep.subr.mxu0 0.0
  %2963 = vmatpush1.msra.mxu0 %v2928
  %2964 = vmatprep.subr.mxu0 0.0
  %2965 = vmatpush1.msra.mxu0 %v2927
  %2966 = vmatprep.subr.mxu0 0.0
  %2967 = vmatpush1.msra.mxu0 %v2926
  %2968 = vmatprep.subr.mxu0 0.0
  %2969 = vmatpush2.msra.mxu0 0.0
  %2970 = vmatprep.subr.mxu0 0.0
  %2971 = vmatpush2.msra.mxu0 0.0
  %2972 = vmatprep.subr.mxu0 0.0
  %2973 = vmatpush2.msra.mxu0 0.0
  %2974 = vmatprep.subr.mxu0 0.0
  %2975 = vmatpush2.msra.mxu0 0.0
  %2976 = vmatprep.subr.mxu0 0.0
  %2977 = vmatpush2.msra.mxu0 0.0
  %2978 = vmatprep.subr.mxu0 0.0
  %2979 = vmatpush2.msra.mxu0 0.0
  %2980 = vmatprep.subr.mxu0 0.0
  %2981 = vmatpush2.msra.mxu0 0.0
  %2982 = vmatprep.subr.mxu0 0.0
  %2983 = vmatpush2.msra.mxu0 0.0
  %2984 = vmatprep.subr.mxu0 0.0
  %2985 = vmatpush2.msra.mxu0 0.0
  %2986 = vmatprep.subr.mxu0 0.0
  %2987 = vmatpush2.msra.mxu0 0.0
  %2988 = vmatprep.subr.mxu0 0.0
  %2989 = vmatpush2.msra.mxu0 0.0
  %2990 = vmatprep.subr.mxu0 0.0
  %2991 = vmatpush2.msra.mxu0 0.0
  %2992 = vmatprep.subr.mxu0 0.0
  %2993 = vmatpush2.msra.mxu0 0.0
  %2994 = vmatprep.subr.mxu0 0.0
  %2995 = vmatpush2.msra.mxu0 0.0
  %2996 = vmatprep.subr.mxu0 0.0
  %2997 = vmatpush2.msra.mxu0 0.0
  %2998 = vmatprep.subr.mxu0 0.0
  %2999 = vmatpush2.msra.mxu0 0.0
  %3000 = vmatprep.mubr.f32.mxu0 0.0
  %3001 = vmatmul.mubr.f32.gmra.mxu0 %v2931
  %v3002 = vpop.f32.mrf.mxu0
  %v3003 = vadd.f32 0.0, %v3002
  %v3004 = vpop.f32.mrf.mxu0
  %3005 = vmatprep.mubr.f32.mxu0 0.0
  %3006 = vmatmul.mubr.f32.gmra.mxu0 %v2934
  %v3007 = vpop.f32.mrf.mxu0
  %v3008 = vadd.f32 0.0, %v3007
  %v3009 = vpop.f32.mrf.mxu0
  %3010 = vdwg.mxu0
  %v3011 = vadd.f32 %v1628, %v3003
  %v3012 = vadd.f32 %v1629, %v3008
  %v3013 = vld [vmem:[%s3 + $0x1c0] sm:$0x1]
  %v3014 = vlaneseq
  %v3015 = vshrl.u32 %v3014, 7
  %v3016 = vsub.s32 0, %v3015
  %v3017 = vrot.slane %v3013, %v3016
  %v3018 = vadd.f32 %v3011, %v3017
  %v3019 = vadd.f32 %v3012, %v3017
  %v3020 = vld [vmem:[%s3 + $0x1e8] sm:$0xff]
  %v3021 = vld [vmem:[%s3 + $0x1c8] sm:$0xff]
  %v3022 = vld [vmem:[%s3 + $0x1d0] sm:$0xff]
  %v3023 = vld [vmem:[%s3 + $0x1d8] sm:$0xff]
  %v3024 = vld [vmem:[%s3 + $0x1e0] sm:$0xff]
  %v3025 = vlaneseq
  %v3026 = vshrl.u32 %v3025, 7
  %v3027 = vsub.s32 0, %v3026
  %v3028 = vrot.slane %v3020, %v3027
  %v3030 = vsel %vm146, %v3018, 0
  %v3033 = vsel %vm146, %v3019, 0
  %3035 = vmatprep.subr.mxu0 0.0
  %3036 = vmatpush1.msra.mxu0 0.0
  %3037 = vmatprep.subr.mxu0 0.0
  %3038 = vmatpush1.msra.mxu0 0.0
  %3039 = vmatprep.subr.mxu0 0.0
  %3040 = vmatpush1.msra.mxu0 0.0
  %3041 = vmatprep.subr.mxu0 0.0
  %3042 = vmatpush1.msra.mxu0 0.0
  %3043 = vmatprep.subr.mxu0 0.0
  %3044 = vmatpush1.msra.mxu0 0.0
  %3045 = vmatprep.subr.mxu0 0.0
  %3046 = vmatpush1.msra.mxu0 0.0
  %3047 = vmatprep.subr.mxu0 0.0
  %3048 = vmatpush1.msra.mxu0 0.0
  %3049 = vmatprep.subr.mxu0 0.0
  %3050 = vmatpush1.msra.mxu0 0.0
  %3051 = vmatprep.subr.mxu0 0.0
  %3052 = vmatpush1.msra.mxu0 0.0
  %3053 = vmatprep.subr.mxu0 0.0
  %3054 = vmatpush1.msra.mxu0 0.0
  %3055 = vmatprep.subr.mxu0 0.0
  %3056 = vmatpush1.msra.mxu0 0.0
  %3057 = vmatprep.subr.mxu0 0.0
  %3058 = vmatpush1.msra.mxu0 0.0
  %3059 = vmatprep.subr.mxu0 0.0
  %3060 = vmatpush1.msra.mxu0 %v3024
  %3061 = vmatprep.subr.mxu0 0.0
  %3062 = vmatpush1.msra.mxu0 %v3023
  %3063 = vmatprep.subr.mxu0 0.0
  %3064 = vmatpush1.msra.mxu0 %v3022
  %3065 = vmatprep.subr.mxu0 0.0
  %3066 = vmatpush1.msra.mxu0 %v3021
  %3067 = vmatprep.subr.mxu0 0.0
  %3068 = vmatpush2.msra.mxu0 0.0
  %3069 = vmatprep.subr.mxu0 0.0
  %3070 = vmatpush2.msra.mxu0 0.0
  %3071 = vmatprep.subr.mxu0 0.0
  %3072 = vmatpush2.msra.mxu0 0.0
  %3073 = vmatprep.subr.mxu0 0.0
  %3074 = vmatpush2.msra.mxu0 0.0
  %3075 = vmatprep.subr.mxu0 0.0
  %3076 = vmatpush2.msra.mxu0 0.0
  %3077 = vmatprep.subr.mxu0 0.0
  %3078 = vmatpush2.msra.mxu0 0.0
  %3079 = vmatprep.subr.mxu0 0.0
  %3080 = vmatpush2.msra.mxu0 0.0
  %3081 = vmatprep.subr.mxu0 0.0
  %3082 = vmatpush2.msra.mxu0 0.0
  %3083 = vmatprep.subr.mxu0 0.0
  %3084 = vmatpush2.msra.mxu0 0.0
  %3085 = vmatprep.subr.mxu0 0.0
  %3086 = vmatpush2.msra.mxu0 0.0
  %3087 = vmatprep.subr.mxu0 0.0
  %3088 = vmatpush2.msra.mxu0 0.0
  %3089 = vmatprep.subr.mxu0 0.0
  %3090 = vmatpush2.msra.mxu0 0.0
  %3091 = vmatprep.subr.mxu0 0.0
  %3092 = vmatpush2.msra.mxu0 0.0
  %3093 = vmatprep.subr.mxu0 0.0
  %3094 = vmatpush2.msra.mxu0 0.0
  %3095 = vmatprep.subr.mxu0 0.0
  %3096 = vmatpush2.msra.mxu0 0.0
  %3097 = vmatprep.subr.mxu0 0.0
  %3098 = vmatpush2.msra.mxu0 0.0
  %3099 = vmatprep.mubr.f32.mxu0 0.0
  %3100 = vmatmul.mubr.f32.gmra.mxu0 %v3030
  %v3101 = vpop.f32.mrf.mxu0
  %v3102 = vadd.f32 %v3028, %v3101
  %v3103 = vpop.f32.mrf.mxu0
  %3104 = vmatprep.mubr.f32.mxu0 0.0
  %3105 = vmatmul.mubr.f32.gmra.mxu0 %v3033
  %v3106 = vpop.f32.mrf.mxu0
  %v3107 = vadd.f32 %v3028, %v3106
  %v3108 = vpop.f32.mrf.mxu0
  %3109 = vdwg.mxu0
  %v3110 = vmul.f32 %v3102, 0.5
  %v3111 = vmul.f32 %v3107, 0.5
  %v3112 = vtanh.pop %v3110
  %v3113 = vtanh.pop %v3111
  %v3114 = vmul.f32 %v3112, 0.5
  %v3115 = vmul.f32 %v3113, 0.5
  %v3116 = vadd.f32 %v3114, 0.5
  %v3117 = vadd.f32 %v3115, 0.5
  %v3118 = vmul.f32 %v3102, %v3116
  %v3119 = vmul.f32 %v3107, %v3117
  %v3120 = vlaneseq
  %v3121 = vshrl.u32 %v3120, 7
  %v3122 = vsub.s32 1, %v3121
  %v3123 = vrot.slane %v3020, %v3122
  %v3124 = vmul.f32 %v3118, %v3123
  %v3125 = vmul.f32 %v3119, %v3123
  %v3126 = vsel %vm146, %v3124, 0.0
  %3127 = vadd.xlane.f32.xlu0 %v3126
  %v3128 = vpop.xlane.xlu0 %3127
  %v3129 = vsel %vm146, %v3125, 0.0
  %3130 = vadd.xlane.f32.xlu0 %v3129
  %v3131 = vpop.xlane.xlu0 %3130
  %v3132 = vlaneseq
  %v3133 = vshrl.u32 %v3132, 7
  %v3134 = vsub.s32 2, %v3133
  %v3135 = vrot.slane %v3020, %v3134
  %v3136 = vadd.f32 %v3128, %v3135
  %v3137 = vadd.f32 %v3131, %v3135
  %3138 = vrot.lane.b32.xlu0 %v17, 123
  %v3139 = vpop.permute.xlu0 %3138
  %3140 = vrot.lane.b32.xlu0 %v18, 123
  %v3141 = vpop.permute.xlu0 %3140
  %3144 = vxpose.xlu0.b32.start [1/16] %v3139, 128
  %3145 = vxpose.xlu0.b32.cont [2/16] %v3141, 128
  %3146 = vxpose.xlu0.b32.cont [3/16] 0.0, 128
  %3147 = vxpose.xlu0.b32.cont [4/16] 0.0, 128
  %3148 = vxpose.xlu0.b32.cont [5/16] 0.0, 128
  %3149 = vxpose.xlu0.b32.cont [6/16] 0.0, 128
  %3150 = vxpose.xlu0.b32.cont [7/16] 0.0, 128
  %3151 = vxpose.xlu0.b32.cont [8/16] 0.0, 128
  %3152 = vxpose.xlu0.b32.cont [9/16] 0.0, 128
  %3153 = vxpose.xlu0.b32.cont [10/16] 0.0, 128
  %3154 = vxpose.xlu0.b32.cont [11/16] 0.0, 128
  %3155 = vxpose.xlu0.b32.cont [12/16] 0.0, 128
  %3156 = vxpose.xlu0.b32.cont [13/16] 0.0, 128
  %3157 = vxpose.xlu0.b32.cont [14/16] 0.0, 128
  %3158 = vxpose.xlu0.b32.cont [15/16] 0.0, 128
  %3159 = vxpose.xlu0.b32.end [16/16] 0.0, 128
  %v3160 = vpop.trf.xlu0
  %v3161 = vpop.trf.xlu0
  %v3162 = vpop.trf.xlu0
  %v3163 = vpop.trf.xlu0
  %v3164 = vpop.trf.xlu0
  %v3165 = vpop.trf.xlu0
  %v3166 = vpop.trf.xlu0
  %v3167 = vpop.trf.xlu0
  %v3168 = vpop.trf.xlu0
  %v3169 = vpop.trf.xlu0
  %v3170 = vpop.trf.xlu0
  %v3171 = vpop.trf.xlu0
  %v3172 = vpop.trf.xlu0
  %v3173 = vpop.trf.xlu0
  %v3174 = vpop.trf.xlu0
  %v3175 = vpop.trf.xlu0
  %vm3176 = vcmask 130048
  %v3178 = vsel %vm3176, %v3160, 0
  %3180 = vmatprep.subr.mxu0 0.0
  %3181 = vmatpush1.msra.mxu0 0.0
  %3182 = vmatprep.subr.mxu0 0.0
  %3183 = vmatpush1.msra.mxu0 0.0
  %3184 = vmatprep.subr.mxu0 0.0
  %3185 = vmatpush1.msra.mxu0 0.0
  %3186 = vmatprep.subr.mxu0 0.0
  %3187 = vmatpush1.msra.mxu0 0.0
  %3188 = vmatprep.subr.mxu0 0.0
  %3189 = vmatpush1.msra.mxu0 0.0
  %3190 = vmatprep.subr.mxu0 0.0
  %3191 = vmatpush1.msra.mxu0 0.0
  %3192 = vmatprep.subr.mxu0 0.0
  %3193 = vmatpush1.msra.mxu0 0.0
  %3194 = vmatprep.subr.mxu0 0.0
  %3195 = vmatpush1.msra.mxu0 0.0
  %3196 = vmatprep.subr.mxu0 0.0
  %3197 = vmatpush1.msra.mxu0 0.0
  %3198 = vmatprep.subr.mxu0 0.0
  %3199 = vmatpush1.msra.mxu0 0.0
  %3200 = vmatprep.subr.mxu0 0.0
  %3201 = vmatpush1.msra.mxu0 0.0
  %3202 = vmatprep.subr.mxu0 0.0
  %3203 = vmatpush1.msra.mxu0 0.0
  %3204 = vmatprep.subr.mxu0 0.0
  %3205 = vmatpush1.msra.mxu0 0.0
  %3206 = vmatprep.subr.mxu0 0.0
  %3207 = vmatpush1.msra.mxu0 0.0
  %3208 = vmatprep.subr.mxu0 0.0
  %3209 = vmatpush1.msra.mxu0 %v3137
  %3210 = vmatprep.subr.mxu0 0.0
  %3211 = vmatpush1.msra.mxu0 %v3136
  %3212 = vmatprep.subr.mxu0 0.0
  %3213 = vmatpush2.msra.mxu0 0.0
  %3214 = vmatprep.subr.mxu0 0.0
  %3215 = vmatpush2.msra.mxu0 0.0
  %3216 = vmatprep.subr.mxu0 0.0
  %3217 = vmatpush2.msra.mxu0 0.0
  %3218 = vmatprep.subr.mxu0 0.0
  %3219 = vmatpush2.msra.mxu0 0.0
  %3220 = vmatprep.subr.mxu0 0.0
  %3221 = vmatpush2.msra.mxu0 0.0
  %3222 = vmatprep.subr.mxu0 0.0
  %3223 = vmatpush2.msra.mxu0 0.0
  %3224 = vmatprep.subr.mxu0 0.0
  %3225 = vmatpush2.msra.mxu0 0.0
  %3226 = vmatprep.subr.mxu0 0.0
  %3227 = vmatpush2.msra.mxu0 0.0
  %3228 = vmatprep.subr.mxu0 0.0
  %3229 = vmatpush2.msra.mxu0 0.0
  %3230 = vmatprep.subr.mxu0 0.0
  %3231 = vmatpush2.msra.mxu0 0.0
  %3232 = vmatprep.subr.mxu0 0.0
  %3233 = vmatpush2.msra.mxu0 0.0
  %3234 = vmatprep.subr.mxu0 0.0
  %3235 = vmatpush2.msra.mxu0 0.0
  %3236 = vmatprep.subr.mxu0 0.0
  %3237 = vmatpush2.msra.mxu0 0.0
  %3238 = vmatprep.subr.mxu0 0.0
  %3239 = vmatpush2.msra.mxu0 0.0
  %3240 = vmatprep.subr.mxu0 0.0
  %3241 = vmatpush2.msra.mxu0 0.0
  %3242 = vmatprep.subr.mxu0 0.0
  %3243 = vmatpush2.msra.mxu0 0.0
  %3244 = vmatprep.mubr.f32.mxu0 0.0
  %3245 = vmatmul.mubr.f32.gmra.mxu0 %v3178
  %v3246 = vpop.f32.mrf.mxu0
  %v3247 = vadd.f32 0.0, %v3246
  %v3248 = vpop.f32.mrf.mxu0
  %3249 = vdwg.mxu0
  %vm3250 = vcmask 1024
  %3251 = vst.msk [vmem:[%s4] sm:$0x3] %vm3250, %v3247
  // Predicated region
  $region18: #{sake_forward.1} parent=0 // pred_check
    _
  $region19: #{sake_forward.1} parent=0 // pred_check_branch
    %3253 = sbr.rel (0) target = $region21
  $region20: #{sake_forward.1} parent=0 // pred_region
    _
  $region21: #{sake_forward.1} parent=0 // pred_fallthru
    _
  // Predicated region
  $region22: #{sake_forward.1} parent=0 // pred_check
    _
  $region23: #{sake_forward.1} parent=0 // pred_check_branch
    %3255 = sbr.rel (0) target = $region25
  $region24: #{sake_forward.1} parent=0 // pred_region
    _
  $region25: #{sake_forward.1} parent=0 // pred_fallthru
    _

</llo_original>
